<compile_context>
chip_gen: v6e
topology: v6e:2x2x1
jax: 0.10.0
libtpu: 0.0.40
codegen_flags: <defaults>
</compile_context>

<pallas_src>
import jax
import jax.numpy as jnp
from jax.experimental import pallas as pl
from jax.experimental.pallas import tpu as pltpu

BN_EPS = 1e-5


# ----------------------------- Pallas kernels -----------------------------

def _attention_kernel(x_ref, wqkv_ref, bqkv_ref, gamma_ref, y_ref, a_ref):
  """One batch element of SAGAN-style image self-attention.

  x block: (1, C, N) f32.  y block: (C, N) bf16 (channel-major, feeds im2col
  directly).  attn block: (1, N, N) f32.  gamma is a (1, 1) scalar in SMEM.
  """
  x = x_ref[0]                                                     # (C, N) f32
  c = x.shape[0]
  xb = x.astype(jnp.bfloat16)

  # Fused q/k/v projection: one bf16 (3C, C) @ (C, N) matmul + one bias add.
  qkv = jnp.dot(wqkv_ref[...], xb,
                preferred_element_type=jnp.float32) + bqkv_ref[...]  # (3C, N)
  q = qkv[0 * c:1 * c].astype(jnp.bfloat16)
  k = qkv[1 * c:2 * c].astype(jnp.bfloat16)
  v = qkv[2 * c:3 * c].astype(jnp.bfloat16)

  # energy[i, j] = sum_c q[c, i] * k[c, j]  -> (N, N), bf16 operands / f32 acc.
  logits = jax.lax.dot_general(q, k, (((0,), (0,)), ((), ())),
                               preferred_element_type=jnp.float32)
  m = jnp.max(logits, axis=-1, keepdims=True)
  e = jnp.exp(logits - m)                                          # f32 softmax
  attn = e * pl.reciprocal(jnp.sum(e, axis=-1, keepdims=True), approx=True)

  # out[c, i] = sum_j v[c, j] * attn[i, j]  -> (C, N)
  out = jax.lax.dot_general(v, attn.astype(jnp.bfloat16),
                            (((1,), (1,)), ((), ())),
                            preferred_element_type=jnp.float32)

  y_ref[...] = (gamma_ref[0, 0] * out + x).astype(y_ref.dtype)     # residual f32 -> bf16 store
  a_ref[0] = attn


def _conv_bn_relu_kernel(w_ref, p_ref, g_ref, b_ref, o_ref):
  """Lane-dense im2col conv + training-mode BatchNorm + ReLU.

  w: (oc_blk, K_pad) bf16, p: (K_pad, M) bf16 with M = B*OH*OW on the lane
  axis, per-channel BN params: (oc_blk, 1) f32.  Output: (oc_blk, M).

  The conv bias is intentionally omitted: a per-channel constant added before
  training-mode BN is exactly cancelled by the mean subtraction.
  """
  y = jnp.dot(w_ref[...], p_ref[...],
              preferred_element_type=jnp.float32)                  # (oc_blk, M) f32
  # Single-pass batch statistics over the full M extent (biased variance).
  mean = jnp.mean(y, axis=1, keepdims=True)
  mean_sq = jnp.mean(y * y, axis=1, keepdims=True)
  var = jnp.maximum(mean_sq - mean * mean, 0.0)
  yhat = (y - mean) * jax.lax.rsqrt(var + BN_EPS)
  o_ref[...] = jnp.maximum(yhat * g_ref[...] + b_ref[...], 0.0).astype(o_ref.dtype)


def _mlp_softmax_kernel(x_ref, w1_ref, b1_ref, w2_ref, b2_ref, o_ref):
  """Linear -> ReLU -> Linear -> Softmax(dim=1), fused.

  bf16 matmul operands, f32 accumulation; exact divide for the final
  probabilities (the approximate EUP reciprocal is only used in attention).
  """
  x = x_ref[...].astype(jnp.bfloat16)
  h = jnp.dot(x, w1_ref[...],
              preferred_element_type=jnp.float32) + b1_ref[...]
  h = jnp.maximum(h, 0.0)
  logits = jnp.dot(h.astype(jnp.bfloat16), w2_ref[...],
                   preferred_element_type=jnp.float32) + b2_ref[...]
  m = jnp.max(logits, axis=-1, keepdims=True)
  e = jnp.exp(logits - m)
  o_ref[...] = e / jnp.sum(e, axis=-1, keepdims=True)


# ------------------------------ JAX wrappers -------------------------------

def image_self_attention(x, p):
  B, C, H, W = x.shape
  N = H * W
  xf = x.reshape(B, C, N).astype(jnp.float32)
  # TODO(synk): at 224x224 (N=50176) the full (N, N) attention map does not fit
  #             VMEM; a flash-style streamed softmax over key tiles is required.
  y, attn = pl.pallas_call(
      _attention_kernel,
      out_shape=(jax.ShapeDtypeStruct((C, B * N), jnp.bfloat16),   # channel-major bf16
                 jax.ShapeDtypeStruct((B, N, N), jnp.float32)),
      grid=(B,),
      in_specs=[
          pl.BlockSpec((1, C, N), lambda b: (b, 0, 0)),
          pl.BlockSpec((3 * C, C), lambda b: (0, 0)),
          pl.BlockSpec((3 * C, 1), lambda b: (0, 0)),
          pl.BlockSpec(memory_space=pltpu.MemorySpace.SMEM),       # gamma scalar
      ],
      out_specs=(pl.BlockSpec((C, N), lambda b: (0, b)),           # lane-dense N
                 pl.BlockSpec((1, N, N), lambda b: (b, 0, 0))),
      compiler_params=pltpu.CompilerParams(
          dimension_semantics=("parallel",)),                      # v7x: 2 TCs over batch
  )(xf, p["wqkv"], p["bqkv"], p["gamma"])
  return y.reshape(C, B, H, W), attn


def _round_up(x, m):
  return ((x + m - 1) // m) * m


def _im2col_T(x_cb, kh, kw, stride, pad, k_pad):
  """x_cb: (C, B, H, W) -> transposed patches (K_pad, B*OH*OW), K = C*kh*kw.

  Runs in x_cb's dtype (bf16 activations), so the 9x-expanded patches array is
  produced directly in bf16 with no separate cast pass.
  """
  C, B, H, W = x_cb.shape
  xp = jnp.pad(x_cb, ((0, 0), (0, 0), (pad, pad), (pad, pad)))
  OH = (H + 2 * pad - kh) // stride + 1
  OW = (W + 2 * pad - kw) // stride + 1
  cols = []
  for i in range(kh):
    for j in range(kw):
      cols.append(xp[:, :, i:i + stride * OH:stride, j:j + stride * OW:stride])
  patches = jnp.stack(cols, axis=1).reshape(C * kh * kw, B * OH * OW)
  if k_pad > C * kh * kw:
    patches = jnp.pad(patches, ((0, k_pad - C * kh * kw), (0, 0)))
  return patches, OH, OW


def conv_bn_relu(x_cb, p, out_dtype, stride=2, pad=1):
  """x_cb: (IC, B, H, W) -> (OC, B, OH, OW); conv3x3/s2/p1 + BN(train) + ReLU."""
  wmat = p["wmat"]                              # (OC, K_pad) bf16, prepacked at init
  OC, K_pad = wmat.shape
  B = x_cb.shape[1]
  patches, OH, OW = _im2col_T(x_cb, 3, 3, stride, pad, K_pad)
  M = B * OH * OW                               # lane-dense output axis
  # v7x: split output channels across TensorCores when the (8,128) block
  # constraint allows it (OC=24 -> 3x8); per-channel BN keeps stats exact.
  oc_blk = 8 if (OC % 8 == 0 and OC > 8) else OC
  out = pl.pallas_call(
      _conv_bn_relu_kernel,
      out_shape=jax.ShapeDtypeStruct((OC, M), out_dtype),
      grid=(OC // oc_blk,),
      in_specs=[
          pl.BlockSpec((oc_blk, K_pad), lambda i: (i, 0)),
          pl.BlockSpec((K_pad, M), lambda i: (0, 0)),
          pl.BlockSpec((oc_blk, 1), lambda i: (i, 0)),
          pl.BlockSpec((oc_blk, 1), lambda i: (i, 0)),
      ],
      out_specs=pl.BlockSpec((oc_blk, M), lambda i: (i, 0)),
      compiler_params=pltpu.CompilerParams(
          dimension_semantics=("parallel",)),
  )(wmat, patches, p["bn_g"], p["bn_b"])
  return out.reshape(OC, B, OH, OW)


def mlp_head(flat, p):
  # TODO(synk): at the original 224x224 size (feat=18816) w1 (~37 MiB bf16)
  #             needs a K-tiled grid with a VMEM f32 accumulator and an
  #             explicit vmem_limit_bytes; untiled is fine at this toy shape.
  B = flat.shape[0]
  n_out = p["w2"].shape[1]
  return pl.pallas_call(
      _mlp_softmax_kernel,
      out_shape=jax.ShapeDtypeStruct((B, n_out), jnp.float32),
      in_specs=[pl.BlockSpec(memory_space=pltpu.MemorySpace.VMEM)] * 5,
      out_specs=pl.BlockSpec(memory_space=pltpu.MemorySpace.VMEM),
  )(flat, p["w1"], p["b1"], p["w2"], p["b2"])


def basic_cnn_forward(x, params):
  B = x.shape[0]
  y_cb, attend = image_self_attention(x, params["attn"])      # (C, B, H, W) bf16
  h = conv_bn_relu(y_cb, params["convs"][0], jnp.bfloat16)     # (6,  B, H/2, W/2)
  h = conv_bn_relu(h, params["convs"][1], jnp.bfloat16)        # (12, B, H/4, W/4)
  h = conv_bn_relu(h, params["convs"][2], jnp.float32)         # (24, B, H/8, W/8)
  # nn.Flatten(1) on NCHW ordering: per-batch features in (c, h, w) order.
  # Negligible (24*B*4 elements) here; TODO(synk): at 224x224 fold this
  # permutation into the conv3 output layout / MLP contraction instead.
  flat = h.transpose(1, 0, 2, 3).reshape(B, -1)
  probs = mlp_head(flat, params["fc"])
  return probs, attend


# ---------------------------- parameter init -------------------------------

def init_params(key, H, W):
  """PyTorch-layout parameters (as the nn.Module would hold them)."""
  ks = jax.random.split(key, 16)
  C = 3

  def nrm(k, shape, scale=0.1):
    return (scale * jax.random.normal(k, shape)).astype(jnp.float32)

  attn = dict(
      wq=nrm(ks[0], (C, C)), bq=nrm(ks[1], (C, 1)),
      wk=nrm(ks[2], (C, C)), bk=nrm(ks[3], (C, 1)),
      wv=nrm(ks[4], (C, C)), bv=nrm(ks[5], (C, 1)),
      # SAGAN initializes gamma to 0; use 0.5 so the residual-scale path is exercised.
      gamma=jnp.full((1, 1), 0.5, jnp.float32),
  )

  def conv_p(kw, kb, oc, ic):
    # Conv2d bias is created for spec fidelity but has no effect on the output
    # (train-mode BatchNorm cancels it); it is dropped in prepare_params.
    return dict(w=nrm(kw, (oc, ic, 3, 3)), b=nrm(kb, (oc,)),
                bn_g=jnp.ones((oc,), jnp.float32),
                bn_b=jnp.zeros((oc,), jnp.float32))

  conv1 = conv_p(ks[6], ks[7], 6, 3)
  conv2 = conv_p(ks[8], ks[9], 12, 6)
  conv3 = conv_p(ks[10], ks[11], 24, 12)

  feat = 24 * (H // 8) * (W // 8)     # 24*28*28 in the original (224x224 input)
  fc = dict(w1=nrm(ks[12], (feat, 1000), 0.05), b1=nrm(ks[13], (1000,), 0.05),
            w2=nrm(ks[14], (1000, 4), 0.05), b2=nrm(ks[15], (4,), 0.05))

  return dict(attn=attn, conv1=conv1, conv2=conv2, conv3=conv3, fc=fc)


def prepare_params(raw):
  """One-time (outside the traced forward) conversion to kernel-ready form:
  concatenated bf16 qkv weights, padded bf16 im2col weight matrices, column
  BN vectors, bf16 MLP weights.  Keeps per-step XLA glue off the hot path."""
  attn = dict(
      wqkv=jnp.concatenate([raw["attn"]["wq"], raw["attn"]["wk"],
                            raw["attn"]["wv"]], axis=0).astype(jnp.bfloat16),
      bqkv=jnp.concatenate([raw["attn"]["bq"], raw["attn"]["bk"],
                            raw["attn"]["bv"]], axis=0).astype(jnp.float32),
      gamma=raw["attn"]["gamma"].reshape(1, 1).astype(jnp.float32),
  )
  convs = []
  for name in ("conv1", "conv2", "conv3"):
    p = raw[name]
    w = p["w"]
    OC, IC, KH, KW = w.shape
    K = IC * KH * KW
    K_pad = _round_up(K, 32)                    # 27->32, 54->64, 108->128
    wmat = jnp.pad(w.reshape(OC, K), ((0, 0), (0, K_pad - K))).astype(jnp.bfloat16)
    # Conv bias dropped on purpose: cancelled exactly by train-mode BN.
    convs.append(dict(wmat=wmat,
                      bn_g=p["bn_g"].reshape(OC, 1).astype(jnp.float32),
                      bn_b=p["bn_b"].reshape(OC, 1).astype(jnp.float32)))
  fc = dict(w1=raw["fc"]["w1"].astype(jnp.bfloat16),
            b1=raw["fc"]["b1"].reshape(1, -1).astype(jnp.float32),
            w2=raw["fc"]["w2"].astype(jnp.bfloat16),
            b2=raw["fc"]["b2"].reshape(1, -1).astype(jnp.float32))
  return dict(attn=attn, convs=convs, fc=fc)


# --------------------------------- main -------------------------------------

if __name__ == "__main__":
  B, C, H, W = 2, 3, 16, 16
  key = jax.random.PRNGKey(0)
  kx, kp = jax.random.split(key)
  x = jax.random.normal(kx, (B, C, H, W), dtype=jnp.float32)
  raw_params = init_params(kp, H, W)
  params = prepare_params(raw_params)           # hoisted out of the traced path

  fwd = jax.jit(basic_cnn_forward)
  probs, attend = fwd(x, params)
  jax.block_until_ready((probs, attend))

  assert probs.shape == (B, 4)
  assert attend.shape == (B, H * W, H * W)
  assert bool(jnp.all(jnp.isfinite(probs)))
  assert bool(jnp.allclose(jnp.sum(probs, axis=-1), 1.0, atol=1e-3))
  print("KERNEL_OK")
</pallas_src>

<mosaic_0001>
module attributes {stable_mosaic.version = 11 : i64} {
  func.func @_attention_kernel(%arg0: i32, %arg1: memref<1x3x256xf32, #tpu.memory_space<vmem>>, %arg2: memref<9x3xbf16, #tpu.memory_space<vmem>>, %arg3: memref<9x1xf32, #tpu.memory_space<vmem>>, %arg4: memref<1x1xf32, #tpu.memory_space<smem>>, %arg5: memref<3x256xbf16, #tpu.memory_space<vmem>>, %arg6: memref<1x256x256xf32, #tpu.memory_space<vmem>>) attributes {dimension_semantics = [#tpu.dimension_semantics<parallel>], iteration_bounds = array<i64: 2>, scalar_prefetch = 0 : i64, scratch_operands = 0 : i64, tpu.core_type = #tpu.core_type<tc>, window_params = [{transform_indices = @transform_0, window_bounds = array<i64: 1, 3, 256>}, {pipeline_mode = #tpu.pipeline_mode<synchronous>, transform_indices = @transform_1, window_bounds = array<i64: 9, 3>}, {pipeline_mode = #tpu.pipeline_mode<synchronous>, transform_indices = @transform_2, window_bounds = array<i64: 9, 1>}, {transform_indices = @transform_3, window_bounds = array<i64: 1, 1>}, {transform_indices = @transform_4, window_bounds = array<i64: 3, 256>}, {transform_indices = @transform_5, window_bounds = array<i64: 1, 256, 256>}]} {
    %c0 = arith.constant 0 : index
    %c0_0 = arith.constant 0 : index
    %c0_1 = arith.constant 0 : index
    %0 = vector.load %arg1[%c0, %c0_0, %c0_1] : memref<1x3x256xf32, #tpu.memory_space<vmem>>, vector<1x3x256xf32>
    %1 = vector.shape_cast %0 : vector<1x3x256xf32> to vector<3x256xf32>
    %2 = arith.truncf %1 : vector<3x256xf32> to vector<3x256xbf16>
    %c0_2 = arith.constant 0 : index
    %c0_3 = arith.constant 0 : index
    %3 = vector.load %arg2[%c0_2, %c0_3] : memref<9x3xbf16, #tpu.memory_space<vmem>>, vector<9x3xbf16>
    %cst = arith.constant dense<0.000000e+00> : vector<9x256xf32>
    %4 = tpu.matmul %3, %2, %cst {dimension_numbers = #tpu.dot_dimension_numbers<[1], [0], [0], [1], [0, 0, 1, 1], [], []>} : vector<9x3xbf16>, vector<3x256xbf16>, vector<9x256xf32> -> vector<9x256xf32>
    %c0_4 = arith.constant 0 : index
    %c0_5 = arith.constant 0 : index
    %5 = vector.load %arg3[%c0_4, %c0_5] : memref<9x1xf32, #tpu.memory_space<vmem>>, vector<9x1xf32>
    %6 = vector.broadcast %5 : vector<9x1xf32> to vector<9x256xf32>
    %7 = arith.addf %4, %6 : vector<9x256xf32>
    %8 = vector.extract_strided_slice %7 {offsets = [0, 0], sizes = [3, 256], strides = [1, 1]} : vector<9x256xf32> to vector<3x256xf32>
    %9 = arith.truncf %8 : vector<3x256xf32> to vector<3x256xbf16>
    %10 = vector.extract_strided_slice %7 {offsets = [3, 0], sizes = [3, 256], strides = [1, 1]} : vector<9x256xf32> to vector<3x256xf32>
    %11 = arith.truncf %10 : vector<3x256xf32> to vector<3x256xbf16>
    %12 = vector.extract_strided_slice %7 {offsets = [6, 0], sizes = [3, 256], strides = [1, 1]} : vector<9x256xf32> to vector<3x256xf32>
    %13 = arith.truncf %12 : vector<3x256xf32> to vector<3x256xbf16>
    %cst_6 = arith.constant dense<0.000000e+00> : vector<256x256xf32>
    %14 = tpu.matmul %9, %11, %cst_6 {dimension_numbers = #tpu.dot_dimension_numbers<[0], [0], [1], [1], [0, 1, 1, 1], [], []>} : vector<3x256xbf16>, vector<3x256xbf16>, vector<256x256xf32> -> vector<256x256xf32>
    %cst_7 = arith.constant dense<0xFF800000> : vector<256xf32>
    %15 = vector.multi_reduction <maximumf>, %14, %cst_7 [1] : vector<256x256xf32> to vector<256xf32>
    %16 = vector.shape_cast %15 : vector<256xf32> to vector<256x1xf32>
    %17 = vector.broadcast %16 : vector<256x1xf32> to vector<256x256xf32>
    %18 = arith.subf %14, %17 : vector<256x256xf32>
    %19 = math.exp %18 : vector<256x256xf32>
    %cst_8 = arith.constant dense<0.000000e+00> : vector<256xf32>
    %20 = vector.multi_reduction <add>, %19, %cst_8 [1] : vector<256x256xf32> to vector<256xf32>
    %21 = vector.shape_cast %20 : vector<256xf32> to vector<256x1xf32>
    %22 = tpu.reciprocal %21 {approx = true} : vector<256x1xf32> -> vector<256x1xf32>
    %23 = vector.broadcast %22 : vector<256x1xf32> to vector<256x256xf32>
    %24 = arith.mulf %19, %23 : vector<256x256xf32>
    %25 = arith.truncf %24 : vector<256x256xf32> to vector<256x256xbf16>
    %cst_9 = arith.constant dense<0.000000e+00> : vector<3x256xf32>
    %26 = tpu.matmul %13, %25, %cst_9 {dimension_numbers = #tpu.dot_dimension_numbers<[1], [1], [0], [0], [0, 0, 1, 0], [], []>} : vector<3x256xbf16>, vector<256x256xbf16>, vector<3x256xf32> -> vector<3x256xf32>
    %c0_10 = arith.constant 0 : index
    %c0_11 = arith.constant 0 : index
    %27 = memref.load %arg4[%c0_10, %c0_11] : memref<1x1xf32, #tpu.memory_space<smem>>
    %28 = vector.broadcast %27 : f32 to vector<3x256xf32>
    %29 = arith.mulf %28, %26 : vector<3x256xf32>
    %30 = arith.addf %29, %1 : vector<3x256xf32>
    %31 = arith.truncf %30 : vector<3x256xf32> to vector<3x256xbf16>
    %c0_12 = arith.constant 0 : index
    %c0_13 = arith.constant 0 : index
    %32 = vector.load %arg5[%c0_12, %c0_13] : memref<3x256xbf16, #tpu.memory_space<vmem>>, vector<3x256xbf16>
    tpu.vector_store %arg5[%c0_12, %c0_13], %31 {strides = array<i32>} : memref<3x256xbf16, #tpu.memory_space<vmem>>, vector<3x256xbf16>,
    %c0_14 = arith.constant 0 : index
    %c0_15 = arith.constant 0 : index
    %c0_16 = arith.constant 0 : index
    %33 = vector.load %arg6[%c0_14, %c0_15, %c0_16] : memref<1x256x256xf32, #tpu.memory_space<vmem>>, vector<1x256x256xf32>
    %34 = vector.shape_cast %33 : vector<1x256x256xf32> to vector<256x256xf32>
    %35 = vector.shape_cast %24 : vector<256x256xf32> to vector<1x256x256xf32>
    tpu.vector_store %arg6[%c0_14, %c0_15, %c0_16], %35 {strides = array<i32>} : memref<1x256x256xf32, #tpu.memory_space<vmem>>, vector<1x256x256xf32>,
    return
  }
  func.func @transform_0(%arg0: i32) -> (i32, i32, i32) {
    %c0_i32 = arith.constant 0 : i32
    %c0_i32_0 = arith.constant 0 : i32
    %c0_i32_1 = arith.constant 0 : i32
    return %arg0, %c0_i32, %c0_i32_0 : i32, i32, i32
  }
  func.func @transform_1(%arg0: i32) -> (i32, i32) {
    %c0_i32 = arith.constant 0 : i32
    %c0_i32_0 = arith.constant 0 : i32
    %c0_i32_1 = arith.constant 0 : i32
    return %c0_i32, %c0_i32_0 : i32, i32
  }
  func.func @transform_2(%arg0: i32) -> (i32, i32) {
    %c0_i32 = arith.constant 0 : i32
    %c0_i32_0 = arith.constant 0 : i32
    %c0_i32_1 = arith.constant 0 : i32
    return %c0_i32, %c0_i32_0 : i32, i32
  }
  func.func @transform_3(%arg0: i32) -> (i32, i32) {
    %c0_i32 = arith.constant 0 : i32
    %c0_i32_0 = arith.constant 0 : i32
    %c0_i32_1 = arith.constant 0 : i32
    return %c0_i32, %c0_i32_0 : i32, i32
  }
  func.func @transform_4(%arg0: i32) -> (i32, i32) {
    %c0_i32 = arith.constant 0 : i32
    %c0_i32_0 = arith.constant 0 : i32
    return %c0_i32, %arg0 : i32, i32
  }
  func.func @transform_5(%arg0: i32) -> (i32, i32, i32) {
    %c0_i32 = arith.constant 0 : i32
    %c0_i32_0 = arith.constant 0 : i32
    %c0_i32_1 = arith.constant 0 : i32
    return %arg0, %c0_i32, %c0_i32_0 : i32, i32, i32
  }
}

module attributes {stable_mosaic.version = 11 : i64} {
  func.func @_conv_bn_relu_kernel(%arg0: i32, %arg1: memref<6x32xbf16, #tpu.memory_space<vmem>>, %arg2: memref<32x128xbf16, #tpu.memory_space<vmem>>, %arg3: memref<6x1xf32, #tpu.memory_space<vmem>>, %arg4: memref<6x1xf32, #tpu.memory_space<vmem>>, %arg5: memref<6x128xbf16, #tpu.memory_space<vmem>>) attributes {dimension_semantics = [#tpu.dimension_semantics<parallel>], iteration_bounds = array<i64: 1>, scalar_prefetch = 0 : i64, scratch_operands = 0 : i64, tpu.core_type = #tpu.core_type<tc>, window_params = [{transform_indices = @transform_0, window_bounds = array<i64: 6, 32>}, {pipeline_mode = #tpu.pipeline_mode<synchronous>, transform_indices = @transform_1, window_bounds = array<i64: 32, 128>}, {transform_indices = @transform_2, window_bounds = array<i64: 6, 1>}, {transform_indices = @transform_3, window_bounds = array<i64: 6, 1>}, {transform_indices = @transform_4, window_bounds = array<i64: 6, 128>}]} {
    %c0 = arith.constant 0 : index
    %c0_0 = arith.constant 0 : index
    %0 = vector.load %arg1[%c0, %c0_0] : memref<6x32xbf16, #tpu.memory_space<vmem>>, vector<6x32xbf16>
    %c0_1 = arith.constant 0 : index
    %c0_2 = arith.constant 0 : index
    %1 = vector.load %arg2[%c0_1, %c0_2] : memref<32x128xbf16, #tpu.memory_space<vmem>>, vector<32x128xbf16>
    %cst = arith.constant dense<0.000000e+00> : vector<6x128xf32>
    %2 = tpu.matmul %0, %1, %cst {dimension_numbers = #tpu.dot_dimension_numbers<[1], [0], [0], [1], [0, 0, 1, 1], [], []>} : vector<6x32xbf16>, vector<32x128xbf16>, vector<6x128xf32> -> vector<6x128xf32>
    %cst_3 = arith.constant dense<0.000000e+00> : vector<6xf32>
    %3 = vector.multi_reduction <add>, %2, %cst_3 [1] : vector<6x128xf32> to vector<6xf32>
    %4 = vector.shape_cast %3 : vector<6xf32> to vector<6x1xf32>
    %cst_4 = arith.constant 1.280000e+02 : f32
    %5 = vector.broadcast %cst_4 : f32 to vector<6x1xf32>
    %6 = arith.divf %4, %5 : vector<6x1xf32>
    %7 = arith.mulf %2, %2 : vector<6x128xf32>
    %cst_5 = arith.constant dense<0.000000e+00> : vector<6xf32>
    %8 = vector.multi_reduction <add>, %7, %cst_5 [1] : vector<6x128xf32> to vector<6xf32>
    %9 = vector.shape_cast %8 : vector<6xf32> to vector<6x1xf32>
    %cst_6 = arith.constant 1.280000e+02 : f32
    %10 = vector.broadcast %cst_6 : f32 to vector<6x1xf32>
    %11 = arith.divf %9, %10 : vector<6x1xf32>
    %12 = arith.mulf %6, %6 : vector<6x1xf32>
    %13 = arith.subf %11, %12 : vector<6x1xf32>
    %cst_7 = arith.constant 0.000000e+00 : f32
    %14 = vector.broadcast %cst_7 : f32 to vector<6x1xf32>
    %15 = arith.maximumf %13, %14 : vector<6x1xf32>
    %16 = vector.broadcast %6 : vector<6x1xf32> to vector<6x128xf32>
    %17 = arith.subf %2, %16 : vector<6x128xf32>
    %cst_8 = arith.constant 9.99999974E-6 : f32
    %18 = vector.broadcast %cst_8 : f32 to vector<6x1xf32>
    %19 = arith.addf %15, %18 : vector<6x1xf32>
    %20 = math.rsqrt %19 : vector<6x1xf32>
    %21 = vector.broadcast %20 : vector<6x1xf32> to vector<6x128xf32>
    %22 = arith.mulf %17, %21 : vector<6x128xf32>
    %c0_9 = arith.constant 0 : index
    %c0_10 = arith.constant 0 : index
    %23 = vector.load %arg3[%c0_9, %c0_10] : memref<6x1xf32, #tpu.memory_space<vmem>>, vector<6x1xf32>
    %24 = vector.broadcast %23 : vector<6x1xf32> to vector<6x128xf32>
    %25 = arith.mulf %22, %24 : vector<6x128xf32>
    %c0_11 = arith.constant 0 : index
    %c0_12 = arith.constant 0 : index
    %26 = vector.load %arg4[%c0_11, %c0_12] : memref<6x1xf32, #tpu.memory_space<vmem>>, vector<6x1xf32>
    %27 = vector.broadcast %26 : vector<6x1xf32> to vector<6x128xf32>
    %28 = arith.addf %25, %27 : vector<6x128xf32>
    %cst_13 = arith.constant 0.000000e+00 : f32
    %29 = vector.broadcast %cst_13 : f32 to vector<6x128xf32>
    %30 = arith.maximumf %28, %29 : vector<6x128xf32>
    %31 = arith.truncf %30 : vector<6x128xf32> to vector<6x128xbf16>
    %c0_14 = arith.constant 0 : index
    %c0_15 = arith.constant 0 : index
    %32 = vector.load %arg5[%c0_14, %c0_15] : memref<6x128xbf16, #tpu.memory_space<vmem>>, vector<6x128xbf16>
    tpu.vector_store %arg5[%c0_14, %c0_15], %31 {strides = array<i32>} : memref<6x128xbf16, #tpu.memory_space<vmem>>, vector<6x128xbf16>,
    return
  }
  func.func @transform_0(%arg0: i32) -> (i32, i32) {
    %c0_i32 = arith.constant 0 : i32
    %c0_i32_0 = arith.constant 0 : i32
    return %arg0, %c0_i32 : i32, i32
  }
  func.func @transform_1(%arg0: i32) -> (i32, i32) {
    %c0_i32 = arith.constant 0 : i32
    %c0_i32_0 = arith.constant 0 : i32
    %c0_i32_1 = arith.constant 0 : i32
    return %c0_i32, %c0_i32_0 : i32, i32
  }
  func.func @transform_2(%arg0: i32) -> (i32, i32) {
    %c0_i32 = arith.constant 0 : i32
    %c0_i32_0 = arith.constant 0 : i32
    return %arg0, %c0_i32 : i32, i32
  }
  func.func @transform_3(%arg0: i32) -> (i32, i32) {
    %c0_i32 = arith.constant 0 : i32
    %c0_i32_0 = arith.constant 0 : i32
    return %arg0, %c0_i32 : i32, i32
  }
  func.func @transform_4(%arg0: i32) -> (i32, i32) {
    %c0_i32 = arith.constant 0 : i32
    %c0_i32_0 = arith.constant 0 : i32
    return %arg0, %c0_i32 : i32, i32
  }
}

module attributes {stable_mosaic.version = 11 : i64} {
  func.func @_conv_bn_relu_kernel(%arg0: i32, %arg1: memref<12x64xbf16, #tpu.memory_space<vmem>>, %arg2: memref<64x32xbf16, #tpu.memory_space<vmem>>, %arg3: memref<12x1xf32, #tpu.memory_space<vmem>>, %arg4: memref<12x1xf32, #tpu.memory_space<vmem>>, %arg5: memref<12x32xbf16, #tpu.memory_space<vmem>>) attributes {dimension_semantics = [#tpu.dimension_semantics<parallel>], iteration_bounds = array<i64: 1>, scalar_prefetch = 0 : i64, scratch_operands = 0 : i64, tpu.core_type = #tpu.core_type<tc>, window_params = [{transform_indices = @transform_0, window_bounds = array<i64: 12, 64>}, {pipeline_mode = #tpu.pipeline_mode<synchronous>, transform_indices = @transform_1, window_bounds = array<i64: 64, 32>}, {transform_indices = @transform_2, window_bounds = array<i64: 12, 1>}, {transform_indices = @transform_3, window_bounds = array<i64: 12, 1>}, {transform_indices = @transform_4, window_bounds = array<i64: 12, 32>}]} {
    %c0 = arith.constant 0 : index
    %c0_0 = arith.constant 0 : index
    %0 = vector.load %arg1[%c0, %c0_0] : memref<12x64xbf16, #tpu.memory_space<vmem>>, vector<12x64xbf16>
    %c0_1 = arith.constant 0 : index
    %c0_2 = arith.constant 0 : index
    %1 = vector.load %arg2[%c0_1, %c0_2] : memref<64x32xbf16, #tpu.memory_space<vmem>>, vector<64x32xbf16>
    %cst = arith.constant dense<0.000000e+00> : vector<12x32xf32>
    %2 = tpu.matmul %0, %1, %cst {dimension_numbers = #tpu.dot_dimension_numbers<[1], [0], [0], [1], [0, 0, 1, 1], [], []>} : vector<12x64xbf16>, vector<64x32xbf16>, vector<12x32xf32> -> vector<12x32xf32>
    %cst_3 = arith.constant dense<0.000000e+00> : vector<12xf32>
    %3 = vector.multi_reduction <add>, %2, %cst_3 [1] : vector<12x32xf32> to vector<12xf32>
    %4 = vector.shape_cast %3 : vector<12xf32> to vector<12x1xf32>
    %cst_4 = arith.constant 3.200000e+01 : f32
    %5 = vector.broadcast %cst_4 : f32 to vector<12x1xf32>
    %6 = arith.divf %4, %5 : vector<12x1xf32>
    %7 = arith.mulf %2, %2 : vector<12x32xf32>
    %cst_5 = arith.constant dense<0.000000e+00> : vector<12xf32>
    %8 = vector.multi_reduction <add>, %7, %cst_5 [1] : vector<12x32xf32> to vector<12xf32>
    %9 = vector.shape_cast %8 : vector<12xf32> to vector<12x1xf32>
    %cst_6 = arith.constant 3.200000e+01 : f32
    %10 = vector.broadcast %cst_6 : f32 to vector<12x1xf32>
    %11 = arith.divf %9, %10 : vector<12x1xf32>
    %12 = arith.mulf %6, %6 : vector<12x1xf32>
    %13 = arith.subf %11, %12 : vector<12x1xf32>
    %cst_7 = arith.constant 0.000000e+00 : f32
    %14 = vector.broadcast %cst_7 : f32 to vector<12x1xf32>
    %15 = arith.maximumf %13, %14 : vector<12x1xf32>
    %16 = vector.broadcast %6 : vector<12x1xf32> to vector<12x32xf32>
    %17 = arith.subf %2, %16 : vector<12x32xf32>
    %cst_8 = arith.constant 9.99999974E-6 : f32
    %18 = vector.broadcast %cst_8 : f32 to vector<12x1xf32>
    %19 = arith.addf %15, %18 : vector<12x1xf32>
    %20 = math.rsqrt %19 : vector<12x1xf32>
    %21 = vector.broadcast %20 : vector<12x1xf32> to vector<12x32xf32>
    %22 = arith.mulf %17, %21 : vector<12x32xf32>
    %c0_9 = arith.constant 0 : index
    %c0_10 = arith.constant 0 : index
    %23 = vector.load %arg3[%c0_9, %c0_10] : memref<12x1xf32, #tpu.memory_space<vmem>>, vector<12x1xf32>
    %24 = vector.broadcast %23 : vector<12x1xf32> to vector<12x32xf32>
    %25 = arith.mulf %22, %24 : vector<12x32xf32>
    %c0_11 = arith.constant 0 : index
    %c0_12 = arith.constant 0 : index
    %26 = vector.load %arg4[%c0_11, %c0_12] : memref<12x1xf32, #tpu.memory_space<vmem>>, vector<12x1xf32>
    %27 = vector.broadcast %26 : vector<12x1xf32> to vector<12x32xf32>
    %28 = arith.addf %25, %27 : vector<12x32xf32>
    %cst_13 = arith.constant 0.000000e+00 : f32
    %29 = vector.broadcast %cst_13 : f32 to vector<12x32xf32>
    %30 = arith.maximumf %28, %29 : vector<12x32xf32>
    %31 = arith.truncf %30 : vector<12x32xf32> to vector<12x32xbf16>
    %c0_14 = arith.constant 0 : index
    %c0_15 = arith.constant 0 : index
    %32 = vector.load %arg5[%c0_14, %c0_15] : memref<12x32xbf16, #tpu.memory_space<vmem>>, vector<12x32xbf16>
    tpu.vector_store %arg5[%c0_14, %c0_15], %31 {strides = array<i32>} : memref<12x32xbf16, #tpu.memory_space<vmem>>, vector<12x32xbf16>,
    return
  }
  func.func @transform_0(%arg0: i32) -> (i32, i32) {
    %c0_i32 = arith.constant 0 : i32
    %c0_i32_0 = arith.constant 0 : i32
    return %arg0, %c0_i32 : i32, i32
  }
  func.func @transform_1(%arg0: i32) -> (i32, i32) {
    %c0_i32 = arith.constant 0 : i32
    %c0_i32_0 = arith.constant 0 : i32
    %c0_i32_1 = arith.constant 0 : i32
    return %c0_i32, %c0_i32_0 : i32, i32
  }
  func.func @transform_2(%arg0: i32) -> (i32, i32) {
    %c0_i32 = arith.constant 0 : i32
    %c0_i32_0 = arith.constant 0 : i32
    return %arg0, %c0_i32 : i32, i32
  }
  func.func @transform_3(%arg0: i32) -> (i32, i32) {
    %c0_i32 = arith.constant 0 : i32
    %c0_i32_0 = arith.constant 0 : i32
    return %arg0, %c0_i32 : i32, i32
  }
  func.func @transform_4(%arg0: i32) -> (i32, i32) {
    %c0_i32 = arith.constant 0 : i32
    %c0_i32_0 = arith.constant 0 : i32
    return %arg0, %c0_i32 : i32, i32
  }
}

module attributes {stable_mosaic.version = 11 : i64} {
  func.func @_conv_bn_relu_kernel(%arg0: i32, %arg1: memref<8x128xbf16, #tpu.memory_space<vmem>>, %arg2: memref<128x8xbf16, #tpu.memory_space<vmem>>, %arg3: memref<8x1xf32, #tpu.memory_space<vmem>>, %arg4: memref<8x1xf32, #tpu.memory_space<vmem>>, %arg5: memref<8x8xf32, #tpu.memory_space<vmem>>) attributes {dimension_semantics = [#tpu.dimension_semantics<parallel>], iteration_bounds = array<i64: 3>, scalar_prefetch = 0 : i64, scratch_operands = 0 : i64, tpu.core_type = #tpu.core_type<tc>, window_params = [{transform_indices = @transform_0, window_bounds = array<i64: 8, 128>}, {pipeline_mode = #tpu.pipeline_mode<synchronous>, transform_indices = @transform_1, window_bounds = array<i64: 128, 8>}, {transform_indices = @transform_2, window_bounds = array<i64: 8, 1>}, {transform_indices = @transform_3, window_bounds = array<i64: 8, 1>}, {transform_indices = @transform_4, window_bounds = array<i64: 8, 8>}]} {
    %c0 = arith.constant 0 : index
    %c0_0 = arith.constant 0 : index
    %0 = vector.load %arg1[%c0, %c0_0] : memref<8x128xbf16, #tpu.memory_space<vmem>>, vector<8x128xbf16>
    %c0_1 = arith.constant 0 : index
    %c0_2 = arith.constant 0 : index
    %1 = vector.load %arg2[%c0_1, %c0_2] : memref<128x8xbf16, #tpu.memory_space<vmem>>, vector<128x8xbf16>
    %cst = arith.constant dense<0.000000e+00> : vector<8x8xf32>
    %2 = tpu.matmul %0, %1, %cst {dimension_numbers = #tpu.dot_dimension_numbers<[1], [0], [0], [1], [0, 0, 1, 1], [], []>} : vector<8x128xbf16>, vector<128x8xbf16>, vector<8x8xf32> -> vector<8x8xf32>
    %cst_3 = arith.constant dense<0.000000e+00> : vector<8xf32>
    %3 = vector.multi_reduction <add>, %2, %cst_3 [1] : vector<8x8xf32> to vector<8xf32>
    %4 = vector.shape_cast %3 : vector<8xf32> to vector<8x1xf32>
    %cst_4 = arith.constant 8.000000e+00 : f32
    %5 = vector.broadcast %cst_4 : f32 to vector<8x1xf32>
    %6 = arith.divf %4, %5 : vector<8x1xf32>
    %7 = arith.mulf %2, %2 : vector<8x8xf32>
    %cst_5 = arith.constant dense<0.000000e+00> : vector<8xf32>
    %8 = vector.multi_reduction <add>, %7, %cst_5 [1] : vector<8x8xf32> to vector<8xf32>
    %9 = vector.shape_cast %8 : vector<8xf32> to vector<8x1xf32>
    %cst_6 = arith.constant 8.000000e+00 : f32
    %10 = vector.broadcast %cst_6 : f32 to vector<8x1xf32>
    %11 = arith.divf %9, %10 : vector<8x1xf32>
    %12 = arith.mulf %6, %6 : vector<8x1xf32>
    %13 = arith.subf %11, %12 : vector<8x1xf32>
    %cst_7 = arith.constant 0.000000e+00 : f32
    %14 = vector.broadcast %cst_7 : f32 to vector<8x1xf32>
    %15 = arith.maximumf %13, %14 : vector<8x1xf32>
    %16 = vector.broadcast %6 : vector<8x1xf32> to vector<8x8xf32>
    %17 = arith.subf %2, %16 : vector<8x8xf32>
    %cst_8 = arith.constant 9.99999974E-6 : f32
    %18 = vector.broadcast %cst_8 : f32 to vector<8x1xf32>
    %19 = arith.addf %15, %18 : vector<8x1xf32>
    %20 = math.rsqrt %19 : vector<8x1xf32>
    %21 = vector.broadcast %20 : vector<8x1xf32> to vector<8x8xf32>
    %22 = arith.mulf %17, %21 : vector<8x8xf32>
    %c0_9 = arith.constant 0 : index
    %c0_10 = arith.constant 0 : index
    %23 = vector.load %arg3[%c0_9, %c0_10] : memref<8x1xf32, #tpu.memory_space<vmem>>, vector<8x1xf32>
    %24 = vector.broadcast %23 : vector<8x1xf32> to vector<8x8xf32>
    %25 = arith.mulf %22, %24 : vector<8x8xf32>
    %c0_11 = arith.constant 0 : index
    %c0_12 = arith.constant 0 : index
    %26 = vector.load %arg4[%c0_11, %c0_12] : memref<8x1xf32, #tpu.memory_space<vmem>>, vector<8x1xf32>
    %27 = vector.broadcast %26 : vector<8x1xf32> to vector<8x8xf32>
    %28 = arith.addf %25, %27 : vector<8x8xf32>
    %cst_13 = arith.constant 0.000000e+00 : f32
    %29 = vector.broadcast %cst_13 : f32 to vector<8x8xf32>
    %30 = arith.maximumf %28, %29 : vector<8x8xf32>
    %c0_14 = arith.constant 0 : index
    %c0_15 = arith.constant 0 : index
    %31 = vector.load %arg5[%c0_14, %c0_15] : memref<8x8xf32, #tpu.memory_space<vmem>>, vector<8x8xf32>
    tpu.vector_store %arg5[%c0_14, %c0_15], %30 {strides = array<i32>} : memref<8x8xf32, #tpu.memory_space<vmem>>, vector<8x8xf32>,
    return
  }
  func.func @transform_0(%arg0: i32) -> (i32, i32) {
    %c0_i32 = arith.constant 0 : i32
    %c0_i32_0 = arith.constant 0 : i32
    return %arg0, %c0_i32 : i32, i32
  }
  func.func @transform_1(%arg0: i32) -> (i32, i32) {
    %c0_i32 = arith.constant 0 : i32
    %c0_i32_0 = arith.constant 0 : i32
    %c0_i32_1 = arith.constant 0 : i32
    return %c0_i32, %c0_i32_0 : i32, i32
  }
  func.func @transform_2(%arg0: i32) -> (i32, i32) {
    %c0_i32 = arith.constant 0 : i32
    %c0_i32_0 = arith.constant 0 : i32
    return %arg0, %c0_i32 : i32, i32
  }
  func.func @transform_3(%arg0: i32) -> (i32, i32) {
    %c0_i32 = arith.constant 0 : i32
    %c0_i32_0 = arith.constant 0 : i32
    return %arg0, %c0_i32 : i32, i32
  }
  func.func @transform_4(%arg0: i32) -> (i32, i32) {
    %c0_i32 = arith.constant 0 : i32
    %c0_i32_0 = arith.constant 0 : i32
    return %arg0, %c0_i32 : i32, i32
  }
}

module attributes {stable_mosaic.version = 11 : i64} {
  func.func @_mlp_softmax_kernel(%arg0: memref<2x96xf32, #tpu.memory_space<vmem>>, %arg1: memref<96x1000xbf16, #tpu.memory_space<vmem>>, %arg2: memref<1x1000xf32, #tpu.memory_space<vmem>>, %arg3: memref<1000x4xbf16, #tpu.memory_space<vmem>>, %arg4: memref<1x4xf32, #tpu.memory_space<vmem>>, %arg5: memref<2x4xf32, #tpu.memory_space<vmem>>) attributes {dimension_semantics = [], scalar_prefetch = 0 : i64, scratch_operands = 0 : i64, tpu.core_type = #tpu.core_type<tc>} {
    %c0 = arith.constant 0 : index
    %c0_0 = arith.constant 0 : index
    %0 = vector.load %arg0[%c0, %c0_0] : memref<2x96xf32, #tpu.memory_space<vmem>>, vector<2x96xf32>
    %1 = arith.truncf %0 : vector<2x96xf32> to vector<2x96xbf16>
    %c0_1 = arith.constant 0 : index
    %c0_2 = arith.constant 0 : index
    %2 = vector.load %arg1[%c0_1, %c0_2] : memref<96x1000xbf16, #tpu.memory_space<vmem>>, vector<96x1000xbf16>
    %cst = arith.constant dense<0.000000e+00> : vector<2x1000xf32>
    %3 = tpu.matmul %1, %2, %cst {dimension_numbers = #tpu.dot_dimension_numbers<[1], [0], [0], [1], [0, 0, 1, 1], [], []>} : vector<2x96xbf16>, vector<96x1000xbf16>, vector<2x1000xf32> -> vector<2x1000xf32>
    %c0_3 = arith.constant 0 : index
    %c0_4 = arith.constant 0 : index
    %4 = vector.load %arg2[%c0_3, %c0_4] : memref<1x1000xf32, #tpu.memory_space<vmem>>, vector<1x1000xf32>
    %5 = vector.broadcast %4 : vector<1x1000xf32> to vector<2x1000xf32>
    %6 = arith.addf %3, %5 : vector<2x1000xf32>
    %cst_5 = arith.constant 0.000000e+00 : f32
    %7 = vector.broadcast %cst_5 : f32 to vector<2x1000xf32>
    %8 = arith.maximumf %6, %7 : vector<2x1000xf32>
    %9 = arith.truncf %8 : vector<2x1000xf32> to vector<2x1000xbf16>
    %c0_6 = arith.constant 0 : index
    %c0_7 = arith.constant 0 : index
    %10 = vector.load %arg3[%c0_6, %c0_7] : memref<1000x4xbf16, #tpu.memory_space<vmem>>, vector<1000x4xbf16>
    %cst_8 = arith.constant dense<0.000000e+00> : vector<2x4xf32>
    %11 = tpu.matmul %9, %10, %cst_8 {dimension_numbers = #tpu.dot_dimension_numbers<[1], [0], [0], [1], [0, 0, 1, 1], [], []>} : vector<2x1000xbf16>, vector<1000x4xbf16>, vector<2x4xf32> -> vector<2x4xf32>
    %c0_9 = arith.constant 0 : index
    %c0_10 = arith.constant 0 : index
    %12 = vector.load %arg4[%c0_9, %c0_10] : memref<1x4xf32, #tpu.memory_space<vmem>>, vector<1x4xf32>
    %13 = vector.broadcast %12 : vector<1x4xf32> to vector<2x4xf32>
    %14 = arith.addf %11, %13 : vector<2x4xf32>
    %cst_11 = arith.constant dense<0xFF800000> : vector<2xf32>
    %15 = vector.multi_reduction <maximumf>, %14, %cst_11 [1] : vector<2x4xf32> to vector<2xf32>
    %16 = vector.shape_cast %15 : vector<2xf32> to vector<2x1xf32>
    %17 = vector.broadcast %16 : vector<2x1xf32> to vector<2x4xf32>
    %18 = arith.subf %14, %17 : vector<2x4xf32>
    %19 = math.exp %18 : vector<2x4xf32>
    %cst_12 = arith.constant dense<0.000000e+00> : vector<2xf32>
    %20 = vector.multi_reduction <add>, %19, %cst_12 [1] : vector<2x4xf32> to vector<2xf32>
    %21 = vector.shape_cast %20 : vector<2xf32> to vector<2x1xf32>
    %22 = vector.broadcast %21 : vector<2x1xf32> to vector<2x4xf32>
    %23 = arith.divf %19, %22 : vector<2x4xf32>
    %c0_13 = arith.constant 0 : index
    %c0_14 = arith.constant 0 : index
    %24 = vector.load %arg5[%c0_13, %c0_14] : memref<2x4xf32, #tpu.memory_space<vmem>>, vector<2x4xf32>
    tpu.vector_store %arg5[%c0_13, %c0_14], %23 {strides = array<i32>} : memref<2x4xf32, #tpu.memory_space<vmem>>, vector<2x4xf32>,
    return
  }
}

</mosaic_0001>

<llo_original>
// kernel: basic_cnn_forward.5
$region0: #{basic_cnn_forward.5}
  #allocation0 [shape = 'u32[]', space=smem, size = 0x4, offset = 0x4, fixed_abs, tag = 'smem constant byte address 0x4 - core index']
  #allocation1 [shape = 'u32[144,128]{1,0:T(1,128)}', space=vmem, size = 0x12000, scoped, tag = 'internal scratch']
  #allocation2 [shape = 'f32[1,1]{1,0:T(1,128)S(6)}', space=smem, size = 0x200, scoped, tag = 'scoped memory for basic_cnn_forward.5']
  %s0 = inlined_call_operand.vmem [shape: f32[2,3,256], index: 0, kind: input, shape index: {}]
  %s1 = inlined_call_operand.vmem [shape: bf16[9,3], index: 1, kind: input, shape index: {}]
  %s2 = inlined_call_operand.vmem [shape: f32[9,1], index: 2, kind: input, shape index: {}]
  %s3 = inlined_call_operand.<no memory space> [shape: f32[1,1], index: 3, kind: input, shape index: {}]
  %s4 = inlined_call_operand.vmem [shape: bf16[3,512], index: 4, kind: output, shape index: {0}]
  %s5 = inlined_call_operand.hbm [shape: f32[2,256,256], index: 5, kind: output, shape index: {1}]
  %6 = xla_tuple %s4, %s5
  %s7 = sld [smem:[#allocation0]]
  $region57: #{basic_cnn_forward.5} parent=0
    _
  %s9 = ssub.s32 1, %s7
  %s10 = scalar_select 0, %s9, %s7
  %11 = sst [smem:[#allocation2]] %s3
  $region1: #{basic_cnn_forward.5} parent=0
    #allocation3 [shape = 'u8[524288]{0}', space=vmem, size = 0x80000, scoped, tag = 'output window, operand 1']
    #allocation4 [shape = 's32[2]{0}', space=sflag, size = 0x8, scoped, tag = 'scoped memory for basic_cnn_forward.5']
    %12 = vsyncpa [#allocation4], 0
    %s13 = scalar_lea.sflag [#allocation4], 1
    %14 = vsyncpa %s13, 0
    loop: start=0, step=1, limit=4
    $region2: #{basic_cnn_forward.5} parent=1 // loop_pre_header
      _
    $region3: #{basic_cnn_forward.5} parent=1 // loop_header
      %s16 = sphi 0, %s20
      %p17 = scmp.ge.s32.totalorder %s16, 4
      %s26 = sphi 0, %s28
      %s29 = sphi 0, %s26
      %s30 = sphi 0, %s29
      %s46 = sphi 0, %s30
      %s50 = sphi 0, %s50
      %s52 = sphi 0, %s50
      %s53 = sphi 0, %s52
      %s67 = sphi 0, %s53
      %s71 = sphi 0, %s71
      %s73 = sphi 0, %s71
      %s74 = sphi 0, %s73
      %s88 = sphi 0, %s74
      %s92 = sphi 0, %s92
      %s94 = sphi 0, %s92
      %s95 = sphi 0, %s94
      %s109 = sphi 0, %s95
      %s115 = sphi 0, %s117
      %s118 = sphi 0, %s115
      %s119 = sphi 0, %s118
      %s135 = sphi 0, %s119
      %s141 = sphi 0, %s143
      %s144 = sphi 0, %s141
      %s145 = sphi 0, %s144
      %s161 = sphi 0, %s145
    $region4: #{basic_cnn_forward.5} parent=1 // loop_header_branch
      %19 = sbr.rel (%p17) target = $region8
    $region5: #{basic_cnn_forward.5} parent=1 // loop_body
      %s21 = ssub.s32 %s16, 1
      %s22 = ssub.s32 %s16, 2
      %s23 = sadd.s32 %s16, 1
      %s24 = ssub.s32 %s16, %s23
      %p25 = scmp.eq.s32.totalorder %s24, 0
      %s27 = sadd.s32 %s26, 1
      %s28 = scalar_select %p25, %s26, %s27
      %p31 = pneg %p25
      %p32 = scmp.eq.s32.totalorder %s16, 1
      %p33 = por %p31, %p32
      %p34 = scmp.ne.s32.totalorder %s26, %s29
      %p35 = scmp.eq.s32.totalorder %s16, 0
      %p36 = por %p34, %p35
      %p37 = scmp.ne.s32.totalorder %s26, %s29
      %p38 = scmp.eq.s32.totalorder %s21, 1
      %p39 = por %p37, %p38
      %p40 = scmp.ne.s32.totalorder %s29, %s30
      %p41 = scmp.eq.s32.totalorder %s21, 0
      %p42 = por %p40, %p41
      %p43 = scmp.ne.s32.totalorder %s29, %s30
      %p44 = scmp.eq.s32.totalorder %s22, 1
      %p45 = por %p43, %p44
      %p47 = scmp.ne.s32.totalorder %s30, %s46
      %p48 = scmp.eq.s32.totalorder %s22, 0
      %p49 = por %p47, %p48
      %s51 = sadd.s32 %s50, 1
      %p54 = scmp.eq.s32.totalorder %s16, 1
      %p55 = scmp.ne.s32.totalorder %s50, %s52
      %p56 = scmp.eq.s32.totalorder %s16, 0
      %p57 = por %p55, %p56
      %p58 = scmp.ne.s32.totalorder %s50, %s52
      %p59 = scmp.eq.s32.totalorder %s21, 1
      %p60 = por %p58, %p59
      %p61 = scmp.ne.s32.totalorder %s52, %s53
      %p62 = scmp.eq.s32.totalorder %s21, 0
      %p63 = por %p61, %p62
      %p64 = scmp.ne.s32.totalorder %s52, %s53
      %p65 = scmp.eq.s32.totalorder %s22, 1
      %p66 = por %p64, %p65
      %p68 = scmp.ne.s32.totalorder %s53, %s67
      %p69 = scmp.eq.s32.totalorder %s22, 0
      %p70 = por %p68, %p69
      %s72 = sadd.s32 %s71, 1
      %p75 = scmp.eq.s32.totalorder %s16, 1
      %p76 = scmp.ne.s32.totalorder %s71, %s73
      %p77 = scmp.eq.s32.totalorder %s16, 0
      %p78 = por %p76, %p77
      %p79 = scmp.ne.s32.totalorder %s71, %s73
      %p80 = scmp.eq.s32.totalorder %s21, 1
      %p81 = por %p79, %p80
      %p82 = scmp.ne.s32.totalorder %s73, %s74
      %p83 = scmp.eq.s32.totalorder %s21, 0
      %p84 = por %p82, %p83
      %p85 = scmp.ne.s32.totalorder %s73, %s74
      %p86 = scmp.eq.s32.totalorder %s22, 1
      %p87 = por %p85, %p86
      %p89 = scmp.ne.s32.totalorder %s74, %s88
      %p90 = scmp.eq.s32.totalorder %s22, 0
      %p91 = por %p89, %p90
      %s93 = sadd.s32 %s92, 1
      %p96 = scmp.eq.s32.totalorder %s16, 1
      %p97 = scmp.ne.s32.totalorder %s92, %s94
      %p98 = scmp.eq.s32.totalorder %s16, 0
      %p99 = por %p97, %p98
      %p100 = scmp.ne.s32.totalorder %s92, %s94
      %p101 = scmp.eq.s32.totalorder %s21, 1
      %p102 = por %p100, %p101
      %p103 = scmp.ne.s32.totalorder %s94, %s95
      %p104 = scmp.eq.s32.totalorder %s21, 0
      %p105 = por %p103, %p104
      %p106 = scmp.ne.s32.totalorder %s94, %s95
      %p107 = scmp.eq.s32.totalorder %s22, 1
      %p108 = por %p106, %p107
      %p110 = scmp.ne.s32.totalorder %s95, %s109
      %p111 = scmp.eq.s32.totalorder %s22, 0
      %p112 = por %p110, %p111
      %s113 = ssub.s32 %s16, %s23
      %p114 = scmp.eq.s32.totalorder %s113, 0
      %s116 = sadd.s32 %s115, 1
      %s117 = scalar_select %p114, %s115, %s116
      %p120 = pneg %p114
      %p121 = scmp.eq.s32.totalorder %s16, 1
      %p122 = por %p120, %p121
      %p123 = scmp.ne.s32.totalorder %s115, %s118
      %p124 = scmp.eq.s32.totalorder %s16, 0
      %p125 = por %p123, %p124
      %p126 = scmp.ne.s32.totalorder %s115, %s118
      %p127 = scmp.eq.s32.totalorder %s21, 1
      %p128 = por %p126, %p127
      %p129 = scmp.ne.s32.totalorder %s118, %s119
      %p130 = scmp.eq.s32.totalorder %s21, 0
      %p131 = por %p129, %p130
      %p132 = scmp.ne.s32.totalorder %s118, %s119
      %p133 = scmp.eq.s32.totalorder %s22, 1
      %p134 = por %p132, %p133
      %p136 = scmp.ne.s32.totalorder %s119, %s135
      %p137 = scmp.eq.s32.totalorder %s22, 0
      %p138 = por %p136, %p137
      %s139 = ssub.s32 %s16, %s23
      %p140 = scmp.eq.s32.totalorder %s139, 0
      %s142 = sadd.s32 %s141, 1
      %s143 = scalar_select %p140, %s141, %s142
      %p146 = pneg %p140
      %p147 = scmp.eq.s32.totalorder %s16, 1
      %p148 = por %p146, %p147
      %p149 = scmp.ne.s32.totalorder %s141, %s144
      %p150 = scmp.eq.s32.totalorder %s16, 0
      %p151 = por %p149, %p150
      %p152 = scmp.ne.s32.totalorder %s141, %s144
      %p153 = scmp.eq.s32.totalorder %s21, 1
      %p154 = por %p152, %p153
      %p155 = scmp.ne.s32.totalorder %s144, %s145
      %p156 = scmp.eq.s32.totalorder %s21, 0
      %p157 = por %p155, %p156
      %p158 = scmp.ne.s32.totalorder %s144, %s145
      %p159 = scmp.eq.s32.totalorder %s22, 1
      %p160 = por %p158, %p159
      %p162 = scmp.ne.s32.totalorder %s145, %s161
      %p163 = scmp.eq.s32.totalorder %s22, 0
      %p164 = por %p162, %p163
      %p165 = scmp.le.s32.totalorder 1, %s16
      %p166 = scmp.lt.s32.totalorder %s16, 3
      %p167 = pnand %p165, %p166
      %p168 = pneg %p167
      // Predicated region
      $region9: #{basic_cnn_forward.5} parent=5 // pred_check
        _
      $region10: #{basic_cnn_forward.5} parent=5 // pred_check_branch
        %170 = sbr.rel (%p167) target = $region12
      $region11: #{basic_cnn_forward.5} parent=5 // pred_region
        %s171 = ssub.s32 %s16, 1
        // Predicated region
        $region13: #{basic_cnn_forward.5} parent=11 // pred_check
          %p172 = pneg %p63
        $region14: #{basic_cnn_forward.5} parent=11 // pred_check_branch
          %174 = sbr.rel (%p172) target = $region16
        $region15: #{basic_cnn_forward.5} parent=11 // pred_region
          _
        $region16: #{basic_cnn_forward.5} parent=11 // pred_fallthru
          _
        // Predicated region
        $region17: #{basic_cnn_forward.5} parent=11 // pred_check
          %p175 = pneg %p84
        $region18: #{basic_cnn_forward.5} parent=11 // pred_check_branch
          %177 = sbr.rel (%p175) target = $region20
        $region19: #{basic_cnn_forward.5} parent=11 // pred_region
          _
        $region20: #{basic_cnn_forward.5} parent=11 // pred_fallthru
          _
        // Predicated region
        $region21: #{basic_cnn_forward.5} parent=11 // pred_check
          %p178 = pneg %p105
        $region22: #{basic_cnn_forward.5} parent=11 // pred_check_branch
          %180 = sbr.rel (%p178) target = $region24
        $region23: #{basic_cnn_forward.5} parent=11 // pred_region
          _
        $region24: #{basic_cnn_forward.5} parent=11 // pred_fallthru
          _
      $region12: #{basic_cnn_forward.5} parent=5 // pred_fallthru
        _
      %p181 = scmp.lt.s32.totalorder %s16, 2
      // Predicated region
      $region25: #{basic_cnn_forward.5} parent=5 // pred_check
        %p182 = pneg %p181
      $region26: #{basic_cnn_forward.5} parent=5 // pred_check_branch
        %184 = sbr.rel (%p182) target = $region28
      $region27: #{basic_cnn_forward.5} parent=5 // pred_region
        // Predicated region
        $region29: #{basic_cnn_forward.5} parent=27 // pred_check
          %p185 = pneg %p36
        $region30: #{basic_cnn_forward.5} parent=27 // pred_check_branch
          %187 = sbr.rel (%p185) target = $region32
        $region31: #{basic_cnn_forward.5} parent=27 // pred_region
          %p188 = scmp.lt.s32.totalorder %s16, 1
          %s189 = scalar_select %p188, %s16, 1
          %s190 = smul.addr %s189, 2
          %s191 = smul.addr %s190, 4
          %s192 = scalar_lea.vmem %s0, %s191
        $region32: #{basic_cnn_forward.5} parent=27 // pred_fallthru
          _
      $region28: #{basic_cnn_forward.5} parent=5 // pred_fallthru
        _
      %p193 = scmp.le.s32.totalorder 1, %s16
      %p194 = scmp.lt.s32.totalorder %s16, 3
      %p195 = pnand %p193, %p194
      %p196 = pneg %p195
      // Predicated region
      $region33: #{basic_cnn_forward.5} parent=5 // pred_check
        _
      $region34: #{basic_cnn_forward.5} parent=5 // pred_check_branch
        %198 = sbr.rel (%p195) target = $region36
      $region35: #{basic_cnn_forward.5} parent=5 // pred_region
        %s199 = ssub.s32 %s16, 1
        %p200 = scmp.lt.s32.totalorder %s21, 1
        %s201 = scalar_select %p200, %s21, 1
        %s202 = smul.addr %s201, 2
        %s203 = smul.addr %s202, 4
        %s204 = scalar_lea.vmem %s0, %s203
        %p205 = pneg %p42
        %p206 = pneg %p39
        %p207 = pneg %p63
        %p208 = pneg %p60
        %p209 = pneg %p84
        %p210 = pneg %p81
        %p211 = pneg %p105
        %p212 = pneg %p102
        %p213 = pneg %p131
        %p214 = pneg %p128
        %s215 = smul.u32 2, %s21
        %p216 = scmp.lt.s32.totalorder %s215, 3
        %s217 = scalar_select %p216, %s215, 3
        %s218 = smul.addr %s217, 2
        %s219 = scalar_lea.vmem %s4, %s218
        %p220 = pneg %p157
        %p221 = pneg %p154
        %s222 = sand.u32 %s144, 1
        %s223 = scalar_lea.sflag [#allocation4], %s222
        %s224 = sand.u32 %s144, 1
        %s225 = smul.addr %s224, 512
        %s226 = scalar_lea.vmem [#allocation3], %s225
        %p227 = scmp.lt.s32.totalorder %s21, 1
        %s228 = scalar_select %p227, %s21, 1
        %s229 = smul.addr %s228, 2
        %s230 = smul.addr %s229, 4
        %s231 = scalar_lea.vmem %s0, %s230
        %s232 = smul.u32 2, %s21
        %p233 = scmp.lt.s32.totalorder %s232, 3
        %s234 = scalar_select %p233, %s232, 3
        %s235 = smul.addr %s234, 2
        %s236 = scalar_lea.vmem %s4, %s235
        %s237 = smul.u32 2, %s21
        %v239 = vld [vmem:[%s231] sm:$0x77]
        %v241 = vcombine.high %v239, %v239
        %v243 = vpack.c.bf16 %v239, %v239
        %v244 = vpack.c.bf16 %v241, %v241
        %v245 = vld [vmem:[%s1] sm:$0xf]
        %v246 = vld [vmem:[%s1 + $0x4] sm:$0x1]
        %v247 = vld [vmem:[%s2] sm:$0xff]
        %v248 = vld [vmem:[%s2 + $0x8] sm:$0x1]
        %250 = vset.pattern.permute.xlu0 0
        %251 = vperm.xlu0 %250, %v247
        %v252 = vpop.permute.xlu0 %251
        %255 = vset.pattern.permute.xlu0 0
        %256 = vperm.xlu0 %255, %v248
        %v257 = vpop.permute.xlu0 %256
        %v261 = vunpack.c.l.b16 %v245
        %v262 = vunpack.c.l.b16 %v246
        %v263 = vpack.c.b16 %v262, %v261
        %vm264 = vcmask 23552
        %v266 = vsel %vm264, %v263, 0
        %vm268 = vcmask 1040384
        %vm269 = vcmask 1041408
        %v270 = vsel %vm268, 4294967295, 65535
        %v271 = vsel %vm269, %v270, 0
        %v273 = vand.u32 %v243, %v271
        %v276 = vand.u32 %v244, %v271
        %278 = vmatprep.subr.bf16.mxu0 0
        %279 = vmatpush1.bf16.msra.mxu0 0
        %280 = vmatprep.subr.bf16.mxu0 0
        %281 = vmatpush1.bf16.msra.mxu0 0
        %282 = vmatprep.subr.bf16.mxu0 0
        %283 = vmatpush1.bf16.msra.mxu0 0
        %284 = vmatprep.subr.bf16.mxu0 0
        %285 = vmatpush1.bf16.msra.mxu0 0
        %286 = vmatprep.subr.bf16.mxu0 0
        %287 = vmatpush1.bf16.msra.mxu0 0
        %288 = vmatprep.subr.bf16.mxu0 0
        %289 = vmatpush1.bf16.msra.mxu0 0
        %290 = vmatprep.subr.bf16.mxu0 0
        %291 = vmatpush1.bf16.msra.mxu0 0
        %292 = vmatprep.subr.bf16.mxu0 %v276
        %293 = vmatpush1.bf16.msra.mxu0 %v273
        %294 = vmatprep.subr.bf16.mxu0 0
        %295 = vmatpush2.bf16.msra.mxu0 0
        %296 = vmatprep.subr.bf16.mxu0 0
        %297 = vmatpush2.bf16.msra.mxu0 0
        %298 = vmatprep.subr.bf16.mxu0 0
        %299 = vmatpush2.bf16.msra.mxu0 0
        %300 = vmatprep.subr.bf16.mxu0 0
        %301 = vmatpush2.bf16.msra.mxu0 0
        %302 = vmatprep.subr.bf16.mxu0 0
        %303 = vmatpush2.bf16.msra.mxu0 0
        %304 = vmatprep.subr.bf16.mxu0 0
        %305 = vmatpush2.bf16.msra.mxu0 0
        %306 = vmatprep.subr.bf16.mxu0 0
        %307 = vmatpush2.bf16.msra.mxu0 0
        %308 = vmatprep.subr.bf16.mxu0 0
        %309 = vmatpush2.bf16.msra.mxu0 0
        %310 = vmatprep.mubr.bf16.mxu0 0
        %311 = vmatmul.mubr.bf16.gmra.mxu0 %v266
        %v312 = vpop.f32.mrf.mxu0
        %v313 = vadd.f32 %v252, %v312
        %v314 = vpop.f32.mrf.mxu0
        %v315 = vadd.f32 %v252, %v314
        %v316 = vpop.f32.mrf.mxu0
        %v317 = vadd.f32 %v257, %v316
        %v318 = vpop.f32.mrf.mxu0
        %v319 = vadd.f32 %v257, %v318
        %320 = vdwg.mxu0
        %v321 = vpack.c.bf16 %v313, %v313
        %v322 = vpack.c.bf16 %v315, %v315
        %v323 = vpack.c.bf16 %v317, %v313
        %v324 = vpack.c.bf16 %v319, %v315
        %325 = vxpose.xlu0.c.b16.start [1/8] %v321, 128
        %326 = vxpose.xlu0.c.b16.cont [2/8] 0, 128
        %327 = vxpose.xlu0.c.b16.cont [3/8] 0, 128
        %328 = vxpose.xlu0.c.b16.cont [4/8] 0, 128
        %329 = vxpose.xlu0.c.b16.cont [5/8] 0, 128
        %330 = vxpose.xlu0.c.b16.cont [6/8] 0, 128
        %331 = vxpose.xlu0.c.b16.cont [7/8] 0, 128
        %332 = vxpose.xlu0.c.b16.end [8/8] 0, 128
        %v333 = vpop.trf.xlu0
        %v334 = vpop.trf.xlu0
        %v335 = vpop.trf.xlu0
        %v336 = vpop.trf.xlu0
        %v337 = vpop.trf.xlu0
        %v338 = vpop.trf.xlu0
        %v339 = vpop.trf.xlu0
        %v340 = vpop.trf.xlu0
        %341 = vxpose.xlu0.c.b16.start [1/8] %v322, 128
        %342 = vxpose.xlu0.c.b16.cont [2/8] 0, 128
        %343 = vxpose.xlu0.c.b16.cont [3/8] 0, 128
        %344 = vxpose.xlu0.c.b16.cont [4/8] 0, 128
        %345 = vxpose.xlu0.c.b16.cont [5/8] 0, 128
        %346 = vxpose.xlu0.c.b16.cont [6/8] 0, 128
        %347 = vxpose.xlu0.c.b16.cont [7/8] 0, 128
        %348 = vxpose.xlu0.c.b16.end [8/8] 0, 128
        %v349 = vpop.trf.xlu0
        %v350 = vpop.trf.xlu0
        %v351 = vpop.trf.xlu0
        %v352 = vpop.trf.xlu0
        %v353 = vpop.trf.xlu0
        %v354 = vpop.trf.xlu0
        %v355 = vpop.trf.xlu0
        %v356 = vpop.trf.xlu0
        %v358 = vshrl.u32 %v321, 16
        %v360 = vrot.slane %v358, 1
        %v361 = vshll.u32 %v321, 16
        %v363 = vrot.slane %v361, 2
        %v364 = vor.u32 %v360, %v363
        %v366 = vshrl.u32 %v322, 16
        %v368 = vrot.slane %v366, 1
        %v369 = vshll.u32 %v322, 16
        %v371 = vrot.slane %v369, 2
        %v372 = vor.u32 %v368, %v371
        %v374 = vsel %vm264, %v333, 0
        %v377 = vsel %vm264, %v334, 0
        %v380 = vsel %vm264, %v335, 0
        %v383 = vsel %vm264, %v336, 0
        %v386 = vsel %vm264, %v337, 0
        %v389 = vsel %vm264, %v338, 0
        %v392 = vsel %vm264, %v339, 0
        %v395 = vsel %vm264, %v340, 0
        %v398 = vsel %vm264, %v349, 0
        %v401 = vsel %vm264, %v350, 0
        %v404 = vsel %vm264, %v351, 0
        %v407 = vsel %vm264, %v352, 0
        %v410 = vsel %vm264, %v353, 0
        %v413 = vsel %vm264, %v354, 0
        %v416 = vsel %vm264, %v355, 0
        %v419 = vsel %vm264, %v356, 0
        %v422 = vand.u32 %v364, %v271
        %v425 = vand.u32 %v372, %v271
        %427 = vmatprep.subr.bf16.mxu0 0
        %428 = vmatpush1.bf16.msra.mxu0 0
        %429 = vmatprep.subr.bf16.mxu0 0
        %430 = vmatpush1.bf16.msra.mxu0 0
        %431 = vmatprep.subr.bf16.mxu0 0
        %432 = vmatpush1.bf16.msra.mxu0 0
        %433 = vmatprep.subr.bf16.mxu0 0
        %434 = vmatpush1.bf16.msra.mxu0 0
        %435 = vmatprep.subr.bf16.mxu0 0
        %436 = vmatpush1.bf16.msra.mxu0 0
        %437 = vmatprep.subr.bf16.mxu0 0
        %438 = vmatpush1.bf16.msra.mxu0 0
        %439 = vmatprep.subr.bf16.mxu0 0
        %440 = vmatpush1.bf16.msra.mxu0 0
        %441 = vmatprep.subr.bf16.mxu0 %v425
        %442 = vmatpush1.bf16.msra.mxu0 %v422
        %443 = vmatprep.subr.bf16.mxu0 0
        %444 = vmatpush2.bf16.msra.mxu0 0
        %445 = vmatprep.subr.bf16.mxu0 0
        %446 = vmatpush2.bf16.msra.mxu0 0
        %447 = vmatprep.subr.bf16.mxu0 0
        %448 = vmatpush2.bf16.msra.mxu0 0
        %449 = vmatprep.subr.bf16.mxu0 0
        %450 = vmatpush2.bf16.msra.mxu0 0
        %451 = vmatprep.subr.bf16.mxu0 0
        %452 = vmatpush2.bf16.msra.mxu0 0
        %453 = vmatprep.subr.bf16.mxu0 0
        %454 = vmatpush2.bf16.msra.mxu0 0
        %455 = vmatprep.subr.bf16.mxu0 0
        %456 = vmatpush2.bf16.msra.mxu0 0
        %457 = vmatprep.subr.bf16.mxu0 0
        %458 = vmatpush2.bf16.msra.mxu0 0
        %459 = vmatprep.mubr.bf16.mxu0 0
        %460 = vmatmul.mubr.bf16.gmra.mxu0 %v374
        %v461 = vpop.f32.mrf.mxu0
        %v462 = vadd.f32 0.0, %v461
        %v463 = vpop.f32.mrf.mxu0
        %v464 = vadd.f32 0.0, %v463
        %v465 = vpop.f32.mrf.mxu0
        %v466 = vadd.f32 0.0, %v465
        %v467 = vpop.f32.mrf.mxu0
        %v468 = vadd.f32 0.0, %v467
        %469 = vmatprep.mubr.bf16.mxu0 0
        %470 = vmatmul.mubr.bf16.gmra.mxu0 %v377
        %v471 = vpop.f32.mrf.mxu0
        %v472 = vadd.f32 0.0, %v471
        %v473 = vpop.f32.mrf.mxu0
        %v474 = vadd.f32 0.0, %v473
        %v475 = vpop.f32.mrf.mxu0
        %v476 = vadd.f32 0.0, %v475
        %v477 = vpop.f32.mrf.mxu0
        %v478 = vadd.f32 0.0, %v477
        %479 = vmatprep.mubr.bf16.mxu0 0
        %480 = vmatmul.mubr.bf16.gmra.mxu0 %v380
        %v481 = vpop.f32.mrf.mxu0
        %v482 = vadd.f32 0.0, %v481
        %v483 = vpop.f32.mrf.mxu0
        %v484 = vadd.f32 0.0, %v483
        %v485 = vpop.f32.mrf.mxu0
        %v486 = vadd.f32 0.0, %v485
        %v487 = vpop.f32.mrf.mxu0
        %v488 = vadd.f32 0.0, %v487
        %489 = vmatprep.mubr.bf16.mxu0 0
        %490 = vmatmul.mubr.bf16.gmra.mxu0 %v383
        %v491 = vpop.f32.mrf.mxu0
        %v492 = vadd.f32 0.0, %v491
        %v493 = vpop.f32.mrf.mxu0
        %v494 = vadd.f32 0.0, %v493
        %v495 = vpop.f32.mrf.mxu0
        %v496 = vadd.f32 0.0, %v495
        %v497 = vpop.f32.mrf.mxu0
        %v498 = vadd.f32 0.0, %v497
        %499 = vmatprep.mubr.bf16.mxu0 0
        %500 = vmatmul.mubr.bf16.gmra.mxu0 %v386
        %v501 = vpop.f32.mrf.mxu0
        %v502 = vadd.f32 0.0, %v501
        %v503 = vpop.f32.mrf.mxu0
        %v504 = vadd.f32 0.0, %v503
        %v505 = vpop.f32.mrf.mxu0
        %v506 = vadd.f32 0.0, %v505
        %v507 = vpop.f32.mrf.mxu0
        %v508 = vadd.f32 0.0, %v507
        %509 = vmatprep.mubr.bf16.mxu0 0
        %510 = vmatmul.mubr.bf16.gmra.mxu0 %v389
        %v511 = vpop.f32.mrf.mxu0
        %v512 = vadd.f32 0.0, %v511
        %v513 = vpop.f32.mrf.mxu0
        %v514 = vadd.f32 0.0, %v513
        %v515 = vpop.f32.mrf.mxu0
        %v516 = vadd.f32 0.0, %v515
        %v517 = vpop.f32.mrf.mxu0
        %v518 = vadd.f32 0.0, %v517
        %519 = vmatprep.mubr.bf16.mxu0 0
        %520 = vmatmul.mubr.bf16.gmra.mxu0 %v392
        %v521 = vpop.f32.mrf.mxu0
        %v522 = vadd.f32 0.0, %v521
        %v523 = vpop.f32.mrf.mxu0
        %v524 = vadd.f32 0.0, %v523
        %v525 = vpop.f32.mrf.mxu0
        %v526 = vadd.f32 0.0, %v525
        %v527 = vpop.f32.mrf.mxu0
        %v528 = vadd.f32 0.0, %v527
        %529 = vmatprep.mubr.bf16.mxu0 0
        %530 = vmatmul.mubr.bf16.gmra.mxu0 %v395
        %v531 = vpop.f32.mrf.mxu0
        %v532 = vadd.f32 0.0, %v531
        %v533 = vpop.f32.mrf.mxu0
        %v534 = vadd.f32 0.0, %v533
        %v535 = vpop.f32.mrf.mxu0
        %v536 = vadd.f32 0.0, %v535
        %v537 = vpop.f32.mrf.mxu0
        %v538 = vadd.f32 0.0, %v537
        %539 = vmatprep.mubr.bf16.mxu0 0
        %540 = vmatmul.mubr.bf16.gmra.mxu0 %v398
        %v541 = vpop.f32.mrf.mxu0
        %v542 = vadd.f32 0.0, %v541
        %v543 = vpop.f32.mrf.mxu0
        %v544 = vadd.f32 0.0, %v543
        %v545 = vpop.f32.mrf.mxu0
        %v546 = vadd.f32 0.0, %v545
        %v547 = vpop.f32.mrf.mxu0
        %v548 = vadd.f32 0.0, %v547
        %549 = vmatprep.mubr.bf16.mxu0 0
        %550 = vmatmul.mubr.bf16.gmra.mxu0 %v401
        %v551 = vpop.f32.mrf.mxu0
        %v552 = vadd.f32 0.0, %v551
        %v553 = vpop.f32.mrf.mxu0
        %v554 = vadd.f32 0.0, %v553
        %v555 = vpop.f32.mrf.mxu0
        %v556 = vadd.f32 0.0, %v555
        %v557 = vpop.f32.mrf.mxu0
        %v558 = vadd.f32 0.0, %v557
        %559 = vmatprep.mubr.bf16.mxu0 0
        %560 = vmatmul.mubr.bf16.gmra.mxu0 %v404
        %v561 = vpop.f32.mrf.mxu0
        %v562 = vadd.f32 0.0, %v561
        %v563 = vpop.f32.mrf.mxu0
        %v564 = vadd.f32 0.0, %v563
        %v565 = vpop.f32.mrf.mxu0
        %v566 = vadd.f32 0.0, %v565
        %v567 = vpop.f32.mrf.mxu0
        %v568 = vadd.f32 0.0, %v567
        %569 = vmatprep.mubr.bf16.mxu0 0
        %570 = vmatmul.mubr.bf16.gmra.mxu0 %v407
        %v571 = vpop.f32.mrf.mxu0
        %v572 = vadd.f32 0.0, %v571
        %v573 = vpop.f32.mrf.mxu0
        %v574 = vadd.f32 0.0, %v573
        %v575 = vpop.f32.mrf.mxu0
        %v576 = vadd.f32 0.0, %v575
        %v577 = vpop.f32.mrf.mxu0
        %v578 = vadd.f32 0.0, %v577
        %579 = vmatprep.mubr.bf16.mxu0 0
        %580 = vmatmul.mubr.bf16.gmra.mxu0 %v410
        %v581 = vpop.f32.mrf.mxu0
        %v582 = vadd.f32 0.0, %v581
        %v583 = vpop.f32.mrf.mxu0
        %v584 = vadd.f32 0.0, %v583
        %v585 = vpop.f32.mrf.mxu0
        %v586 = vadd.f32 0.0, %v585
        %v587 = vpop.f32.mrf.mxu0
        %v588 = vadd.f32 0.0, %v587
        %589 = vmatprep.mubr.bf16.mxu0 0
        %590 = vmatmul.mubr.bf16.gmra.mxu0 %v413
        %v591 = vpop.f32.mrf.mxu0
        %v592 = vadd.f32 0.0, %v591
        %v593 = vpop.f32.mrf.mxu0
        %v594 = vadd.f32 0.0, %v593
        %v595 = vpop.f32.mrf.mxu0
        %v596 = vadd.f32 0.0, %v595
        %v597 = vpop.f32.mrf.mxu0
        %v598 = vadd.f32 0.0, %v597
        %599 = vmatprep.mubr.bf16.mxu0 0
        %600 = vmatmul.mubr.bf16.gmra.mxu0 %v416
        %v601 = vpop.f32.mrf.mxu0
        %v602 = vadd.f32 0.0, %v601
        %v603 = vpop.f32.mrf.mxu0
        %v604 = vadd.f32 0.0, %v603
        %v605 = vpop.f32.mrf.mxu0
        %v606 = vadd.f32 0.0, %v605
        %v607 = vpop.f32.mrf.mxu0
        %v608 = vadd.f32 0.0, %v607
        %609 = vmatprep.mubr.bf16.mxu0 0
        %610 = vmatmul.mubr.bf16.gmra.mxu0 %v419
        %v611 = vpop.f32.mrf.mxu0
        %v612 = vadd.f32 0.0, %v611
        %v613 = vpop.f32.mrf.mxu0
        %v614 = vadd.f32 0.0, %v613
        %v615 = vpop.f32.mrf.mxu0
        %v616 = vadd.f32 0.0, %v615
        %v617 = vpop.f32.mrf.mxu0
        %v618 = vadd.f32 0.0, %v617
        %619 = vdwg.mxu0
        %v620 = vmax.f32 %v462, %v464
        %621 = vmax.xlane.f32.xlu0 %v620
        %v622 = vpop.xlane.xlu0 %621
        %v623 = vmax.f32 %v466, %v468
        %624 = vmax.xlane.f32.xlu0 %v623
        %v625 = vpop.xlane.xlu0 %624
        %v626 = vmax.f32 %v472, %v474
        %627 = vmax.xlane.f32.xlu0 %v626
        %v628 = vpop.xlane.xlu0 %627
        %v629 = vmax.f32 %v476, %v478
        %630 = vmax.xlane.f32.xlu0 %v629
        %v631 = vpop.xlane.xlu0 %630
        %v632 = vmax.f32 %v482, %v484
        %633 = vmax.xlane.f32.xlu0 %v632
        %v634 = vpop.xlane.xlu0 %633
        %v635 = vmax.f32 %v486, %v488
        %636 = vmax.xlane.f32.xlu0 %v635
        %v637 = vpop.xlane.xlu0 %636
        %v638 = vmax.f32 %v492, %v494
        %639 = vmax.xlane.f32.xlu0 %v638
        %v640 = vpop.xlane.xlu0 %639
        %v641 = vmax.f32 %v496, %v498
        %642 = vmax.xlane.f32.xlu0 %v641
        %v643 = vpop.xlane.xlu0 %642
        %v644 = vmax.f32 %v502, %v504
        %645 = vmax.xlane.f32.xlu0 %v644
        %v646 = vpop.xlane.xlu0 %645
        %v647 = vmax.f32 %v506, %v508
        %648 = vmax.xlane.f32.xlu0 %v647
        %v649 = vpop.xlane.xlu0 %648
        %v650 = vmax.f32 %v512, %v514
        %651 = vmax.xlane.f32.xlu0 %v650
        %v652 = vpop.xlane.xlu0 %651
        %v653 = vmax.f32 %v516, %v518
        %654 = vmax.xlane.f32.xlu0 %v653
        %v655 = vpop.xlane.xlu0 %654
        %v656 = vmax.f32 %v522, %v524
        %657 = vmax.xlane.f32.xlu0 %v656
        %v658 = vpop.xlane.xlu0 %657
        %v659 = vmax.f32 %v526, %v528
        %660 = vmax.xlane.f32.xlu0 %v659
        %v661 = vpop.xlane.xlu0 %660
        %v662 = vmax.f32 %v532, %v534
        %663 = vmax.xlane.f32.xlu0 %v662
        %v664 = vpop.xlane.xlu0 %663
        %v665 = vmax.f32 %v536, %v538
        %666 = vmax.xlane.f32.xlu0 %v665
        %v667 = vpop.xlane.xlu0 %666
        %v668 = vmax.f32 %v542, %v544
        %669 = vmax.xlane.f32.xlu0 %v668
        %v670 = vpop.xlane.xlu0 %669
        %v671 = vmax.f32 %v546, %v548
        %672 = vmax.xlane.f32.xlu0 %v671
        %v673 = vpop.xlane.xlu0 %672
        %v674 = vmax.f32 %v552, %v554
        %675 = vmax.xlane.f32.xlu0 %v674
        %v676 = vpop.xlane.xlu0 %675
        %v677 = vmax.f32 %v556, %v558
        %678 = vmax.xlane.f32.xlu0 %v677
        %v679 = vpop.xlane.xlu0 %678
        %v680 = vmax.f32 %v562, %v564
        %681 = vmax.xlane.f32.xlu0 %v680
        %v682 = vpop.xlane.xlu0 %681
        %v683 = vmax.f32 %v566, %v568
        %684 = vmax.xlane.f32.xlu0 %v683
        %v685 = vpop.xlane.xlu0 %684
        %v686 = vmax.f32 %v572, %v574
        %687 = vmax.xlane.f32.xlu0 %v686
        %v688 = vpop.xlane.xlu0 %687
        %v689 = vmax.f32 %v576, %v578
        %690 = vmax.xlane.f32.xlu0 %v689
        %v691 = vpop.xlane.xlu0 %690
        %v692 = vmax.f32 %v582, %v584
        %693 = vmax.xlane.f32.xlu0 %v692
        %v694 = vpop.xlane.xlu0 %693
        %v695 = vmax.f32 %v586, %v588
        %696 = vmax.xlane.f32.xlu0 %v695
        %v697 = vpop.xlane.xlu0 %696
        %v698 = vmax.f32 %v592, %v594
        %699 = vmax.xlane.f32.xlu0 %v698
        %v700 = vpop.xlane.xlu0 %699
        %v701 = vmax.f32 %v596, %v598
        %702 = vmax.xlane.f32.xlu0 %v701
        %v703 = vpop.xlane.xlu0 %702
        %v704 = vmax.f32 %v602, %v604
        %705 = vmax.xlane.f32.xlu0 %v704
        %v706 = vpop.xlane.xlu0 %705
        %v707 = vmax.f32 %v606, %v608
        %708 = vmax.xlane.f32.xlu0 %v707
        %v709 = vpop.xlane.xlu0 %708
        %v710 = vmax.f32 %v612, %v614
        %711 = vmax.xlane.f32.xlu0 %v710
        %v712 = vpop.xlane.xlu0 %711
        %v713 = vmax.f32 %v616, %v618
        %714 = vmax.xlane.f32.xlu0 %v713
        %v715 = vpop.xlane.xlu0 %714
        %v716 = vsub.f32 %v462, %v622
        %v717 = vsub.f32 %v464, %v622
        %v718 = vsub.f32 %v466, %v625
        %v719 = vsub.f32 %v468, %v625
        %v720 = vsub.f32 %v472, %v628
        %v721 = vsub.f32 %v474, %v628
        %v722 = vsub.f32 %v476, %v631
        %v723 = vsub.f32 %v478, %v631
        %v724 = vsub.f32 %v482, %v634
        %v725 = vsub.f32 %v484, %v634
        %v726 = vsub.f32 %v486, %v637
        %v727 = vsub.f32 %v488, %v637
        %v728 = vsub.f32 %v492, %v640
        %v729 = vsub.f32 %v494, %v640
        %v730 = vsub.f32 %v496, %v643
        %v731 = vsub.f32 %v498, %v643
        %v732 = vsub.f32 %v502, %v646
        %v733 = vsub.f32 %v504, %v646
        %v734 = vsub.f32 %v506, %v649
        %v735 = vsub.f32 %v508, %v649
        %v736 = vsub.f32 %v512, %v652
        %v737 = vsub.f32 %v514, %v652
        %v738 = vsub.f32 %v516, %v655
        %v739 = vsub.f32 %v518, %v655
        %v740 = vsub.f32 %v522, %v658
        %v741 = vsub.f32 %v524, %v658
        %v742 = vsub.f32 %v526, %v661
        %v743 = vsub.f32 %v528, %v661
        %v744 = vsub.f32 %v532, %v664
        %v745 = vsub.f32 %v534, %v664
        %v746 = vsub.f32 %v536, %v667
        %v747 = vsub.f32 %v538, %v667
        %v748 = vsub.f32 %v542, %v670
        %v749 = vsub.f32 %v544, %v670
        %v750 = vsub.f32 %v546, %v673
        %v751 = vsub.f32 %v548, %v673
        %v752 = vsub.f32 %v552, %v676
        %v753 = vsub.f32 %v554, %v676
        %v754 = vsub.f32 %v556, %v679
        %v755 = vsub.f32 %v558, %v679
        %v756 = vsub.f32 %v562, %v682
        %v757 = vsub.f32 %v564, %v682
        %v758 = vsub.f32 %v566, %v685
        %v759 = vsub.f32 %v568, %v685
        %v760 = vsub.f32 %v572, %v688
        %v761 = vsub.f32 %v574, %v688
        %v762 = vsub.f32 %v576, %v691
        %v763 = vsub.f32 %v578, %v691
        %v764 = vsub.f32 %v582, %v694
        %v765 = vsub.f32 %v584, %v694
        %v766 = vsub.f32 %v586, %v697
        %v767 = vsub.f32 %v588, %v697
        %v768 = vsub.f32 %v592, %v700
        %v769 = vsub.f32 %v594, %v700
        %v770 = vsub.f32 %v596, %v703
        %v771 = vsub.f32 %v598, %v703
        %v772 = vsub.f32 %v602, %v706
        %v773 = vsub.f32 %v604, %v706
        %v774 = vsub.f32 %v606, %v709
        %v775 = vsub.f32 %v608, %v709
        %v776 = vsub.f32 %v612, %v712
        %v777 = vsub.f32 %v614, %v712
        %v778 = vsub.f32 %v616, %v715
        %v779 = vsub.f32 %v618, %v715
        %v780 = vmul.f32 %v716, 1.442695
        %v781 = vpow.pop %v780
        %v782 = vmul.f32 %v717, 1.442695
        %v783 = vpow.pop %v782
        %v784 = vmul.f32 %v718, 1.442695
        %v785 = vpow.pop %v784
        %v786 = vmul.f32 %v719, 1.442695
        %v787 = vpow.pop %v786
        %v788 = vmul.f32 %v720, 1.442695
        %v789 = vpow.pop %v788
        %v790 = vmul.f32 %v721, 1.442695
        %v791 = vpow.pop %v790
        %v792 = vmul.f32 %v722, 1.442695
        %v793 = vpow.pop %v792
        %v794 = vmul.f32 %v723, 1.442695
        %v795 = vpow.pop %v794
        %v796 = vmul.f32 %v724, 1.442695
        %v797 = vpow.pop %v796
        %v798 = vmul.f32 %v725, 1.442695
        %v799 = vpow.pop %v798
        %v800 = vmul.f32 %v726, 1.442695
        %v801 = vpow.pop %v800
        %v802 = vmul.f32 %v727, 1.442695
        %v803 = vpow.pop %v802
        %v804 = vmul.f32 %v728, 1.442695
        %v805 = vpow.pop %v804
        %v806 = vmul.f32 %v729, 1.442695
        %v807 = vpow.pop %v806
        %v808 = vmul.f32 %v730, 1.442695
        %v809 = vpow.pop %v808
        %v810 = vmul.f32 %v731, 1.442695
        %v811 = vpow.pop %v810
        %v812 = vmul.f32 %v732, 1.442695
        %v813 = vpow.pop %v812
        %v814 = vmul.f32 %v733, 1.442695
        %v815 = vpow.pop %v814
        %v816 = vmul.f32 %v734, 1.442695
        %v817 = vpow.pop %v816
        %v818 = vmul.f32 %v735, 1.442695
        %v819 = vpow.pop %v818
        %v820 = vmul.f32 %v736, 1.442695
        %v821 = vpow.pop %v820
        %v822 = vmul.f32 %v737, 1.442695
        %v823 = vpow.pop %v822
        %v824 = vmul.f32 %v738, 1.442695
        %v825 = vpow.pop %v824
        %v826 = vmul.f32 %v739, 1.442695
        %v827 = vpow.pop %v826
        %v828 = vmul.f32 %v740, 1.442695
        %v829 = vpow.pop %v828
        %v830 = vmul.f32 %v741, 1.442695
        %v831 = vpow.pop %v830
        %v832 = vmul.f32 %v742, 1.442695
        %v833 = vpow.pop %v832
        %v834 = vmul.f32 %v743, 1.442695
        %v835 = vpow.pop %v834
        %v836 = vmul.f32 %v744, 1.442695
        %v837 = vpow.pop %v836
        %v838 = vmul.f32 %v745, 1.442695
        %v839 = vpow.pop %v838
        %v840 = vmul.f32 %v746, 1.442695
        %v841 = vpow.pop %v840
        %v842 = vmul.f32 %v747, 1.442695
        %v843 = vpow.pop %v842
        %v844 = vmul.f32 %v748, 1.442695
        %v845 = vpow.pop %v844
        %v846 = vmul.f32 %v749, 1.442695
        %v847 = vpow.pop %v846
        %v848 = vmul.f32 %v750, 1.442695
        %v849 = vpow.pop %v848
        %v850 = vmul.f32 %v751, 1.442695
        %v851 = vpow.pop %v850
        %v852 = vmul.f32 %v752, 1.442695
        %v853 = vpow.pop %v852
        %v854 = vmul.f32 %v753, 1.442695
        %v855 = vpow.pop %v854
        %v856 = vmul.f32 %v754, 1.442695
        %v857 = vpow.pop %v856
        %v858 = vmul.f32 %v755, 1.442695
        %v859 = vpow.pop %v858
        %v860 = vmul.f32 %v756, 1.442695
        %v861 = vpow.pop %v860
        %v862 = vmul.f32 %v757, 1.442695
        %v863 = vpow.pop %v862
        %v864 = vmul.f32 %v758, 1.442695
        %v865 = vpow.pop %v864
        %v866 = vmul.f32 %v759, 1.442695
        %v867 = vpow.pop %v866
        %v868 = vmul.f32 %v760, 1.442695
        %v869 = vpow.pop %v868
        %v870 = vmul.f32 %v761, 1.442695
        %v871 = vpow.pop %v870
        %v872 = vmul.f32 %v762, 1.442695
        %v873 = vpow.pop %v872
        %v874 = vmul.f32 %v763, 1.442695
        %v875 = vpow.pop %v874
        %v876 = vmul.f32 %v764, 1.442695
        %v877 = vpow.pop %v876
        %v878 = vmul.f32 %v765, 1.442695
        %v879 = vpow.pop %v878
        %v880 = vmul.f32 %v766, 1.442695
        %v881 = vpow.pop %v880
        %v882 = vmul.f32 %v767, 1.442695
        %v883 = vpow.pop %v882
        %v884 = vmul.f32 %v768, 1.442695
        %v885 = vpow.pop %v884
        %v886 = vmul.f32 %v769, 1.442695
        %v887 = vpow.pop %v886
        %v888 = vmul.f32 %v770, 1.442695
        %v889 = vpow.pop %v888
        %v890 = vmul.f32 %v771, 1.442695
        %v891 = vpow.pop %v890
        %v892 = vmul.f32 %v772, 1.442695
        %v893 = vpow.pop %v892
        %v894 = vmul.f32 %v773, 1.442695
        %v895 = vpow.pop %v894
        %v896 = vmul.f32 %v774, 1.442695
        %v897 = vpow.pop %v896
        %v898 = vmul.f32 %v775, 1.442695
        %v899 = vpow.pop %v898
        %v900 = vmul.f32 %v776, 1.442695
        %v901 = vpow.pop %v900
        %v902 = vmul.f32 %v777, 1.442695
        %v903 = vpow.pop %v902
        %v904 = vmul.f32 %v778, 1.442695
        %v905 = vpow.pop %v904
        %v906 = vmul.f32 %v779, 1.442695
        %v907 = vpow.pop %v906
        %v908 = vadd.f32 %v781, %v783
        %909 = vadd.xlane.f32.xlu0 %v908
        %v910 = vpop.xlane.xlu0 %909
        %v911 = vadd.f32 %v785, %v787
        %912 = vadd.xlane.f32.xlu0 %v911
        %v913 = vpop.xlane.xlu0 %912
        %v914 = vadd.f32 %v789, %v791
        %915 = vadd.xlane.f32.xlu0 %v914
        %v916 = vpop.xlane.xlu0 %915
        %v917 = vadd.f32 %v793, %v795
        %918 = vadd.xlane.f32.xlu0 %v917
        %v919 = vpop.xlane.xlu0 %918
        %v920 = vadd.f32 %v797, %v799
        %921 = vadd.xlane.f32.xlu0 %v920
        %v922 = vpop.xlane.xlu0 %921
        %v923 = vadd.f32 %v801, %v803
        %924 = vadd.xlane.f32.xlu0 %v923
        %v925 = vpop.xlane.xlu0 %924
        %v926 = vadd.f32 %v805, %v807
        %927 = vadd.xlane.f32.xlu0 %v926
        %v928 = vpop.xlane.xlu0 %927
        %v929 = vadd.f32 %v809, %v811
        %930 = vadd.xlane.f32.xlu0 %v929
        %v931 = vpop.xlane.xlu0 %930
        %v932 = vadd.f32 %v813, %v815
        %933 = vadd.xlane.f32.xlu0 %v932
        %v934 = vpop.xlane.xlu0 %933
        %v935 = vadd.f32 %v817, %v819
        %936 = vadd.xlane.f32.xlu0 %v935
        %v937 = vpop.xlane.xlu0 %936
        %v938 = vadd.f32 %v821, %v823
        %939 = vadd.xlane.f32.xlu0 %v938
        %v940 = vpop.xlane.xlu0 %939
        %v941 = vadd.f32 %v825, %v827
        %942 = vadd.xlane.f32.xlu0 %v941
        %v943 = vpop.xlane.xlu0 %942
        %v944 = vadd.f32 %v829, %v831
        %945 = vadd.xlane.f32.xlu0 %v944
        %v946 = vpop.xlane.xlu0 %945
        %v947 = vadd.f32 %v833, %v835
        %948 = vadd.xlane.f32.xlu0 %v947
        %v949 = vpop.xlane.xlu0 %948
        %v950 = vadd.f32 %v837, %v839
        %951 = vadd.xlane.f32.xlu0 %v950
        %v952 = vpop.xlane.xlu0 %951
        %v953 = vadd.f32 %v841, %v843
        %954 = vadd.xlane.f32.xlu0 %v953
        %v955 = vpop.xlane.xlu0 %954
        %v956 = vadd.f32 %v845, %v847
        %957 = vadd.xlane.f32.xlu0 %v956
        %v958 = vpop.xlane.xlu0 %957
        %v959 = vadd.f32 %v849, %v851
        %960 = vadd.xlane.f32.xlu0 %v959
        %v961 = vpop.xlane.xlu0 %960
        %v962 = vadd.f32 %v853, %v855
        %963 = vadd.xlane.f32.xlu0 %v962
        %v964 = vpop.xlane.xlu0 %963
        %v965 = vadd.f32 %v857, %v859
        %966 = vadd.xlane.f32.xlu0 %v965
        %v967 = vpop.xlane.xlu0 %966
        %v968 = vadd.f32 %v861, %v863
        %969 = vadd.xlane.f32.xlu0 %v968
        %v970 = vpop.xlane.xlu0 %969
        %v971 = vadd.f32 %v865, %v867
        %972 = vadd.xlane.f32.xlu0 %v971
        %v973 = vpop.xlane.xlu0 %972
        %v974 = vadd.f32 %v869, %v871
        %975 = vadd.xlane.f32.xlu0 %v974
        %v976 = vpop.xlane.xlu0 %975
        %v977 = vadd.f32 %v873, %v875
        %978 = vadd.xlane.f32.xlu0 %v977
        %v979 = vpop.xlane.xlu0 %978
        %v980 = vadd.f32 %v877, %v879
        %981 = vadd.xlane.f32.xlu0 %v980
        %v982 = vpop.xlane.xlu0 %981
        %v983 = vadd.f32 %v881, %v883
        %984 = vadd.xlane.f32.xlu0 %v983
        %v985 = vpop.xlane.xlu0 %984
        %v986 = vadd.f32 %v885, %v887
        %987 = vadd.xlane.f32.xlu0 %v986
        %v988 = vpop.xlane.xlu0 %987
        %v989 = vadd.f32 %v889, %v891
        %990 = vadd.xlane.f32.xlu0 %v989
        %v991 = vpop.xlane.xlu0 %990
        %v992 = vadd.f32 %v893, %v895
        %993 = vadd.xlane.f32.xlu0 %v992
        %v994 = vpop.xlane.xlu0 %993
        %v995 = vadd.f32 %v897, %v899
        %996 = vadd.xlane.f32.xlu0 %v995
        %v997 = vpop.xlane.xlu0 %996
        %v998 = vadd.f32 %v901, %v903
        %999 = vadd.xlane.f32.xlu0 %v998
        %v1000 = vpop.xlane.xlu0 %999
        %v1001 = vadd.f32 %v905, %v907
        %1002 = vadd.xlane.f32.xlu0 %v1001
        %v1003 = vpop.xlane.xlu0 %1002
        %v1004 = vrcp.pop %v910
        %v1005 = vrcp.pop %v913
        %v1006 = vrcp.pop %v916
        %v1007 = vrcp.pop %v919
        %v1008 = vrcp.pop %v922
        %v1009 = vrcp.pop %v925
        %v1010 = vrcp.pop %v928
        %v1011 = vrcp.pop %v931
        %v1012 = vrcp.pop %v934
        %v1013 = vrcp.pop %v937
        %v1014 = vrcp.pop %v940
        %v1015 = vrcp.pop %v943
        %v1016 = vrcp.pop %v946
        %v1017 = vrcp.pop %v949
        %v1018 = vrcp.pop %v952
        %v1019 = vrcp.pop %v955
        %v1020 = vrcp.pop %v958
        %v1021 = vrcp.pop %v961
        %v1022 = vrcp.pop %v964
        %v1023 = vrcp.pop %v967
        %v1024 = vrcp.pop %v970
        %v1025 = vrcp.pop %v973
        %v1026 = vrcp.pop %v976
        %v1027 = vrcp.pop %v979
        %v1028 = vrcp.pop %v982
        %v1029 = vrcp.pop %v985
        %v1030 = vrcp.pop %v988
        %v1031 = vrcp.pop %v991
        %v1032 = vrcp.pop %v994
        %v1033 = vrcp.pop %v997
        %v1034 = vrcp.pop %v1000
        %v1035 = vrcp.pop %v1003
        %v1036 = vmul.f32 %v781, %v1004
        %v1037 = vmul.f32 %v783, %v1004
        %v1038 = vmul.f32 %v785, %v1005
        %v1039 = vmul.f32 %v787, %v1005
        %v1040 = vmul.f32 %v789, %v1006
        %v1041 = vmul.f32 %v791, %v1006
        %v1042 = vmul.f32 %v793, %v1007
        %v1043 = vmul.f32 %v795, %v1007
        %v1044 = vmul.f32 %v797, %v1008
        %v1045 = vmul.f32 %v799, %v1008
        %v1046 = vmul.f32 %v801, %v1009
        %v1047 = vmul.f32 %v803, %v1009
        %v1048 = vmul.f32 %v805, %v1010
        %v1049 = vmul.f32 %v807, %v1010
        %v1050 = vmul.f32 %v809, %v1011
        %v1051 = vmul.f32 %v811, %v1011
        %v1052 = vmul.f32 %v813, %v1012
        %v1053 = vmul.f32 %v815, %v1012
        %v1054 = vmul.f32 %v817, %v1013
        %v1055 = vmul.f32 %v819, %v1013
        %v1056 = vmul.f32 %v821, %v1014
        %v1057 = vmul.f32 %v823, %v1014
        %v1058 = vmul.f32 %v825, %v1015
        %v1059 = vmul.f32 %v827, %v1015
        %v1060 = vmul.f32 %v829, %v1016
        %v1061 = vmul.f32 %v831, %v1016
        %v1062 = vmul.f32 %v833, %v1017
        %v1063 = vmul.f32 %v835, %v1017
        %v1064 = vmul.f32 %v837, %v1018
        %v1065 = vmul.f32 %v839, %v1018
        %v1066 = vmul.f32 %v841, %v1019
        %v1067 = vmul.f32 %v843, %v1019
        %v1068 = vmul.f32 %v845, %v1020
        %v1069 = vmul.f32 %v847, %v1020
        %v1070 = vmul.f32 %v849, %v1021
        %v1071 = vmul.f32 %v851, %v1021
        %v1072 = vmul.f32 %v853, %v1022
        %v1073 = vmul.f32 %v855, %v1022
        %v1074 = vmul.f32 %v857, %v1023
        %v1075 = vmul.f32 %v859, %v1023
        %v1076 = vmul.f32 %v861, %v1024
        %v1077 = vmul.f32 %v863, %v1024
        %v1078 = vmul.f32 %v865, %v1025
        %v1079 = vmul.f32 %v867, %v1025
        %v1080 = vmul.f32 %v869, %v1026
        %v1081 = vmul.f32 %v871, %v1026
        %v1082 = vmul.f32 %v873, %v1027
        %v1083 = vmul.f32 %v875, %v1027
        %v1084 = vmul.f32 %v877, %v1028
        %v1085 = vmul.f32 %v879, %v1028
        %v1086 = vmul.f32 %v881, %v1029
        %v1087 = vmul.f32 %v883, %v1029
        %v1088 = vmul.f32 %v885, %v1030
        %v1089 = vmul.f32 %v887, %v1030
        %v1090 = vmul.f32 %v889, %v1031
        %v1091 = vmul.f32 %v891, %v1031
        %v1092 = vmul.f32 %v893, %v1032
        %v1093 = vmul.f32 %v895, %v1032
        %v1094 = vmul.f32 %v897, %v1033
        %v1095 = vmul.f32 %v899, %v1033
        %v1096 = vmul.f32 %v901, %v1034
        %v1097 = vmul.f32 %v903, %v1034
        %v1098 = vmul.f32 %v905, %v1035
        %v1099 = vmul.f32 %v907, %v1035
        %v1100 = vpack.c.bf16 %v1038, %v1036
        %v1101 = vpack.c.bf16 %v1039, %v1037
        %v1102 = vpack.c.bf16 %v1042, %v1040
        %v1103 = vpack.c.bf16 %v1043, %v1041
        %v1104 = vpack.c.bf16 %v1046, %v1044
        %v1105 = vpack.c.bf16 %v1047, %v1045
        %v1106 = vpack.c.bf16 %v1050, %v1048
        %v1107 = vpack.c.bf16 %v1051, %v1049
        %v1108 = vpack.c.bf16 %v1054, %v1052
        %v1109 = vpack.c.bf16 %v1055, %v1053
        %v1110 = vpack.c.bf16 %v1058, %v1056
        %v1111 = vpack.c.bf16 %v1059, %v1057
        %v1112 = vpack.c.bf16 %v1062, %v1060
        %v1113 = vpack.c.bf16 %v1063, %v1061
        %v1114 = vpack.c.bf16 %v1066, %v1064
        %v1115 = vpack.c.bf16 %v1067, %v1065
        %v1116 = vpack.c.bf16 %v1070, %v1068
        %v1117 = vpack.c.bf16 %v1071, %v1069
        %v1118 = vpack.c.bf16 %v1074, %v1072
        %v1119 = vpack.c.bf16 %v1075, %v1073
        %v1120 = vpack.c.bf16 %v1078, %v1076
        %v1121 = vpack.c.bf16 %v1079, %v1077
        %v1122 = vpack.c.bf16 %v1082, %v1080
        %v1123 = vpack.c.bf16 %v1083, %v1081
        %v1124 = vpack.c.bf16 %v1086, %v1084
        %v1125 = vpack.c.bf16 %v1087, %v1085
        %v1126 = vpack.c.bf16 %v1090, %v1088
        %v1127 = vpack.c.bf16 %v1091, %v1089
        %v1128 = vpack.c.bf16 %v1094, %v1092
        %v1129 = vpack.c.bf16 %v1095, %v1093
        %v1130 = vpack.c.bf16 %v1098, %v1096
        %v1131 = vpack.c.bf16 %v1099, %v1097
        %v1134 = vrot.slane %v323, 3
        %v1135 = vrot.slane %v324, 3
        %1138 = vmatprep.subr.bf16.mxu0 %v1115
        %1139 = vmatpush1.bf16.xpose.msra.mxu0 %v1114
        %1140 = vmatprep.subr.bf16.mxu0 %v1113
        %1141 = vmatpush1.bf16.xpose.msra.mxu0 %v1112
        %1142 = vmatprep.subr.bf16.mxu0 %v1111
        %1143 = vmatpush1.bf16.xpose.msra.mxu0 %v1110
        %1144 = vmatprep.subr.bf16.mxu0 %v1109
        %1145 = vmatpush1.bf16.xpose.msra.mxu0 %v1108
        %1146 = vmatprep.subr.bf16.mxu0 %v1107
        %1147 = vmatpush1.bf16.xpose.msra.mxu0 %v1106
        %1148 = vmatprep.subr.bf16.mxu0 %v1105
        %1149 = vmatpush1.bf16.xpose.msra.mxu0 %v1104
        %1150 = vmatprep.subr.bf16.mxu0 %v1103
        %1151 = vmatpush1.bf16.xpose.msra.mxu0 %v1102
        %1152 = vmatprep.subr.bf16.mxu0 %v1101
        %1153 = vmatpush1.bf16.xpose.msra.mxu0 %v1100
        %1154 = vmatprep.subr.bf16.mxu0 %v1131
        %1155 = vmatpush2.bf16.xpose.msra.mxu0 %v1130
        %1156 = vmatprep.subr.bf16.mxu0 %v1129
        %1157 = vmatpush2.bf16.xpose.msra.mxu0 %v1128
        %1158 = vmatprep.subr.bf16.mxu0 %v1127
        %1159 = vmatpush2.bf16.xpose.msra.mxu0 %v1126
        %1160 = vmatprep.subr.bf16.mxu0 %v1125
        %1161 = vmatpush2.bf16.xpose.msra.mxu0 %v1124
        %1162 = vmatprep.subr.bf16.mxu0 %v1123
        %1163 = vmatpush2.bf16.xpose.msra.mxu0 %v1122
        %1164 = vmatprep.subr.bf16.mxu0 %v1121
        %1165 = vmatpush2.bf16.xpose.msra.mxu0 %v1120
        %1166 = vmatprep.subr.bf16.mxu0 %v1119
        %1167 = vmatpush2.bf16.xpose.msra.mxu0 %v1118
        %1168 = vmatprep.subr.bf16.mxu0 %v1117
        %1169 = vmatpush2.bf16.xpose.msra.mxu0 %v1116
        %1170 = vmatprep.mubr.bf16.mxu0 %v1135
        %1171 = vmatmul.mubr.bf16.gmra.mxu0 %v1134
        %v1172 = vpop.f32.mrf.mxu0
        %v1173 = vadd.f32 0.0, %v1172
        %v1174 = vpop.f32.mrf.mxu0
        %v1175 = vadd.f32 0.0, %v1174
        %v1176 = vpop.f32.mrf.mxu0
        %v1177 = vpop.f32.mrf.mxu0
        %1178 = vdwg.mxu0
        %s1179 = sld [smem:[#allocation2]]
        %v1180 = vstv %s1179
        %v1181 = vmul.f32 %v1180, %v1173
        %v1182 = vmul.f32 %v1180, %v1175
        %v1183 = vadd.f32 %v1181, %v239
        %v1184 = vadd.f32 %v1182, %v241
        %v1185 = vpack.c.bf16 %v1183, %v1183
        %v1186 = vpack.c.bf16 %v1184, %v1184
        %v1189 = vcombine.low %v1185, %v1186
        %v1191 = vunpack.c.l.s4 1983009808
        %v1192 = vunpack.c.0.s8 %v1191
        %v1193 = vlaneseq
        %v1194 = vshrl.u32 %v1193, 7
        %v1195 = vsub.s32 %v1192, %v1194
        %v1196 = vrot.slane %v1189, %v1195
        %vm1198 = vcmask 1041408
        %vm1199 = vsmask.f32 1280
        %vm1200 = vmand %vm1198, %vm1199
        %vm1201 = vcmask 1043458
        %vm1202 = vsmask.f32 3328
        %vm1203 = vmand %vm1201, %vm1202
        %vm1204 = vmor %vm1203, %vm1200
        %v1205 = vld [vmem:[%s236] sm:$0xf]
        %v1206 = vsel %vm1204, %v1196, %v1205
        %1207 = vst [vmem:[%s236] sm:$0xf] %v1206
        %1208 = vst [vmem:[%s226] sm:$0xff] %v1036
        %1209 = vst [vmem:[%s226 + $0x8] sm:$0xff] %v1037
        %1210 = vst [vmem:[%s226 + $0x10] sm:$0xff] %v1038
        %1211 = vst [vmem:[%s226 + $0x18] sm:$0xff] %v1039
        %1212 = vst [vmem:[%s226 + $0x20] sm:$0xff] %v1040
        %1213 = vst [vmem:[%s226 + $0x28] sm:$0xff] %v1041
        %1214 = vst [vmem:[%s226 + $0x30] sm:$0xff] %v1042
        %1215 = vst [vmem:[%s226 + $0x38] sm:$0xff] %v1043
        %1216 = vst [vmem:[%s226 + $0x40] sm:$0xff] %v1044
        %1217 = vst [vmem:[%s226 + $0x48] sm:$0xff] %v1045
        %1218 = vst [vmem:[%s226 + $0x50] sm:$0xff] %v1046
        %1219 = vst [vmem:[%s226 + $0x58] sm:$0xff] %v1047
        %1220 = vst [vmem:[%s226 + $0x60] sm:$0xff] %v1048
        %1221 = vst [vmem:[%s226 + $0x68] sm:$0xff] %v1049
        %1222 = vst [vmem:[%s226 + $0x70] sm:$0xff] %v1050
        %1223 = vst [vmem:[%s226 + $0x78] sm:$0xff] %v1051
        %1224 = vst [vmem:[%s226 + $0x80] sm:$0xff] %v1052
        %1225 = vst [vmem:[%s226 + $0x88] sm:$0xff] %v1053
        %1226 = vst [vmem:[%s226 + $0x90] sm:$0xff] %v1054
        %1227 = vst [vmem:[%s226 + $0x98] sm:$0xff] %v1055
        %1228 = vst [vmem:[%s226 + $0xa0] sm:$0xff] %v1056
        %1229 = vst [vmem:[%s226 + $0xa8] sm:$0xff] %v1057
        %1230 = vst [vmem:[%s226 + $0xb0] sm:$0xff] %v1058
        %1231 = vst [vmem:[%s226 + $0xb8] sm:$0xff] %v1059
        %1232 = vst [vmem:[%s226 + $0xc0] sm:$0xff] %v1060
        %1233 = vst [vmem:[%s226 + $0xc8] sm:$0xff] %v1061
        %1234 = vst [vmem:[%s226 + $0xd0] sm:$0xff] %v1062
        %1235 = vst [vmem:[%s226 + $0xd8] sm:$0xff] %v1063
        %1236 = vst [vmem:[%s226 + $0xe0] sm:$0xff] %v1064
        %1237 = vst [vmem:[%s226 + $0xe8] sm:$0xff] %v1065
        %1238 = vst [vmem:[%s226 + $0xf0] sm:$0xff] %v1066
        %1239 = vst [vmem:[%s226 + $0xf8] sm:$0xff] %v1067
        %1240 = vst [vmem:[%s226 + $0x100] sm:$0xff] %v1068
        %1241 = vst [vmem:[%s226 + $0x108] sm:$0xff] %v1069
        %1242 = vst [vmem:[%s226 + $0x110] sm:$0xff] %v1070
        %1243 = vst [vmem:[%s226 + $0x118] sm:$0xff] %v1071
        %1244 = vst [vmem:[%s226 + $0x120] sm:$0xff] %v1072
        %1245 = vst [vmem:[%s226 + $0x128] sm:$0xff] %v1073
        %1246 = vst [vmem:[%s226 + $0x130] sm:$0xff] %v1074
        %1247 = vst [vmem:[%s226 + $0x138] sm:$0xff] %v1075
        %1248 = vst [vmem:[%s226 + $0x140] sm:$0xff] %v1076
        %1249 = vst [vmem:[%s226 + $0x148] sm:$0xff] %v1077
        %1250 = vst [vmem:[%s226 + $0x150] sm:$0xff] %v1078
        %1251 = vst [vmem:[%s226 + $0x158] sm:$0xff] %v1079
        %1252 = vst [vmem:[%s226 + $0x160] sm:$0xff] %v1080
        %1253 = vst [vmem:[%s226 + $0x168] sm:$0xff] %v1081
        %1254 = vst [vmem:[%s226 + $0x170] sm:$0xff] %v1082
        %1255 = vst [vmem:[%s226 + $0x178] sm:$0xff] %v1083
        %1256 = vst [vmem:[%s226 + $0x180] sm:$0xff] %v1084
        %1257 = vst [vmem:[%s226 + $0x188] sm:$0xff] %v1085
        %1258 = vst [vmem:[%s226 + $0x190] sm:$0xff] %v1086
        %1259 = vst [vmem:[%s226 + $0x198] sm:$0xff] %v1087
        %1260 = vst [vmem:[%s226 + $0x1a0] sm:$0xff] %v1088
        %1261 = vst [vmem:[%s226 + $0x1a8] sm:$0xff] %v1089
        %1262 = vst [vmem:[%s226 + $0x1b0] sm:$0xff] %v1090
        %1263 = vst [vmem:[%s226 + $0x1b8] sm:$0xff] %v1091
        %1264 = vst [vmem:[%s226 + $0x1c0] sm:$0xff] %v1092
        %1265 = vst [vmem:[%s226 + $0x1c8] sm:$0xff] %v1093
        %1266 = vst [vmem:[%s226 + $0x1d0] sm:$0xff] %v1094
        %1267 = vst [vmem:[%s226 + $0x1d8] sm:$0xff] %v1095
        %1268 = vst [vmem:[%s226 + $0x1e0] sm:$0xff] %v1096
        %1269 = vst [vmem:[%s226 + $0x1e8] sm:$0xff] %v1097
        %1270 = vst [vmem:[%s226 + $0x1f0] sm:$0xff] %v1098
        %1271 = vst [vmem:[%s226 + $0x1f8] sm:$0xff] %v1099
        %s1272 = smul.u32 2, %s21
        %p1273 = scmp.lt.s32.totalorder %s1272, 3
        %s1274 = scalar_select %p1273, %s1272, 3
        %s1275 = smul.addr %s1274, 2
        %s1276 = scalar_lea.vmem %s4, %s1275
        %s1277 = sand.u32 %s144, 1
        %s1278 = scalar_lea.sflag [#allocation4], %s1277
        %s1279 = sand.u32 %s144, 1
        %s1280 = smul.addr %s1279, 512
        %s1281 = scalar_lea.vmem [#allocation3], %s1280
        // Predicated region
        $region37: #{basic_cnn_forward.5} parent=35 // pred_check
          %p1282 = pneg %p128
        $region38: #{basic_cnn_forward.5} parent=35 // pred_check_branch
          %1284 = sbr.rel (%p1282) target = $region40
        $region39: #{basic_cnn_forward.5} parent=35 // pred_region
          %s1285 = smul.u32 2, %s21
        $region40: #{basic_cnn_forward.5} parent=35 // pred_fallthru
          _
        // Predicated region
        $region41: #{basic_cnn_forward.5} parent=35 // pred_check
          %p1286 = pneg %p154
        $region42: #{basic_cnn_forward.5} parent=35 // pred_check_branch
          %1288 = sbr.rel (%p1286) target = $region44
        $region43: #{basic_cnn_forward.5} parent=35 // pred_region
          %s1290 = ssub.s32 8192, 8192
          %1291 = vsyncadd %s1278, %s1290
          %s1292 = smul.addr %s21, 64
          %s1293 = smul.addr %s1292, 128
          %s1294 = scalar_lea.hbm %s5, %s1293
          %s1295 = sshll.u32 %s1281, 4
          %s1296 = int_to_ptr.vmem [resolvable:$true] %s1295
          %1301 = dma.vmem_to_hbm [thread:$0]  %s1296, 8192, %s1294, %s1278, 256, 256, 16
        $region44: #{basic_cnn_forward.5} parent=35 // pred_fallthru
          _
      $region36: #{basic_cnn_forward.5} parent=5 // pred_fallthru
        _
      %p1302 = scmp.le.s32.totalorder 2, %s16
      // Predicated region
      $region45: #{basic_cnn_forward.5} parent=5 // pred_check
        %p1303 = pneg %p1302
      $region46: #{basic_cnn_forward.5} parent=5 // pred_check_branch
        %1305 = sbr.rel (%p1303) target = $region48
      $region47: #{basic_cnn_forward.5} parent=5 // pred_region
        %s1306 = ssub.s32 %s16, 2
        // Predicated region
        $region49: #{basic_cnn_forward.5} parent=47 // pred_check
          %p1307 = pneg %p134
        $region50: #{basic_cnn_forward.5} parent=47 // pred_check_branch
          %1309 = sbr.rel (%p1307) target = $region52
        $region51: #{basic_cnn_forward.5} parent=47 // pred_region
          %s1310 = smul.u32 2, %s22
          %p1311 = scmp.lt.s32.totalorder %s1310, 3
          %s1312 = scalar_select %p1311, %s1310, 3
          %s1313 = smul.addr %s1312, 2
          %s1314 = scalar_lea.vmem %s4, %s1313
        $region52: #{basic_cnn_forward.5} parent=47 // pred_fallthru
          _
        // Predicated region
        $region53: #{basic_cnn_forward.5} parent=47 // pred_check
          %p1315 = pneg %p160
        $region54: #{basic_cnn_forward.5} parent=47 // pred_check_branch
          %1317 = sbr.rel (%p1315) target = $region56
        $region55: #{basic_cnn_forward.5} parent=47 // pred_region
          %s1318 = sand.u32 %s145, 1
          %s1319 = scalar_lea.sflag [#allocation4], %s1318
          %s1320 = sand.u32 %s145, 1
          %s1321 = smul.addr %s1320, 512
          %s1322 = scalar_lea.vmem [#allocation3], %s1321
          %1323 = dma.done %s1319, 8192
        $region56: #{basic_cnn_forward.5} parent=47 // pred_fallthru
          _
      $region48: #{basic_cnn_forward.5} parent=5 // pred_fallthru
        _
    $region6: #{basic_cnn_forward.5} parent=1 // loop_footer
      %s20 = sadd.s32 1, %s16
    $region7: #{basic_cnn_forward.5} parent=1 // loop_footer_branch
      %15 = sbr.rel target = $region3
    $region8: #{basic_cnn_forward.5} parent=1 // loop_exit
      _
    %1324 = vsyncpa [#allocation4], 1
    %s1325 = scalar_lea.sflag [#allocation4], 1
    %1326 = vsyncpa %s1325, 1

// kernel: basic_cnn_forward.6
$region0: #{basic_cnn_forward.6}
  #allocation0 [shape = 'u32[]', space=smem, size = 0x4, offset = 0x4, fixed_abs, tag = 'smem constant byte address 0x4 - core index']
  #allocation1 [shape = 'u32[144,128]{1,0:T(1,128)}', space=vmem, size = 0x12000, scoped, tag = 'internal scratch']
  %s0 = inlined_call_operand.vmem [shape: bf16[6,32], index: 0, kind: input, shape index: {}]
  %s1 = inlined_call_operand.vmem [shape: bf16[32,128], index: 1, kind: input, shape index: {}]
  %s2 = inlined_call_operand.vmem [shape: f32[6,1], index: 2, kind: input, shape index: {}]
  %s3 = inlined_call_operand.vmem [shape: f32[6,1], index: 3, kind: input, shape index: {}]
  %s4 = inlined_call_operand.vmem [shape: bf16[6,128], index: 4, kind: output, shape index: {}]
  %s5 = sld [smem:[#allocation0]]
  $region26: #{basic_cnn_forward.6} parent=0
    _
  %s7 = ssub.s32 1, %s5
  %s8 = scalar_select 0, %s7, %s5
  // Predicated region
  $region2: #{basic_cnn_forward.6} parent=0 // pred_check
    _
  $region3: #{basic_cnn_forward.6} parent=0 // pred_check_branch
    %10 = sbr.rel (0) target = $region5
  $region4: #{basic_cnn_forward.6} parent=0 // pred_region
    _
  $region5: #{basic_cnn_forward.6} parent=0 // pred_fallthru
    _
  // Predicated region
  $region6: #{basic_cnn_forward.6} parent=0 // pred_check
    _
  $region7: #{basic_cnn_forward.6} parent=0 // pred_check_branch
    %12 = sbr.rel (0) target = $region9
  $region8: #{basic_cnn_forward.6} parent=0 // pred_region
    _
  $region9: #{basic_cnn_forward.6} parent=0 // pred_fallthru
    _
  // Predicated region
  $region10: #{basic_cnn_forward.6} parent=0 // pred_check
    _
  $region11: #{basic_cnn_forward.6} parent=0 // pred_check_branch
    %14 = sbr.rel (0) target = $region13
  $region12: #{basic_cnn_forward.6} parent=0 // pred_region
    _
  $region13: #{basic_cnn_forward.6} parent=0 // pred_fallthru
    _
  // Predicated region
  $region14: #{basic_cnn_forward.6} parent=0 // pred_check
    _
  $region15: #{basic_cnn_forward.6} parent=0 // pred_check_branch
    %16 = sbr.rel (0) target = $region17
  $region16: #{basic_cnn_forward.6} parent=0 // pred_region
    _
  $region17: #{basic_cnn_forward.6} parent=0 // pred_fallthru
    _
  %v18 = vld [vmem:[%s0] sm:$0x7]
  %v19 = vld [vmem:[%s1] sm:$0xf]
  %v20 = vld [vmem:[%s1 + $0x4] sm:$0xf]
  %v21 = vld [vmem:[%s1 + $0x8] sm:$0xf]
  %v22 = vld [vmem:[%s1 + $0xc] sm:$0xf]
  %v27 = vunpack.c.l.b16 %v19
  %v28 = vunpack.c.l.b16 %v20
  %v29 = vunpack.c.l.b16 %v21
  %v30 = vunpack.c.l.b16 %v22
  %v31 = vpack.c.b16 %v28, %v27
  %v32 = vpack.c.b16 %v30, %v29
  %vm35 = vcmask 261120
  %v37 = vsel %vm35, %v18, 0
  %39 = vmatprep.subr.bf16.mxu0 0
  %40 = vmatpush1.bf16.msra.mxu0 0
  %41 = vmatprep.subr.bf16.mxu0 0
  %42 = vmatpush1.bf16.msra.mxu0 0
  %43 = vmatprep.subr.bf16.mxu0 0
  %44 = vmatpush1.bf16.msra.mxu0 0
  %45 = vmatprep.subr.bf16.mxu0 0
  %46 = vmatpush1.bf16.msra.mxu0 0
  %47 = vmatprep.subr.bf16.mxu0 0
  %48 = vmatpush1.bf16.msra.mxu0 0
  %49 = vmatprep.subr.bf16.mxu0 0
  %50 = vmatpush1.bf16.msra.mxu0 0
  %51 = vmatprep.subr.bf16.mxu0 0
  %52 = vmatpush1.bf16.msra.mxu0 %v32
  %53 = vmatprep.subr.bf16.mxu0 0
  %54 = vmatpush1.bf16.msra.mxu0 %v31
  %55 = vmatprep.subr.bf16.mxu0 0
  %56 = vmatpush2.bf16.msra.mxu0 0
  %57 = vmatprep.subr.bf16.mxu0 0
  %58 = vmatpush2.bf16.msra.mxu0 0
  %59 = vmatprep.subr.bf16.mxu0 0
  %60 = vmatpush2.bf16.msra.mxu0 0
  %61 = vmatprep.subr.bf16.mxu0 0
  %62 = vmatpush2.bf16.msra.mxu0 0
  %63 = vmatprep.subr.bf16.mxu0 0
  %64 = vmatpush2.bf16.msra.mxu0 0
  %65 = vmatprep.subr.bf16.mxu0 0
  %66 = vmatpush2.bf16.msra.mxu0 0
  %67 = vmatprep.subr.bf16.mxu0 0
  %68 = vmatpush2.bf16.msra.mxu0 0
  %69 = vmatprep.subr.bf16.mxu0 0
  %70 = vmatpush2.bf16.msra.mxu0 0
  %71 = vmatprep.mubr.bf16.mxu0 0
  %72 = vmatmul.mubr.bf16.gmra.mxu0 %v37
  %v73 = vpop.f32.mrf.mxu0
  %v74 = vadd.f32 0.0, %v73
  %v75 = vpop.f32.mrf.mxu0
  %v76 = vpop.f32.mrf.mxu0
  %v77 = vpop.f32.mrf.mxu0
  %78 = vdwg.mxu0
  %vm79 = vcmask 1045504
  %v80 = vsel %vm79, %v74, 0.0
  %81 = vadd.xlane.f32.xlu0 %v80
  %v82 = vpop.xlane.xlu0 %81
  %v83 = vrcp.pop 128.0
  %v84 = vmul.f32 %v82, %v83
  %v85 = vmul.f32 %v74, %v74
  %v86 = vsel %vm79, %v85, 0.0
  %87 = vadd.xlane.f32.xlu0 %v86
  %v88 = vpop.xlane.xlu0 %87
  %v89 = vmul.f32 %v88, %v83
  %v90 = vmul.f32 %v84, %v84
  %v91 = vsub.f32 %v89, %v90
  %v92 = vmax.f32 %v91, 0.0
  %v93 = vsub.f32 %v74, %v84
  %v94 = vadd.f32 %v92, 1e-05
  %v95 = vrsqrt.pop %v94
  %v96 = vmul.f32 %v93, %v95
  %v97 = vld [vmem:[%s2] sm:$0x3f]
  %99 = vset.pattern.permute.xlu0 0
  %100 = vperm.xlu0 %99, %v97
  %v101 = vpop.permute.xlu0 %100
  %v103 = vmul.f32 %v96, %v101
  %v104 = vld [vmem:[%s3] sm:$0x3f]
  %106 = vset.pattern.permute.xlu0 0
  %107 = vperm.xlu0 %106, %v104
  %v108 = vpop.permute.xlu0 %107
  %v110 = vadd.f32 %v103, %v108
  %v111 = vmax.f32 %v110, 0.0
  %v112 = vpack.c.bf16 %v111, %v111
  %113 = vst [vmem:[%s4] sm:$0x7] %v112
  // Predicated region
  $region18: #{basic_cnn_forward.6} parent=0 // pred_check
    _
  $region19: #{basic_cnn_forward.6} parent=0 // pred_check_branch
    %115 = sbr.rel (0) target = $region21
  $region20: #{basic_cnn_forward.6} parent=0 // pred_region
    _
  $region21: #{basic_cnn_forward.6} parent=0 // pred_fallthru
    _
  // Predicated region
  $region22: #{basic_cnn_forward.6} parent=0 // pred_check
    _
  $region23: #{basic_cnn_forward.6} parent=0 // pred_check_branch
    %117 = sbr.rel (0) target = $region25
  $region24: #{basic_cnn_forward.6} parent=0 // pred_region
    _
  $region25: #{basic_cnn_forward.6} parent=0 // pred_fallthru
    _

// kernel: basic_cnn_forward.7
$region0: #{basic_cnn_forward.7}
  #allocation0 [shape = 'u32[]', space=smem, size = 0x4, offset = 0x4, fixed_abs, tag = 'smem constant byte address 0x4 - core index']
  #allocation1 [shape = 'u32[144,128]{1,0:T(1,128)}', space=vmem, size = 0x12000, scoped, tag = 'internal scratch']
  %s0 = inlined_call_operand.vmem [shape: bf16[12,64], index: 0, kind: input, shape index: {}]
  %s1 = inlined_call_operand.vmem [shape: bf16[64,32], index: 1, kind: input, shape index: {}]
  %s2 = inlined_call_operand.vmem [shape: f32[12,1], index: 2, kind: input, shape index: {}]
  %s3 = inlined_call_operand.vmem [shape: f32[12,1], index: 3, kind: input, shape index: {}]
  %s4 = inlined_call_operand.vmem [shape: bf16[12,32], index: 4, kind: output, shape index: {}]
  %s5 = sld [smem:[#allocation0]]
  $region26: #{basic_cnn_forward.7} parent=0
    _
  %s7 = ssub.s32 1, %s5
  %s8 = scalar_select 0, %s7, %s5
  // Predicated region
  $region2: #{basic_cnn_forward.7} parent=0 // pred_check
    _
  $region3: #{basic_cnn_forward.7} parent=0 // pred_check_branch
    %10 = sbr.rel (0) target = $region5
  $region4: #{basic_cnn_forward.7} parent=0 // pred_region
    _
  $region5: #{basic_cnn_forward.7} parent=0 // pred_fallthru
    _
  // Predicated region
  $region6: #{basic_cnn_forward.7} parent=0 // pred_check
    _
  $region7: #{basic_cnn_forward.7} parent=0 // pred_check_branch
    %12 = sbr.rel (0) target = $region9
  $region8: #{basic_cnn_forward.7} parent=0 // pred_region
    _
  $region9: #{basic_cnn_forward.7} parent=0 // pred_fallthru
    _
  // Predicated region
  $region10: #{basic_cnn_forward.7} parent=0 // pred_check
    _
  $region11: #{basic_cnn_forward.7} parent=0 // pred_check_branch
    %14 = sbr.rel (0) target = $region13
  $region12: #{basic_cnn_forward.7} parent=0 // pred_region
    _
  $region13: #{basic_cnn_forward.7} parent=0 // pred_fallthru
    _
  // Predicated region
  $region14: #{basic_cnn_forward.7} parent=0 // pred_check
    _
  $region15: #{basic_cnn_forward.7} parent=0 // pred_check_branch
    %16 = sbr.rel (0) target = $region17
  $region16: #{basic_cnn_forward.7} parent=0 // pred_region
    _
  $region17: #{basic_cnn_forward.7} parent=0 // pred_fallthru
    _
  %v18 = vld [vmem:[%s0] sm:$0xf]
  %v19 = vld [vmem:[%s0 + $0x4] sm:$0x3]
  %v20 = vld [vmem:[%s1] sm:$0xf]
  %v21 = vld [vmem:[%s1 + $0x4] sm:$0xf]
  %v22 = vld [vmem:[%s1 + $0x8] sm:$0xf]
  %v23 = vld [vmem:[%s1 + $0xc] sm:$0xf]
  %v24 = vld [vmem:[%s1 + $0x10] sm:$0xf]
  %v25 = vld [vmem:[%s1 + $0x14] sm:$0xf]
  %v26 = vld [vmem:[%s1 + $0x18] sm:$0xf]
  %v27 = vld [vmem:[%s1 + $0x1c] sm:$0xf]
  %v30 = vunpack.c.l.b16 %v18
  %v31 = vunpack.c.l.b16 %v19
  %v32 = vpack.c.b16 %v31, %v30
  %v41 = vunpack.c.l.b16 %v20
  %v42 = vunpack.c.l.b16 %v21
  %v43 = vunpack.c.l.b16 %v22
  %v44 = vunpack.c.l.b16 %v23
  %v45 = vunpack.c.l.b16 %v24
  %v46 = vunpack.c.l.b16 %v25
  %v47 = vunpack.c.l.b16 %v26
  %v48 = vunpack.c.l.b16 %v27
  %v49 = vpack.c.b16 %v42, %v41
  %v50 = vpack.c.b16 %v44, %v43
  %v51 = vpack.c.b16 %v46, %v45
  %v52 = vpack.c.b16 %v48, %v47
  %vm57 = vcmask 523264
  %v59 = vsel %vm57, %v32, 0
  %61 = vmatprep.subr.bf16.mxu0 0
  %62 = vmatpush1.bf16.msra.mxu0 0
  %63 = vmatprep.subr.bf16.mxu0 0
  %64 = vmatpush1.bf16.msra.mxu0 0
  %65 = vmatprep.subr.bf16.mxu0 0
  %66 = vmatpush1.bf16.msra.mxu0 0
  %67 = vmatprep.subr.bf16.mxu0 0
  %68 = vmatpush1.bf16.msra.mxu0 0
  %69 = vmatprep.subr.bf16.mxu0 0
  %70 = vmatpush1.bf16.msra.mxu0 %v52
  %71 = vmatprep.subr.bf16.mxu0 0
  %72 = vmatpush1.bf16.msra.mxu0 %v51
  %73 = vmatprep.subr.bf16.mxu0 0
  %74 = vmatpush1.bf16.msra.mxu0 %v50
  %75 = vmatprep.subr.bf16.mxu0 0
  %76 = vmatpush1.bf16.msra.mxu0 %v49
  %77 = vmatprep.subr.bf16.mxu0 0
  %78 = vmatpush2.bf16.msra.mxu0 0
  %79 = vmatprep.subr.bf16.mxu0 0
  %80 = vmatpush2.bf16.msra.mxu0 0
  %81 = vmatprep.subr.bf16.mxu0 0
  %82 = vmatpush2.bf16.msra.mxu0 0
  %83 = vmatprep.subr.bf16.mxu0 0
  %84 = vmatpush2.bf16.msra.mxu0 0
  %85 = vmatprep.subr.bf16.mxu0 0
  %86 = vmatpush2.bf16.msra.mxu0 0
  %87 = vmatprep.subr.bf16.mxu0 0
  %88 = vmatpush2.bf16.msra.mxu0 0
  %89 = vmatprep.subr.bf16.mxu0 0
  %90 = vmatpush2.bf16.msra.mxu0 0
  %91 = vmatprep.subr.bf16.mxu0 0
  %92 = vmatpush2.bf16.msra.mxu0 0
  %93 = vmatprep.mubr.bf16.mxu0 0
  %94 = vmatmul.mubr.bf16.gmra.mxu0 %v59
  %v95 = vpop.f32.mrf.mxu0
  %v96 = vadd.f32 0.0, %v95
  %v97 = vpop.f32.mrf.mxu0
  %v98 = vpop.f32.mrf.mxu0
  %v99 = vadd.f32 0.0, %v98
  %v100 = vpop.f32.mrf.mxu0
  %101 = vdwg.mxu0
  %vm102 = vcmask 261120
  %v103 = vsel %vm102, %v96, 0.0
  %104 = vadd.xlane.f32.xlu0 %v103
  %v105 = vpop.xlane.xlu0 %104
  %vm106 = vcmask 257024
  %v107 = vsel %vm106, %v99, 0.0
  %108 = vadd.xlane.f32.xlu0 %v107
  %v109 = vpop.xlane.xlu0 %108
  %v110 = vrcp.pop 32.0
  %v111 = vmul.f32 %v105, %v110
  %v112 = vmul.f32 %v109, %v110
  %v113 = vmul.f32 %v96, %v96
  %v114 = vmul.f32 %v99, %v99
  %v115 = vsel %vm102, %v113, 0.0
  %116 = vadd.xlane.f32.xlu0 %v115
  %v117 = vpop.xlane.xlu0 %116
  %v118 = vsel %vm106, %v114, 0.0
  %119 = vadd.xlane.f32.xlu0 %v118
  %v120 = vpop.xlane.xlu0 %119
  %v121 = vmul.f32 %v117, %v110
  %v122 = vmul.f32 %v120, %v110
  %v123 = vmul.f32 %v111, %v111
  %v124 = vmul.f32 %v112, %v112
  %v125 = vsub.f32 %v121, %v123
  %v126 = vsub.f32 %v122, %v124
  %v127 = vmax.f32 %v125, 0.0
  %v128 = vmax.f32 %v126, 0.0
  %v129 = vsub.f32 %v96, %v111
  %v130 = vsub.f32 %v99, %v112
  %v131 = vadd.f32 %v127, 1e-05
  %v132 = vadd.f32 %v128, 1e-05
  %v133 = vrsqrt.pop %v131
  %v134 = vrsqrt.pop %v132
  %v135 = vmul.f32 %v129, %v133
  %v136 = vmul.f32 %v130, %v134
  %v137 = vld [vmem:[%s2] sm:$0xff]
  %v138 = vld [vmem:[%s2 + $0x8] sm:$0xf]
  %140 = vset.pattern.permute.xlu0 0
  %141 = vperm.xlu0 %140, %v137
  %v142 = vpop.permute.xlu0 %141
  %145 = vset.pattern.permute.xlu0 0
  %146 = vperm.xlu0 %145, %v138
  %v147 = vpop.permute.xlu0 %146
  %v149 = vmul.f32 %v135, %v142
  %v150 = vmul.f32 %v136, %v147
  %v151 = vld [vmem:[%s3] sm:$0xff]
  %v152 = vld [vmem:[%s3 + $0x8] sm:$0xf]
  %154 = vset.pattern.permute.xlu0 0
  %155 = vperm.xlu0 %154, %v151
  %v156 = vpop.permute.xlu0 %155
  %159 = vset.pattern.permute.xlu0 0
  %160 = vperm.xlu0 %159, %v152
  %v161 = vpop.permute.xlu0 %160
  %v163 = vadd.f32 %v149, %v156
  %v164 = vadd.f32 %v150, %v161
  %v165 = vmax.f32 %v163, 0.0
  %v166 = vmax.f32 %v164, 0.0
  %v167 = vpack.c.bf16 %v166, %v165
  %v169 = vunpack.c.l.b16 %v167
  %v170 = vunpack.c.h.b16 %v167
  %v171 = vpack.c.b16 %v169, %v169
  %v172 = vpack.c.b16 %v170, %v170
  %175 = vst.msk [vmem:[%s4] sm:$0xf] %vm106, %v171
  %vm176 = vcmask 254976
  %177 = vst.msk [vmem:[%s4 + $0x4] sm:$0x3] %vm176, %v172
  // Predicated region
  $region18: #{basic_cnn_forward.7} parent=0 // pred_check
    _
  $region19: #{basic_cnn_forward.7} parent=0 // pred_check_branch
    %179 = sbr.rel (0) target = $region21
  $region20: #{basic_cnn_forward.7} parent=0 // pred_region
    _
  $region21: #{basic_cnn_forward.7} parent=0 // pred_fallthru
    _
  // Predicated region
  $region22: #{basic_cnn_forward.7} parent=0 // pred_check
    _
  $region23: #{basic_cnn_forward.7} parent=0 // pred_check_branch
    %181 = sbr.rel (0) target = $region25
  $region24: #{basic_cnn_forward.7} parent=0 // pred_region
    _
  $region25: #{basic_cnn_forward.7} parent=0 // pred_fallthru
    _

// kernel: basic_cnn_forward.8
$region0: #{basic_cnn_forward.8}
  #allocation0 [shape = 'u32[]', space=smem, size = 0x4, offset = 0x4, fixed_abs, tag = 'smem constant byte address 0x4 - core index']
  #allocation1 [shape = 'u32[144,128]{1,0:T(1,128)}', space=vmem, size = 0x12000, scoped, tag = 'internal scratch']
  %s0 = inlined_call_operand.vmem [shape: bf16[24,128], index: 0, kind: input, shape index: {}]
  %s1 = inlined_call_operand.vmem [shape: bf16[128,8], index: 1, kind: input, shape index: {}]
  %s2 = inlined_call_operand.vmem [shape: f32[24,1], index: 2, kind: input, shape index: {}]
  %s3 = inlined_call_operand.vmem [shape: f32[24,1], index: 3, kind: input, shape index: {}]
  %s4 = inlined_call_operand.vmem [shape: f32[24,8], index: 4, kind: output, shape index: {}]
  %s5 = sld [smem:[#allocation0]]
  $region49: #{basic_cnn_forward.8} parent=0
    _
  %s7 = ssub.s32 1, %s5
  %s8 = scalar_select 0, %s7, %s5
  loop: start=0, step=1, limit=5
  $region2: #{basic_cnn_forward.8} parent=0 // loop_pre_header
    _
  $region3: #{basic_cnn_forward.8} parent=0 // loop_header
    %s10 = sphi 0, %s14
    %p11 = scmp.ge.s32.totalorder %s10, 5
    %s20 = sphi 0, %s22
    %s23 = sphi 0, %s20
    %s24 = sphi 0, %s23
    %s40 = sphi 0, %s24
    %s44 = sphi 0, %s44
    %s46 = sphi 0, %s44
    %s47 = sphi 0, %s46
    %s61 = sphi 0, %s47
    %s67 = sphi 0, %s69
    %s70 = sphi 0, %s67
    %s71 = sphi 0, %s70
    %s87 = sphi 0, %s71
    %s93 = sphi 0, %s95
    %s96 = sphi 0, %s93
    %s97 = sphi 0, %s96
    %s113 = sphi 0, %s97
    %s119 = sphi 0, %s121
    %s122 = sphi 0, %s119
    %s123 = sphi 0, %s122
    %s139 = sphi 0, %s123
  $region4: #{basic_cnn_forward.8} parent=0 // loop_header_branch
    %13 = sbr.rel (%p11) target = $region8
  $region5: #{basic_cnn_forward.8} parent=0 // loop_body
    %s15 = ssub.s32 %s10, 1
    %s16 = ssub.s32 %s10, 2
    %s17 = sadd.s32 %s10, 1
    %s18 = ssub.s32 %s10, %s17
    %p19 = scmp.eq.s32.totalorder %s18, 0
    %s21 = sadd.s32 %s20, 1
    %s22 = scalar_select %p19, %s20, %s21
    %p25 = pneg %p19
    %p26 = scmp.eq.s32.totalorder %s10, 2
    %p27 = por %p25, %p26
    %p28 = scmp.ne.s32.totalorder %s20, %s23
    %p29 = scmp.eq.s32.totalorder %s10, 0
    %p30 = por %p28, %p29
    %p31 = scmp.ne.s32.totalorder %s20, %s23
    %p32 = scmp.eq.s32.totalorder %s15, 2
    %p33 = por %p31, %p32
    %p34 = scmp.ne.s32.totalorder %s23, %s24
    %p35 = scmp.eq.s32.totalorder %s15, 0
    %p36 = por %p34, %p35
    %p37 = scmp.ne.s32.totalorder %s23, %s24
    %p38 = scmp.eq.s32.totalorder %s16, 2
    %p39 = por %p37, %p38
    %p41 = scmp.ne.s32.totalorder %s24, %s40
    %p42 = scmp.eq.s32.totalorder %s16, 0
    %p43 = por %p41, %p42
    %s45 = sadd.s32 %s44, 1
    %p48 = scmp.eq.s32.totalorder %s10, 2
    %p49 = scmp.ne.s32.totalorder %s44, %s46
    %p50 = scmp.eq.s32.totalorder %s10, 0
    %p51 = por %p49, %p50
    %p52 = scmp.ne.s32.totalorder %s44, %s46
    %p53 = scmp.eq.s32.totalorder %s15, 2
    %p54 = por %p52, %p53
    %p55 = scmp.ne.s32.totalorder %s46, %s47
    %p56 = scmp.eq.s32.totalorder %s15, 0
    %p57 = por %p55, %p56
    %p58 = scmp.ne.s32.totalorder %s46, %s47
    %p59 = scmp.eq.s32.totalorder %s16, 2
    %p60 = por %p58, %p59
    %p62 = scmp.ne.s32.totalorder %s47, %s61
    %p63 = scmp.eq.s32.totalorder %s16, 0
    %p64 = por %p62, %p63
    %s65 = ssub.s32 %s10, %s17
    %p66 = scmp.eq.s32.totalorder %s65, 0
    %s68 = sadd.s32 %s67, 1
    %s69 = scalar_select %p66, %s67, %s68
    %p72 = pneg %p66
    %p73 = scmp.eq.s32.totalorder %s10, 2
    %p74 = por %p72, %p73
    %p75 = scmp.ne.s32.totalorder %s67, %s70
    %p76 = scmp.eq.s32.totalorder %s10, 0
    %p77 = por %p75, %p76
    %p78 = scmp.ne.s32.totalorder %s67, %s70
    %p79 = scmp.eq.s32.totalorder %s15, 2
    %p80 = por %p78, %p79
    %p81 = scmp.ne.s32.totalorder %s70, %s71
    %p82 = scmp.eq.s32.totalorder %s15, 0
    %p83 = por %p81, %p82
    %p84 = scmp.ne.s32.totalorder %s70, %s71
    %p85 = scmp.eq.s32.totalorder %s16, 2
    %p86 = por %p84, %p85
    %p88 = scmp.ne.s32.totalorder %s71, %s87
    %p89 = scmp.eq.s32.totalorder %s16, 0
    %p90 = por %p88, %p89
    %s91 = ssub.s32 %s10, %s17
    %p92 = scmp.eq.s32.totalorder %s91, 0
    %s94 = sadd.s32 %s93, 1
    %s95 = scalar_select %p92, %s93, %s94
    %p98 = pneg %p92
    %p99 = scmp.eq.s32.totalorder %s10, 2
    %p100 = por %p98, %p99
    %p101 = scmp.ne.s32.totalorder %s93, %s96
    %p102 = scmp.eq.s32.totalorder %s10, 0
    %p103 = por %p101, %p102
    %p104 = scmp.ne.s32.totalorder %s93, %s96
    %p105 = scmp.eq.s32.totalorder %s15, 2
    %p106 = por %p104, %p105
    %p107 = scmp.ne.s32.totalorder %s96, %s97
    %p108 = scmp.eq.s32.totalorder %s15, 0
    %p109 = por %p107, %p108
    %p110 = scmp.ne.s32.totalorder %s96, %s97
    %p111 = scmp.eq.s32.totalorder %s16, 2
    %p112 = por %p110, %p111
    %p114 = scmp.ne.s32.totalorder %s97, %s113
    %p115 = scmp.eq.s32.totalorder %s16, 0
    %p116 = por %p114, %p115
    %s117 = ssub.s32 %s10, %s17
    %p118 = scmp.eq.s32.totalorder %s117, 0
    %s120 = sadd.s32 %s119, 1
    %s121 = scalar_select %p118, %s119, %s120
    %p124 = pneg %p118
    %p125 = scmp.eq.s32.totalorder %s10, 2
    %p126 = por %p124, %p125
    %p127 = scmp.ne.s32.totalorder %s119, %s122
    %p128 = scmp.eq.s32.totalorder %s10, 0
    %p129 = por %p127, %p128
    %p130 = scmp.ne.s32.totalorder %s119, %s122
    %p131 = scmp.eq.s32.totalorder %s15, 2
    %p132 = por %p130, %p131
    %p133 = scmp.ne.s32.totalorder %s122, %s123
    %p134 = scmp.eq.s32.totalorder %s15, 0
    %p135 = por %p133, %p134
    %p136 = scmp.ne.s32.totalorder %s122, %s123
    %p137 = scmp.eq.s32.totalorder %s16, 2
    %p138 = por %p136, %p137
    %p140 = scmp.ne.s32.totalorder %s123, %s139
    %p141 = scmp.eq.s32.totalorder %s16, 0
    %p142 = por %p140, %p141
    %p143 = scmp.le.s32.totalorder 1, %s10
    %p144 = scmp.lt.s32.totalorder %s10, 4
    %p145 = pnand %p143, %p144
    %p146 = pneg %p145
    // Predicated region
    $region9: #{basic_cnn_forward.8} parent=5 // pred_check
      _
    $region10: #{basic_cnn_forward.8} parent=5 // pred_check_branch
      %148 = sbr.rel (%p145) target = $region12
    $region11: #{basic_cnn_forward.8} parent=5 // pred_region
      %s149 = ssub.s32 %s10, 1
      // Predicated region
      $region13: #{basic_cnn_forward.8} parent=11 // pred_check
        %p150 = pneg %p57
      $region14: #{basic_cnn_forward.8} parent=11 // pred_check_branch
        %152 = sbr.rel (%p150) target = $region16
      $region15: #{basic_cnn_forward.8} parent=11 // pred_region
        _
      $region16: #{basic_cnn_forward.8} parent=11 // pred_fallthru
        _
    $region12: #{basic_cnn_forward.8} parent=5 // pred_fallthru
      _
    %p153 = scmp.lt.s32.totalorder %s10, 3
    // Predicated region
    $region17: #{basic_cnn_forward.8} parent=5 // pred_check
      %p154 = pneg %p153
    $region18: #{basic_cnn_forward.8} parent=5 // pred_check_branch
      %156 = sbr.rel (%p154) target = $region20
    $region19: #{basic_cnn_forward.8} parent=5 // pred_region
      // Predicated region
      $region21: #{basic_cnn_forward.8} parent=19 // pred_check
        %p157 = pneg %p30
      $region22: #{basic_cnn_forward.8} parent=19 // pred_check_branch
        %159 = sbr.rel (%p157) target = $region24
      $region23: #{basic_cnn_forward.8} parent=19 // pred_region
        %p160 = scmp.lt.s32.totalorder %s10, 2
        %s161 = scalar_select %p160, %s10, 2
        %s162 = smul.addr %s161, 4
        %s163 = scalar_lea.vmem %s0, %s162
      $region24: #{basic_cnn_forward.8} parent=19 // pred_fallthru
        _
      // Predicated region
      $region25: #{basic_cnn_forward.8} parent=19 // pred_check
        %p164 = pneg %p77
      $region26: #{basic_cnn_forward.8} parent=19 // pred_check_branch
        %166 = sbr.rel (%p164) target = $region28
      $region27: #{basic_cnn_forward.8} parent=19 // pred_region
        %p167 = scmp.lt.s32.totalorder %s10, 2
        %s168 = scalar_select %p167, %s10, 2
        %s169 = smul.addr %s168, 8
        %s170 = scalar_lea.vmem %s2, %s169
      $region28: #{basic_cnn_forward.8} parent=19 // pred_fallthru
        _
      // Predicated region
      $region29: #{basic_cnn_forward.8} parent=19 // pred_check
        %p171 = pneg %p103
      $region30: #{basic_cnn_forward.8} parent=19 // pred_check_branch
        %173 = sbr.rel (%p171) target = $region32
      $region31: #{basic_cnn_forward.8} parent=19 // pred_region
        %p174 = scmp.lt.s32.totalorder %s10, 2
        %s175 = scalar_select %p174, %s10, 2
        %s176 = smul.addr %s175, 8
        %s177 = scalar_lea.vmem %s3, %s176
      $region32: #{basic_cnn_forward.8} parent=19 // pred_fallthru
        _
    $region20: #{basic_cnn_forward.8} parent=5 // pred_fallthru
      _
    %p178 = scmp.le.s32.totalorder 1, %s10
    %p179 = scmp.lt.s32.totalorder %s10, 4
    %p180 = pnand %p178, %p179
    %p181 = pneg %p180
    // Predicated region
    $region33: #{basic_cnn_forward.8} parent=5 // pred_check
      _
    $region34: #{basic_cnn_forward.8} parent=5 // pred_check_branch
      %183 = sbr.rel (%p180) target = $region36
    $region35: #{basic_cnn_forward.8} parent=5 // pred_region
      %s184 = ssub.s32 %s10, 1
      %p185 = scmp.lt.s32.totalorder %s15, 2
      %s186 = scalar_select %p185, %s15, 2
      %s187 = smul.addr %s186, 4
      %s188 = scalar_lea.vmem %s0, %s187
      %p189 = pneg %p36
      %p190 = pneg %p33
      %p191 = pneg %p57
      %p192 = pneg %p54
      %p193 = scmp.lt.s32.totalorder %s15, 2
      %s194 = scalar_select %p193, %s15, 2
      %s195 = smul.addr %s194, 8
      %s196 = scalar_lea.vmem %s2, %s195
      %p197 = pneg %p83
      %p198 = pneg %p80
      %p199 = scmp.lt.s32.totalorder %s15, 2
      %s200 = scalar_select %p199, %s15, 2
      %s201 = smul.addr %s200, 8
      %s202 = scalar_lea.vmem %s3, %s201
      %p203 = pneg %p109
      %p204 = pneg %p106
      %p205 = pneg %p135
      %p206 = pneg %p132
      %p207 = scmp.lt.s32.totalorder %s15, 2
      %s208 = scalar_select %p207, %s15, 2
      %s209 = smul.addr %s208, 8
      %s210 = scalar_lea.vmem %s4, %s209
      %p211 = scmp.lt.s32.totalorder %s15, 2
      %s212 = scalar_select %p211, %s15, 2
      %s213 = smul.addr %s212, 4
      %s214 = scalar_lea.vmem %s0, %s213
      %p215 = scmp.lt.s32.totalorder %s15, 2
      %s216 = scalar_select %p215, %s15, 2
      %s217 = smul.addr %s216, 8
      %s218 = scalar_lea.vmem %s2, %s217
      %p219 = scmp.lt.s32.totalorder %s15, 2
      %s220 = scalar_select %p219, %s15, 2
      %s221 = smul.addr %s220, 8
      %s222 = scalar_lea.vmem %s3, %s221
      %p223 = scmp.lt.s32.totalorder %s15, 2
      %s224 = scalar_select %p223, %s15, 2
      %s225 = smul.addr %s224, 8
      %s226 = scalar_lea.vmem %s4, %s225
      %v228 = vld [vmem:[%s214] sm:$0xf]
      %v229 = vld [vmem:[%s1] sm:$0xf]
      %v230 = vld [vmem:[%s1 + $0x4] sm:$0xf]
      %v231 = vld [vmem:[%s1 + $0x8] sm:$0xf]
      %v232 = vld [vmem:[%s1 + $0xc] sm:$0xf]
      %v233 = vld [vmem:[%s1 + $0x10] sm:$0xf]
      %v234 = vld [vmem:[%s1 + $0x14] sm:$0xf]
      %v235 = vld [vmem:[%s1 + $0x18] sm:$0xf]
      %v236 = vld [vmem:[%s1 + $0x1c] sm:$0xf]
      %v237 = vld [vmem:[%s1 + $0x20] sm:$0xf]
      %v238 = vld [vmem:[%s1 + $0x24] sm:$0xf]
      %v239 = vld [vmem:[%s1 + $0x28] sm:$0xf]
      %v240 = vld [vmem:[%s1 + $0x2c] sm:$0xf]
      %v241 = vld [vmem:[%s1 + $0x30] sm:$0xf]
      %v242 = vld [vmem:[%s1 + $0x34] sm:$0xf]
      %v243 = vld [vmem:[%s1 + $0x38] sm:$0xf]
      %v244 = vld [vmem:[%s1 + $0x3c] sm:$0xf]
      %v261 = vunpack.c.l.b16 %v229
      %v262 = vunpack.c.l.b16 %v230
      %v263 = vunpack.c.l.b16 %v231
      %v264 = vunpack.c.l.b16 %v232
      %v265 = vunpack.c.l.b16 %v233
      %v266 = vunpack.c.l.b16 %v234
      %v267 = vunpack.c.l.b16 %v235
      %v268 = vunpack.c.l.b16 %v236
      %v269 = vunpack.c.l.b16 %v237
      %v270 = vunpack.c.l.b16 %v238
      %v271 = vunpack.c.l.b16 %v239
      %v272 = vunpack.c.l.b16 %v240
      %v273 = vunpack.c.l.b16 %v241
      %v274 = vunpack.c.l.b16 %v242
      %v275 = vunpack.c.l.b16 %v243
      %v276 = vunpack.c.l.b16 %v244
      %v277 = vpack.c.b16 %v262, %v261
      %v278 = vpack.c.b16 %v264, %v263
      %v279 = vpack.c.b16 %v266, %v265
      %v280 = vpack.c.b16 %v268, %v267
      %v281 = vpack.c.b16 %v270, %v269
      %v282 = vpack.c.b16 %v272, %v271
      %v283 = vpack.c.b16 %v274, %v273
      %v284 = vpack.c.b16 %v276, %v275
      %293 = vmatprep.subr.bf16.mxu0 0
      %294 = vmatpush1.bf16.msra.mxu0 %v284
      %295 = vmatprep.subr.bf16.mxu0 0
      %296 = vmatpush1.bf16.msra.mxu0 %v283
      %297 = vmatprep.subr.bf16.mxu0 0
      %298 = vmatpush1.bf16.msra.mxu0 %v282
      %299 = vmatprep.subr.bf16.mxu0 0
      %300 = vmatpush1.bf16.msra.mxu0 %v281
      %301 = vmatprep.subr.bf16.mxu0 0
      %302 = vmatpush1.bf16.msra.mxu0 %v280
      %303 = vmatprep.subr.bf16.mxu0 0
      %304 = vmatpush1.bf16.msra.mxu0 %v279
      %305 = vmatprep.subr.bf16.mxu0 0
      %306 = vmatpush1.bf16.msra.mxu0 %v278
      %307 = vmatprep.subr.bf16.mxu0 0
      %308 = vmatpush1.bf16.msra.mxu0 %v277
      %309 = vmatprep.subr.bf16.mxu0 0
      %310 = vmatpush2.bf16.msra.mxu0 0
      %311 = vmatprep.subr.bf16.mxu0 0
      %312 = vmatpush2.bf16.msra.mxu0 0
      %313 = vmatprep.subr.bf16.mxu0 0
      %314 = vmatpush2.bf16.msra.mxu0 0
      %315 = vmatprep.subr.bf16.mxu0 0
      %316 = vmatpush2.bf16.msra.mxu0 0
      %317 = vmatprep.subr.bf16.mxu0 0
      %318 = vmatpush2.bf16.msra.mxu0 0
      %319 = vmatprep.subr.bf16.mxu0 0
      %320 = vmatpush2.bf16.msra.mxu0 0
      %321 = vmatprep.subr.bf16.mxu0 0
      %322 = vmatpush2.bf16.msra.mxu0 0
      %323 = vmatprep.subr.bf16.mxu0 0
      %324 = vmatpush2.bf16.msra.mxu0 0
      %325 = vmatprep.mubr.bf16.mxu0 0
      %326 = vmatmul.mubr.bf16.gmra.mxu0 %v228
      %v327 = vpop.f32.mrf.mxu0
      %v328 = vadd.f32 0.0, %v327
      %v329 = vpop.f32.mrf.mxu0
      %v330 = vpop.f32.mrf.mxu0
      %v331 = vpop.f32.mrf.mxu0
      %332 = vdwg.mxu0
      %vm333 = vcmask 64512
      %v334 = vsel %vm333, %v328, 0.0
      %335 = vadd.xlane.f32.xlu0 %v334
      %v336 = vpop.xlane.xlu0 %335
      %v337 = vrcp.pop 8.0
      %v338 = vmul.f32 %v336, %v337
      %v339 = vmul.f32 %v328, %v328
      %v340 = vsel %vm333, %v339, 0.0
      %341 = vadd.xlane.f32.xlu0 %v340
      %v342 = vpop.xlane.xlu0 %341
      %v343 = vmul.f32 %v342, %v337
      %v344 = vmul.f32 %v338, %v338
      %v345 = vsub.f32 %v343, %v344
      %v346 = vmax.f32 %v345, 0.0
      %v347 = vsub.f32 %v328, %v338
      %v348 = vadd.f32 %v346, 1e-05
      %v349 = vrsqrt.pop %v348
      %v350 = vmul.f32 %v347, %v349
      %v351 = vld [vmem:[%s218] sm:$0xff]
      %353 = vset.pattern.permute.xlu0 0
      %354 = vperm.xlu0 %353, %v351
      %v355 = vpop.permute.xlu0 %354
      %v357 = vmul.f32 %v350, %v355
      %v358 = vld [vmem:[%s222] sm:$0xff]
      %360 = vset.pattern.permute.xlu0 0
      %361 = vperm.xlu0 %360, %v358
      %v362 = vpop.permute.xlu0 %361
      %v364 = vadd.f32 %v357, %v362
      %v365 = vmax.f32 %v364, 0.0
      %366 = vst.msk [vmem:[%s226] sm:$0xff] %vm333, %v365
      %p367 = scmp.lt.s32.totalorder %s15, 2
      %s368 = scalar_select %p367, %s15, 2
      %s369 = smul.addr %s368, 8
      %s370 = scalar_lea.vmem %s4, %s369
      // Predicated region
      $region37: #{basic_cnn_forward.8} parent=35 // pred_check
        %p371 = pneg %p132
      $region38: #{basic_cnn_forward.8} parent=35 // pred_check_branch
        %373 = sbr.rel (%p371) target = $region40
      $region39: #{basic_cnn_forward.8} parent=35 // pred_region
        _
      $region40: #{basic_cnn_forward.8} parent=35 // pred_fallthru
        _
    $region36: #{basic_cnn_forward.8} parent=5 // pred_fallthru
      _
    %p374 = scmp.le.s32.totalorder 2, %s10
    // Predicated region
    $region41: #{basic_cnn_forward.8} parent=5 // pred_check
      %p375 = pneg %p374
    $region42: #{basic_cnn_forward.8} parent=5 // pred_check_branch
      %377 = sbr.rel (%p375) target = $region44
    $region43: #{basic_cnn_forward.8} parent=5 // pred_region
      %s378 = ssub.s32 %s10, 2
      // Predicated region
      $region45: #{basic_cnn_forward.8} parent=43 // pred_check
        %p379 = pneg %p138
      $region46: #{basic_cnn_forward.8} parent=43 // pred_check_branch
        %381 = sbr.rel (%p379) target = $region48
      $region47: #{basic_cnn_forward.8} parent=43 // pred_region
        %p382 = scmp.lt.s32.totalorder %s16, 2
        %s383 = scalar_select %p382, %s16, 2
        %s384 = smul.addr %s383, 8
        %s385 = scalar_lea.vmem %s4, %s384
      $region48: #{basic_cnn_forward.8} parent=43 // pred_fallthru
        _
    $region44: #{basic_cnn_forward.8} parent=5 // pred_fallthru
      _
  $region6: #{basic_cnn_forward.8} parent=0 // loop_footer
    %s14 = sadd.s32 1, %s10
  $region7: #{basic_cnn_forward.8} parent=0 // loop_footer_branch
    %9 = sbr.rel target = $region3
  $region8: #{basic_cnn_forward.8} parent=0 // loop_exit
    _

// kernel: basic_cnn_forward.9
$region0: #{basic_cnn_forward.9}
  #allocation0 [shape = 'u32[]', space=smem, size = 0x4, offset = 0x4, fixed_abs, tag = 'smem constant byte address 0x4 - core index']
  #allocation1 [shape = 'u32[144,128]{1,0:T(1,128)}', space=vmem, size = 0x12000, scoped, tag = 'internal scratch']
  %s0 = inlined_call_operand.vmem [shape: f32[2,96], index: 0, kind: input, shape index: {}]
  %s1 = inlined_call_operand.vmem [shape: bf16[96,1000], index: 1, kind: input, shape index: {}]
  %s2 = inlined_call_operand.vmem [shape: f32[1,1000], index: 2, kind: input, shape index: {}]
  %s3 = inlined_call_operand.vmem [shape: bf16[1000,4], index: 3, kind: input, shape index: {}]
  %s4 = inlined_call_operand.vmem [shape: f32[1,4], index: 4, kind: input, shape index: {}]
  %s5 = inlined_call_operand.hbm [shape: f32[2,4], index: 5, kind: output, shape index: {}]
  %s6 = sld [smem:[#allocation0]]
  $region30: #{basic_cnn_forward.9} parent=0
    _
  %s8 = ssub.s32 1, %s6
  %s9 = scalar_select 0, %s8, %s6
  $region1: #{basic_cnn_forward.9} parent=0
    #allocation2 [shape = 'u8[1024]{0}', space=vmem, size = 0x400, scoped, tag = 'output window, operand 0, single buffered']
    #allocation3 [shape = 's32[1]{0}', space=sflag, size = 0x4, scoped, tag = 'scoped memory for basic_cnn_forward.9']
    %10 = vsyncpa [#allocation3], 0
    // Predicated region
    $region2: #{basic_cnn_forward.9} parent=1 // pred_check
      _
    $region3: #{basic_cnn_forward.9} parent=1 // pred_check_branch
      %12 = sbr.rel (0) target = $region5
    $region4: #{basic_cnn_forward.9} parent=1 // pred_region
      _
    $region5: #{basic_cnn_forward.9} parent=1 // pred_fallthru
      _
    // Predicated region
    $region6: #{basic_cnn_forward.9} parent=1 // pred_check
      _
    $region7: #{basic_cnn_forward.9} parent=1 // pred_check_branch
      %14 = sbr.rel (0) target = $region9
    $region8: #{basic_cnn_forward.9} parent=1 // pred_region
      _
    $region9: #{basic_cnn_forward.9} parent=1 // pred_fallthru
      _
    // Predicated region
    $region10: #{basic_cnn_forward.9} parent=1 // pred_check
      _
    $region11: #{basic_cnn_forward.9} parent=1 // pred_check_branch
      %16 = sbr.rel (0) target = $region13
    $region12: #{basic_cnn_forward.9} parent=1 // pred_region
      _
    $region13: #{basic_cnn_forward.9} parent=1 // pred_fallthru
      _
    // Predicated region
    $region14: #{basic_cnn_forward.9} parent=1 // pred_check
      _
    $region15: #{basic_cnn_forward.9} parent=1 // pred_check_branch
      %18 = sbr.rel (0) target = $region17
    $region16: #{basic_cnn_forward.9} parent=1 // pred_region
      _
    $region17: #{basic_cnn_forward.9} parent=1 // pred_fallthru
      _
    // Predicated region
    $region18: #{basic_cnn_forward.9} parent=1 // pred_check
      _
    $region19: #{basic_cnn_forward.9} parent=1 // pred_check_branch
      %20 = sbr.rel (0) target = $region21
    $region20: #{basic_cnn_forward.9} parent=1 // pred_region
      _
    $region21: #{basic_cnn_forward.9} parent=1 // pred_fallthru
      _
    %v22 = vld [vmem:[%s0] sm:$0x3]
    %v23 = vpack.c.bf16 %v22, %v22
    %v24 = vld [vmem:[%s1] sm:$0xff]
    %v25 = vld [vmem:[%s1 + $0x8] sm:$0xff]
    %v26 = vld [vmem:[%s1 + $0x10] sm:$0xff]
    %v27 = vld [vmem:[%s1 + $0x18] sm:$0xff]
    %v28 = vld [vmem:[%s1 + $0x20] sm:$0xff]
    %v29 = vld [vmem:[%s1 + $0x28] sm:$0xff]
    %v30 = vld [vmem:[%s1 + $0x30] sm:$0xff]
    %v31 = vld [vmem:[%s1 + $0x38] sm:$0xff]
    %v32 = vld [vmem:[%s1 + $0x40] sm:$0xff]
    %v33 = vld [vmem:[%s1 + $0x48] sm:$0xff]
    %v34 = vld [vmem:[%s1 + $0x50] sm:$0xff]
    %v35 = vld [vmem:[%s1 + $0x58] sm:$0xff]
    %v36 = vld [vmem:[%s1 + $0x60] sm:$0xff]
    %v37 = vld [vmem:[%s1 + $0x68] sm:$0xff]
    %v38 = vld [vmem:[%s1 + $0x70] sm:$0xff]
    %v39 = vld [vmem:[%s1 + $0x78] sm:$0xff]
    %v40 = vld [vmem:[%s1 + $0x80] sm:$0xff]
    %v41 = vld [vmem:[%s1 + $0x88] sm:$0xff]
    %v42 = vld [vmem:[%s1 + $0x90] sm:$0xff]
    %v43 = vld [vmem:[%s1 + $0x98] sm:$0xff]
    %v44 = vld [vmem:[%s1 + $0xa0] sm:$0xff]
    %v45 = vld [vmem:[%s1 + $0xa8] sm:$0xff]
    %v46 = vld [vmem:[%s1 + $0xb0] sm:$0xff]
    %v47 = vld [vmem:[%s1 + $0xb8] sm:$0xff]
    %v48 = vld [vmem:[%s1 + $0xc0] sm:$0xff]
    %v49 = vld [vmem:[%s1 + $0xc8] sm:$0xff]
    %v50 = vld [vmem:[%s1 + $0xd0] sm:$0xff]
    %v51 = vld [vmem:[%s1 + $0xd8] sm:$0xff]
    %v52 = vld [vmem:[%s1 + $0xe0] sm:$0xff]
    %v53 = vld [vmem:[%s1 + $0xe8] sm:$0xff]
    %v54 = vld [vmem:[%s1 + $0xf0] sm:$0xff]
    %v55 = vld [vmem:[%s1 + $0xf8] sm:$0xff]
    %v56 = vld [vmem:[%s1 + $0x100] sm:$0xff]
    %v57 = vld [vmem:[%s1 + $0x108] sm:$0xff]
    %v58 = vld [vmem:[%s1 + $0x110] sm:$0xff]
    %v59 = vld [vmem:[%s1 + $0x118] sm:$0xff]
    %v60 = vld [vmem:[%s1 + $0x120] sm:$0xff]
    %v61 = vld [vmem:[%s1 + $0x128] sm:$0xff]
    %v62 = vld [vmem:[%s1 + $0x130] sm:$0xff]
    %v63 = vld [vmem:[%s1 + $0x138] sm:$0xff]
    %v64 = vld [vmem:[%s1 + $0x140] sm:$0xff]
    %v65 = vld [vmem:[%s1 + $0x148] sm:$0xff]
    %v66 = vld [vmem:[%s1 + $0x150] sm:$0xff]
    %v67 = vld [vmem:[%s1 + $0x158] sm:$0xff]
    %v68 = vld [vmem:[%s1 + $0x160] sm:$0xff]
    %v69 = vld [vmem:[%s1 + $0x168] sm:$0xff]
    %v70 = vld [vmem:[%s1 + $0x170] sm:$0xff]
    %v71 = vld [vmem:[%s1 + $0x178] sm:$0xff]
    %v72 = vld [vmem:[%s2] sm:$0xff]
    %v74 = vlaneseq
    %v75 = vshrl.u32 %v74, 7
    %v76 = vsub.s32 0, %v75
    %v77 = vrot.slane %v72, %v76
    %v78 = vlaneseq
    %v79 = vshrl.u32 %v78, 7
    %v80 = vsub.s32 1, %v79
    %v81 = vrot.slane %v72, %v80
    %v82 = vlaneseq
    %v83 = vshrl.u32 %v82, 7
    %v84 = vsub.s32 2, %v83
    %v85 = vrot.slane %v72, %v84
    %v86 = vlaneseq
    %v87 = vshrl.u32 %v86, 7
    %v88 = vsub.s32 3, %v87
    %v89 = vrot.slane %v72, %v88
    %v90 = vlaneseq
    %v91 = vshrl.u32 %v90, 7
    %v92 = vsub.s32 4, %v91
    %v93 = vrot.slane %v72, %v92
    %v94 = vlaneseq
    %v95 = vshrl.u32 %v94, 7
    %v96 = vsub.s32 5, %v95
    %v97 = vrot.slane %v72, %v96
    %v98 = vlaneseq
    %v99 = vshrl.u32 %v98, 7
    %v100 = vsub.s32 6, %v99
    %v101 = vrot.slane %v72, %v100
    %v102 = vlaneseq
    %v103 = vshrl.u32 %v102, 7
    %v104 = vsub.s32 7, %v103
    %v105 = vrot.slane %v72, %v104
    %v162 = vunpack.c.l.b16 %v24
    %v163 = vunpack.c.h.b16 %v24
    %v164 = vunpack.c.l.b16 %v25
    %v165 = vunpack.c.h.b16 %v25
    %v166 = vunpack.c.l.b16 %v26
    %v167 = vunpack.c.h.b16 %v26
    %v168 = vunpack.c.l.b16 %v27
    %v169 = vunpack.c.h.b16 %v27
    %v170 = vunpack.c.l.b16 %v28
    %v171 = vunpack.c.h.b16 %v28
    %v172 = vunpack.c.l.b16 %v29
    %v173 = vunpack.c.h.b16 %v29
    %v174 = vunpack.c.l.b16 %v30
    %v175 = vunpack.c.h.b16 %v30
    %v176 = vunpack.c.l.b16 %v31
    %v177 = vunpack.c.h.b16 %v31
    %v178 = vunpack.c.l.b16 %v32
    %v179 = vunpack.c.h.b16 %v32
    %v180 = vunpack.c.l.b16 %v33
    %v181 = vunpack.c.h.b16 %v33
    %v182 = vunpack.c.l.b16 %v34
    %v183 = vunpack.c.h.b16 %v34
    %v184 = vunpack.c.l.b16 %v35
    %v185 = vunpack.c.h.b16 %v35
    %v186 = vunpack.c.l.b16 %v36
    %v187 = vunpack.c.h.b16 %v36
    %v188 = vunpack.c.l.b16 %v37
    %v189 = vunpack.c.h.b16 %v37
    %v190 = vunpack.c.l.b16 %v38
    %v191 = vunpack.c.h.b16 %v38
    %v192 = vunpack.c.l.b16 %v39
    %v193 = vunpack.c.h.b16 %v39
    %v194 = vunpack.c.l.b16 %v40
    %v195 = vunpack.c.h.b16 %v40
    %v196 = vunpack.c.l.b16 %v41
    %v197 = vunpack.c.h.b16 %v41
    %v198 = vunpack.c.l.b16 %v42
    %v199 = vunpack.c.h.b16 %v42
    %v200 = vunpack.c.l.b16 %v43
    %v201 = vunpack.c.h.b16 %v43
    %v202 = vunpack.c.l.b16 %v44
    %v203 = vunpack.c.h.b16 %v44
    %v204 = vunpack.c.l.b16 %v45
    %v205 = vunpack.c.h.b16 %v45
    %v206 = vunpack.c.l.b16 %v46
    %v207 = vunpack.c.h.b16 %v46
    %v208 = vunpack.c.l.b16 %v47
    %v209 = vunpack.c.h.b16 %v47
    %v210 = vunpack.c.l.b16 %v48
    %v211 = vunpack.c.h.b16 %v48
    %v212 = vunpack.c.l.b16 %v49
    %v213 = vunpack.c.h.b16 %v49
    %v214 = vunpack.c.l.b16 %v50
    %v215 = vunpack.c.h.b16 %v50
    %v216 = vunpack.c.l.b16 %v51
    %v217 = vunpack.c.h.b16 %v51
    %v218 = vunpack.c.l.b16 %v52
    %v219 = vunpack.c.h.b16 %v52
    %v220 = vunpack.c.l.b16 %v53
    %v221 = vunpack.c.h.b16 %v53
    %v222 = vunpack.c.l.b16 %v54
    %v223 = vunpack.c.h.b16 %v54
    %v224 = vunpack.c.l.b16 %v55
    %v225 = vunpack.c.h.b16 %v55
    %v226 = vunpack.c.l.b16 %v56
    %v227 = vunpack.c.h.b16 %v56
    %v228 = vunpack.c.l.b16 %v57
    %v229 = vunpack.c.h.b16 %v57
    %v230 = vunpack.c.l.b16 %v58
    %v231 = vunpack.c.h.b16 %v58
    %v232 = vunpack.c.l.b16 %v59
    %v233 = vunpack.c.h.b16 %v59
    %v234 = vunpack.c.l.b16 %v60
    %v235 = vunpack.c.h.b16 %v60
    %v236 = vunpack.c.l.b16 %v61
    %v237 = vunpack.c.h.b16 %v61
    %v238 = vunpack.c.l.b16 %v62
    %v239 = vunpack.c.h.b16 %v62
    %v240 = vunpack.c.l.b16 %v63
    %v241 = vunpack.c.h.b16 %v63
    %v242 = vunpack.c.l.b16 %v64
    %v243 = vunpack.c.h.b16 %v64
    %v244 = vunpack.c.l.b16 %v65
    %v245 = vunpack.c.h.b16 %v65
    %v246 = vunpack.c.l.b16 %v66
    %v247 = vunpack.c.h.b16 %v66
    %v248 = vunpack.c.l.b16 %v67
    %v249 = vunpack.c.h.b16 %v67
    %v250 = vunpack.c.l.b16 %v68
    %v251 = vunpack.c.h.b16 %v68
    %v252 = vunpack.c.l.b16 %v69
    %v253 = vunpack.c.h.b16 %v69
    %v254 = vunpack.c.l.b16 %v70
    %v255 = vunpack.c.h.b16 %v70
    %v256 = vunpack.c.l.b16 %v71
    %v257 = vunpack.c.h.b16 %v71
    %v258 = vpack.c.b16 %v170, %v162
    %v259 = vpack.c.b16 %v171, %v163
    %v260 = vpack.c.b16 %v172, %v164
    %v261 = vpack.c.b16 %v173, %v165
    %v262 = vpack.c.b16 %v174, %v166
    %v263 = vpack.c.b16 %v175, %v167
    %v264 = vpack.c.b16 %v176, %v168
    %v265 = vpack.c.b16 %v177, %v169
    %v266 = vpack.c.b16 %v186, %v178
    %v267 = vpack.c.b16 %v187, %v179
    %v268 = vpack.c.b16 %v188, %v180
    %v269 = vpack.c.b16 %v189, %v181
    %v270 = vpack.c.b16 %v190, %v182
    %v271 = vpack.c.b16 %v191, %v183
    %v272 = vpack.c.b16 %v192, %v184
    %v273 = vpack.c.b16 %v193, %v185
    %v274 = vpack.c.b16 %v202, %v194
    %v275 = vpack.c.b16 %v203, %v195
    %v276 = vpack.c.b16 %v204, %v196
    %v277 = vpack.c.b16 %v205, %v197
    %v278 = vpack.c.b16 %v206, %v198
    %v279 = vpack.c.b16 %v207, %v199
    %v280 = vpack.c.b16 %v208, %v200
    %v281 = vpack.c.b16 %v209, %v201
    %v282 = vpack.c.b16 %v218, %v210
    %v283 = vpack.c.b16 %v219, %v211
    %v284 = vpack.c.b16 %v220, %v212
    %v285 = vpack.c.b16 %v221, %v213
    %v286 = vpack.c.b16 %v222, %v214
    %v287 = vpack.c.b16 %v223, %v215
    %v288 = vpack.c.b16 %v224, %v216
    %v289 = vpack.c.b16 %v225, %v217
    %v290 = vpack.c.b16 %v234, %v226
    %v291 = vpack.c.b16 %v235, %v227
    %v292 = vpack.c.b16 %v236, %v228
    %v293 = vpack.c.b16 %v237, %v229
    %v294 = vpack.c.b16 %v238, %v230
    %v295 = vpack.c.b16 %v239, %v231
    %v296 = vpack.c.b16 %v240, %v232
    %v297 = vpack.c.b16 %v241, %v233
    %v298 = vpack.c.b16 %v250, %v242
    %v299 = vpack.c.b16 %v251, %v243
    %v300 = vpack.c.b16 %v252, %v244
    %v301 = vpack.c.b16 %v253, %v245
    %v302 = vpack.c.b16 %v254, %v246
    %v303 = vpack.c.b16 %v255, %v247
    %v304 = vpack.c.b16 %v256, %v248
    %v305 = vpack.c.b16 %v257, %v249
    %vm354 = vcmask 785408
    %v356 = vsel %vm354, %v23, 0
    %358 = vmatprep.subr.bf16.mxu0 0
    %359 = vmatpush1.bf16.msra.mxu0 0
    %360 = vmatprep.subr.bf16.mxu0 0
    %361 = vmatpush1.bf16.msra.mxu0 0
    %362 = vmatprep.subr.bf16.mxu0 %v299
    %363 = vmatpush1.bf16.msra.mxu0 %v298
    %364 = vmatprep.subr.bf16.mxu0 %v291
    %365 = vmatpush1.bf16.msra.mxu0 %v290
    %366 = vmatprep.subr.bf16.mxu0 %v283
    %367 = vmatpush1.bf16.msra.mxu0 %v282
    %368 = vmatprep.subr.bf16.mxu0 %v275
    %369 = vmatpush1.bf16.msra.mxu0 %v274
    %370 = vmatprep.subr.bf16.mxu0 %v267
    %371 = vmatpush1.bf16.msra.mxu0 %v266
    %372 = vmatprep.subr.bf16.mxu0 %v259
    %373 = vmatpush1.bf16.msra.mxu0 %v258
    %374 = vmatprep.subr.bf16.mxu0 0
    %375 = vmatpush2.bf16.msra.mxu0 0
    %376 = vmatprep.subr.bf16.mxu0 0
    %377 = vmatpush2.bf16.msra.mxu0 0
    %378 = vmatprep.subr.bf16.mxu0 0
    %379 = vmatpush2.bf16.msra.mxu0 0
    %380 = vmatprep.subr.bf16.mxu0 0
    %381 = vmatpush2.bf16.msra.mxu0 0
    %382 = vmatprep.subr.bf16.mxu0 0
    %383 = vmatpush2.bf16.msra.mxu0 0
    %384 = vmatprep.subr.bf16.mxu0 0
    %385 = vmatpush2.bf16.msra.mxu0 0
    %386 = vmatprep.subr.bf16.mxu0 0
    %387 = vmatpush2.bf16.msra.mxu0 0
    %388 = vmatprep.subr.bf16.mxu0 0
    %389 = vmatpush2.bf16.msra.mxu0 0
    %390 = vmatprep.mubr.bf16.mxu0 0
    %391 = vmatmul.mubr.bf16.gmra.mxu0 %v356
    %v392 = vpop.f32.mrf.mxu0
    %v393 = vadd.f32 %v77, %v392
    %v394 = vpop.f32.mrf.mxu0
    %v395 = vadd.f32 %v81, %v394
    %v396 = vpop.f32.mrf.mxu0
    %v397 = vpop.f32.mrf.mxu0
    %398 = vdwg.mxu0
    %399 = vmatprep.subr.bf16.mxu0 0
    %400 = vmatpush1.bf16.msra.mxu0 0
    %401 = vmatprep.subr.bf16.mxu0 0
    %402 = vmatpush1.bf16.msra.mxu0 0
    %403 = vmatprep.subr.bf16.mxu0 %v301
    %404 = vmatpush1.bf16.msra.mxu0 %v300
    %405 = vmatprep.subr.bf16.mxu0 %v293
    %406 = vmatpush1.bf16.msra.mxu0 %v292
    %407 = vmatprep.subr.bf16.mxu0 %v285
    %408 = vmatpush1.bf16.msra.mxu0 %v284
    %409 = vmatprep.subr.bf16.mxu0 %v277
    %410 = vmatpush1.bf16.msra.mxu0 %v276
    %411 = vmatprep.subr.bf16.mxu0 %v269
    %412 = vmatpush1.bf16.msra.mxu0 %v268
    %413 = vmatprep.subr.bf16.mxu0 %v261
    %414 = vmatpush1.bf16.msra.mxu0 %v260
    %415 = vmatprep.subr.bf16.mxu0 0
    %416 = vmatpush2.bf16.msra.mxu0 0
    %417 = vmatprep.subr.bf16.mxu0 0
    %418 = vmatpush2.bf16.msra.mxu0 0
    %419 = vmatprep.subr.bf16.mxu0 0
    %420 = vmatpush2.bf16.msra.mxu0 0
    %421 = vmatprep.subr.bf16.mxu0 0
    %422 = vmatpush2.bf16.msra.mxu0 0
    %423 = vmatprep.subr.bf16.mxu0 0
    %424 = vmatpush2.bf16.msra.mxu0 0
    %425 = vmatprep.subr.bf16.mxu0 0
    %426 = vmatpush2.bf16.msra.mxu0 0
    %427 = vmatprep.subr.bf16.mxu0 0
    %428 = vmatpush2.bf16.msra.mxu0 0
    %429 = vmatprep.subr.bf16.mxu0 0
    %430 = vmatpush2.bf16.msra.mxu0 0
    %431 = vmatprep.mubr.bf16.mxu0 0
    %432 = vmatmul.mubr.bf16.gmra.mxu0 %v356
    %v433 = vpop.f32.mrf.mxu0
    %v434 = vadd.f32 %v85, %v433
    %v435 = vpop.f32.mrf.mxu0
    %v436 = vadd.f32 %v89, %v435
    %v437 = vpop.f32.mrf.mxu0
    %v438 = vpop.f32.mrf.mxu0
    %439 = vdwg.mxu0
    %440 = vmatprep.subr.bf16.mxu0 0
    %441 = vmatpush1.bf16.msra.mxu0 0
    %442 = vmatprep.subr.bf16.mxu0 0
    %443 = vmatpush1.bf16.msra.mxu0 0
    %444 = vmatprep.subr.bf16.mxu0 %v303
    %445 = vmatpush1.bf16.msra.mxu0 %v302
    %446 = vmatprep.subr.bf16.mxu0 %v295
    %447 = vmatpush1.bf16.msra.mxu0 %v294
    %448 = vmatprep.subr.bf16.mxu0 %v287
    %449 = vmatpush1.bf16.msra.mxu0 %v286
    %450 = vmatprep.subr.bf16.mxu0 %v279
    %451 = vmatpush1.bf16.msra.mxu0 %v278
    %452 = vmatprep.subr.bf16.mxu0 %v271
    %453 = vmatpush1.bf16.msra.mxu0 %v270
    %454 = vmatprep.subr.bf16.mxu0 %v263
    %455 = vmatpush1.bf16.msra.mxu0 %v262
    %456 = vmatprep.subr.bf16.mxu0 0
    %457 = vmatpush2.bf16.msra.mxu0 0
    %458 = vmatprep.subr.bf16.mxu0 0
    %459 = vmatpush2.bf16.msra.mxu0 0
    %460 = vmatprep.subr.bf16.mxu0 0
    %461 = vmatpush2.bf16.msra.mxu0 0
    %462 = vmatprep.subr.bf16.mxu0 0
    %463 = vmatpush2.bf16.msra.mxu0 0
    %464 = vmatprep.subr.bf16.mxu0 0
    %465 = vmatpush2.bf16.msra.mxu0 0
    %466 = vmatprep.subr.bf16.mxu0 0
    %467 = vmatpush2.bf16.msra.mxu0 0
    %468 = vmatprep.subr.bf16.mxu0 0
    %469 = vmatpush2.bf16.msra.mxu0 0
    %470 = vmatprep.subr.bf16.mxu0 0
    %471 = vmatpush2.bf16.msra.mxu0 0
    %472 = vmatprep.mubr.bf16.mxu0 0
    %473 = vmatmul.mubr.bf16.gmra.mxu0 %v356
    %v474 = vpop.f32.mrf.mxu0
    %v475 = vadd.f32 %v93, %v474
    %v476 = vpop.f32.mrf.mxu0
    %v477 = vadd.f32 %v97, %v476
    %v478 = vpop.f32.mrf.mxu0
    %v479 = vpop.f32.mrf.mxu0
    %480 = vdwg.mxu0
    %481 = vmatprep.subr.bf16.mxu0 0
    %482 = vmatpush1.bf16.msra.mxu0 0
    %483 = vmatprep.subr.bf16.mxu0 0
    %484 = vmatpush1.bf16.msra.mxu0 0
    %485 = vmatprep.subr.bf16.mxu0 %v305
    %486 = vmatpush1.bf16.msra.mxu0 %v304
    %487 = vmatprep.subr.bf16.mxu0 %v297
    %488 = vmatpush1.bf16.msra.mxu0 %v296
    %489 = vmatprep.subr.bf16.mxu0 %v289
    %490 = vmatpush1.bf16.msra.mxu0 %v288
    %491 = vmatprep.subr.bf16.mxu0 %v281
    %492 = vmatpush1.bf16.msra.mxu0 %v280
    %493 = vmatprep.subr.bf16.mxu0 %v273
    %494 = vmatpush1.bf16.msra.mxu0 %v272
    %495 = vmatprep.subr.bf16.mxu0 %v265
    %496 = vmatpush1.bf16.msra.mxu0 %v264
    %497 = vmatprep.subr.bf16.mxu0 0
    %498 = vmatpush2.bf16.msra.mxu0 0
    %499 = vmatprep.subr.bf16.mxu0 0
    %500 = vmatpush2.bf16.msra.mxu0 0
    %501 = vmatprep.subr.bf16.mxu0 0
    %502 = vmatpush2.bf16.msra.mxu0 0
    %503 = vmatprep.subr.bf16.mxu0 0
    %504 = vmatpush2.bf16.msra.mxu0 0
    %505 = vmatprep.subr.bf16.mxu0 0
    %506 = vmatpush2.bf16.msra.mxu0 0
    %507 = vmatprep.subr.bf16.mxu0 0
    %508 = vmatpush2.bf16.msra.mxu0 0
    %509 = vmatprep.subr.bf16.mxu0 0
    %510 = vmatpush2.bf16.msra.mxu0 0
    %511 = vmatprep.subr.bf16.mxu0 0
    %512 = vmatpush2.bf16.msra.mxu0 0
    %513 = vmatprep.mubr.bf16.mxu0 0
    %514 = vmatmul.mubr.bf16.gmra.mxu0 %v356
    %v515 = vpop.f32.mrf.mxu0
    %v516 = vadd.f32 %v101, %v515
    %v517 = vpop.f32.mrf.mxu0
    %v518 = vadd.f32 %v105, %v517
    %v519 = vpop.f32.mrf.mxu0
    %v520 = vpop.f32.mrf.mxu0
    %521 = vdwg.mxu0
    %v522 = vmax.f32 %v393, 0.0
    %v523 = vmax.f32 %v395, 0.0
    %v524 = vmax.f32 %v434, 0.0
    %v525 = vmax.f32 %v436, 0.0
    %v526 = vmax.f32 %v475, 0.0
    %v527 = vmax.f32 %v477, 0.0
    %v528 = vmax.f32 %v516, 0.0
    %v529 = vmax.f32 %v518, 0.0
    %v530 = vpack.c.bf16 %v522, %v522
    %v531 = vpack.c.bf16 %v523, %v523
    %v532 = vpack.c.bf16 %v524, %v524
    %v533 = vpack.c.bf16 %v525, %v525
    %v534 = vpack.c.bf16 %v526, %v526
    %v535 = vpack.c.bf16 %v527, %v527
    %v536 = vpack.c.bf16 %v528, %v528
    %v537 = vpack.c.bf16 %v529, %v529
    %v538 = vld [vmem:[%s3] sm:$0xf]
    %v539 = vld [vmem:[%s3 + $0x4] sm:$0xf]
    %v540 = vld [vmem:[%s3 + $0x8] sm:$0xf]
    %v541 = vld [vmem:[%s3 + $0xc] sm:$0xf]
    %v542 = vld [vmem:[%s3 + $0x10] sm:$0xf]
    %v543 = vld [vmem:[%s3 + $0x14] sm:$0xf]
    %v544 = vld [vmem:[%s3 + $0x18] sm:$0xf]
    %v545 = vld [vmem:[%s3 + $0x1c] sm:$0xf]
    %v546 = vld [vmem:[%s3 + $0x20] sm:$0xf]
    %v547 = vld [vmem:[%s3 + $0x24] sm:$0xf]
    %v548 = vld [vmem:[%s3 + $0x28] sm:$0xf]
    %v549 = vld [vmem:[%s3 + $0x2c] sm:$0xf]
    %v550 = vld [vmem:[%s3 + $0x30] sm:$0xf]
    %v551 = vld [vmem:[%s3 + $0x34] sm:$0xf]
    %v552 = vld [vmem:[%s3 + $0x38] sm:$0xf]
    %v553 = vld [vmem:[%s3 + $0x3c] sm:$0xf]
    %v554 = vld [vmem:[%s3 + $0x40] sm:$0xf]
    %v555 = vld [vmem:[%s3 + $0x44] sm:$0xf]
    %v556 = vld [vmem:[%s3 + $0x48] sm:$0xf]
    %v557 = vld [vmem:[%s3 + $0x4c] sm:$0xf]
    %v558 = vld [vmem:[%s3 + $0x50] sm:$0xf]
    %v559 = vld [vmem:[%s3 + $0x54] sm:$0xf]
    %v560 = vld [vmem:[%s3 + $0x58] sm:$0xf]
    %v561 = vld [vmem:[%s3 + $0x5c] sm:$0xf]
    %v562 = vld [vmem:[%s3 + $0x60] sm:$0xf]
    %v563 = vld [vmem:[%s3 + $0x64] sm:$0xf]
    %v564 = vld [vmem:[%s3 + $0x68] sm:$0xf]
    %v565 = vld [vmem:[%s3 + $0x6c] sm:$0xf]
    %v566 = vld [vmem:[%s3 + $0x70] sm:$0xf]
    %v567 = vld [vmem:[%s3 + $0x74] sm:$0xf]
    %v568 = vld [vmem:[%s3 + $0x78] sm:$0xf]
    %v569 = vld [vmem:[%s3 + $0x7c] sm:$0xf]
    %v570 = vld [vmem:[%s3 + $0x80] sm:$0xf]
    %v571 = vld [vmem:[%s3 + $0x84] sm:$0xf]
    %v572 = vld [vmem:[%s3 + $0x88] sm:$0xf]
    %v573 = vld [vmem:[%s3 + $0x8c] sm:$0xf]
    %v574 = vld [vmem:[%s3 + $0x90] sm:$0xf]
    %v575 = vld [vmem:[%s3 + $0x94] sm:$0xf]
    %v576 = vld [vmem:[%s3 + $0x98] sm:$0xf]
    %v577 = vld [vmem:[%s3 + $0x9c] sm:$0xf]
    %v578 = vld [vmem:[%s3 + $0xa0] sm:$0xf]
    %v579 = vld [vmem:[%s3 + $0xa4] sm:$0xf]
    %v580 = vld [vmem:[%s3 + $0xa8] sm:$0xf]
    %v581 = vld [vmem:[%s3 + $0xac] sm:$0xf]
    %v582 = vld [vmem:[%s3 + $0xb0] sm:$0xf]
    %v583 = vld [vmem:[%s3 + $0xb4] sm:$0xf]
    %v584 = vld [vmem:[%s3 + $0xb8] sm:$0xf]
    %v585 = vld [vmem:[%s3 + $0xbc] sm:$0xf]
    %v586 = vld [vmem:[%s3 + $0xc0] sm:$0xf]
    %v587 = vld [vmem:[%s3 + $0xc4] sm:$0xf]
    %v588 = vld [vmem:[%s3 + $0xc8] sm:$0xf]
    %v589 = vld [vmem:[%s3 + $0xcc] sm:$0xf]
    %v590 = vld [vmem:[%s3 + $0xd0] sm:$0xf]
    %v591 = vld [vmem:[%s3 + $0xd4] sm:$0xf]
    %v592 = vld [vmem:[%s3 + $0xd8] sm:$0xf]
    %v593 = vld [vmem:[%s3 + $0xdc] sm:$0xf]
    %v594 = vld [vmem:[%s3 + $0xe0] sm:$0xf]
    %v595 = vld [vmem:[%s3 + $0xe4] sm:$0xf]
    %v596 = vld [vmem:[%s3 + $0xe8] sm:$0xf]
    %v597 = vld [vmem:[%s3 + $0xec] sm:$0xf]
    %v598 = vld [vmem:[%s3 + $0xf0] sm:$0xf]
    %v599 = vld [vmem:[%s3 + $0xf4] sm:$0xf]
    %v600 = vld [vmem:[%s3 + $0xf8] sm:$0xf]
    %v601 = vld [vmem:[%s3 + $0xfc] sm:$0xf]
    %v602 = vld [vmem:[%s3 + $0x100] sm:$0xf]
    %v603 = vld [vmem:[%s3 + $0x104] sm:$0xf]
    %v604 = vld [vmem:[%s3 + $0x108] sm:$0xf]
    %v605 = vld [vmem:[%s3 + $0x10c] sm:$0xf]
    %v606 = vld [vmem:[%s3 + $0x110] sm:$0xf]
    %v607 = vld [vmem:[%s3 + $0x114] sm:$0xf]
    %v608 = vld [vmem:[%s3 + $0x118] sm:$0xf]
    %v609 = vld [vmem:[%s3 + $0x11c] sm:$0xf]
    %v610 = vld [vmem:[%s3 + $0x120] sm:$0xf]
    %v611 = vld [vmem:[%s3 + $0x124] sm:$0xf]
    %v612 = vld [vmem:[%s3 + $0x128] sm:$0xf]
    %v613 = vld [vmem:[%s3 + $0x12c] sm:$0xf]
    %v614 = vld [vmem:[%s3 + $0x130] sm:$0xf]
    %v615 = vld [vmem:[%s3 + $0x134] sm:$0xf]
    %v616 = vld [vmem:[%s3 + $0x138] sm:$0xf]
    %v617 = vld [vmem:[%s3 + $0x13c] sm:$0xf]
    %v618 = vld [vmem:[%s3 + $0x140] sm:$0xf]
    %v619 = vld [vmem:[%s3 + $0x144] sm:$0xf]
    %v620 = vld [vmem:[%s3 + $0x148] sm:$0xf]
    %v621 = vld [vmem:[%s3 + $0x14c] sm:$0xf]
    %v622 = vld [vmem:[%s3 + $0x150] sm:$0xf]
    %v623 = vld [vmem:[%s3 + $0x154] sm:$0xf]
    %v624 = vld [vmem:[%s3 + $0x158] sm:$0xf]
    %v625 = vld [vmem:[%s3 + $0x15c] sm:$0xf]
    %v626 = vld [vmem:[%s3 + $0x160] sm:$0xf]
    %v627 = vld [vmem:[%s3 + $0x164] sm:$0xf]
    %v628 = vld [vmem:[%s3 + $0x168] sm:$0xf]
    %v629 = vld [vmem:[%s3 + $0x16c] sm:$0xf]
    %v630 = vld [vmem:[%s3 + $0x170] sm:$0xf]
    %v631 = vld [vmem:[%s3 + $0x174] sm:$0xf]
    %v632 = vld [vmem:[%s3 + $0x178] sm:$0xf]
    %v633 = vld [vmem:[%s3 + $0x17c] sm:$0xf]
    %v634 = vld [vmem:[%s3 + $0x180] sm:$0xf]
    %v635 = vld [vmem:[%s3 + $0x184] sm:$0xf]
    %v636 = vld [vmem:[%s3 + $0x188] sm:$0xf]
    %v637 = vld [vmem:[%s3 + $0x18c] sm:$0xf]
    %v638 = vld [vmem:[%s3 + $0x190] sm:$0xf]
    %v639 = vld [vmem:[%s3 + $0x194] sm:$0xf]
    %v640 = vld [vmem:[%s3 + $0x198] sm:$0xf]
    %v641 = vld [vmem:[%s3 + $0x19c] sm:$0xf]
    %v642 = vld [vmem:[%s3 + $0x1a0] sm:$0xf]
    %v643 = vld [vmem:[%s3 + $0x1a4] sm:$0xf]
    %v644 = vld [vmem:[%s3 + $0x1a8] sm:$0xf]
    %v645 = vld [vmem:[%s3 + $0x1ac] sm:$0xf]
    %v646 = vld [vmem:[%s3 + $0x1b0] sm:$0xf]
    %v647 = vld [vmem:[%s3 + $0x1b4] sm:$0xf]
    %v648 = vld [vmem:[%s3 + $0x1b8] sm:$0xf]
    %v649 = vld [vmem:[%s3 + $0x1bc] sm:$0xf]
    %v650 = vld [vmem:[%s3 + $0x1c0] sm:$0xf]
    %v651 = vld [vmem:[%s3 + $0x1c4] sm:$0xf]
    %v652 = vld [vmem:[%s3 + $0x1c8] sm:$0xf]
    %v653 = vld [vmem:[%s3 + $0x1cc] sm:$0xf]
    %v654 = vld [vmem:[%s3 + $0x1d0] sm:$0xf]
    %v655 = vld [vmem:[%s3 + $0x1d4] sm:$0xf]
    %v656 = vld [vmem:[%s3 + $0x1d8] sm:$0xf]
    %v657 = vld [vmem:[%s3 + $0x1dc] sm:$0xf]
    %v658 = vld [vmem:[%s3 + $0x1e0] sm:$0xf]
    %v659 = vld [vmem:[%s3 + $0x1e4] sm:$0xf]
    %v660 = vld [vmem:[%s3 + $0x1e8] sm:$0xf]
    %v661 = vld [vmem:[%s3 + $0x1ec] sm:$0xf]
    %v662 = vld [vmem:[%s3 + $0x1f0] sm:$0xf]
    %v663 = vld [vmem:[%s4] sm:$0x1]
    %v665 = vlaneseq
    %v666 = vshrl.u32 %v665, 7
    %v667 = vsub.s32 0, %v666
    %v668 = vrot.slane %v663, %v667
    %v795 = vunpack.c.l.b16 %v538
    %v796 = vunpack.c.l.b16 %v539
    %v797 = vunpack.c.l.b16 %v540
    %v798 = vunpack.c.l.b16 %v541
    %v799 = vunpack.c.l.b16 %v542
    %v800 = vunpack.c.l.b16 %v543
    %v801 = vunpack.c.l.b16 %v544
    %v802 = vunpack.c.l.b16 %v545
    %v803 = vunpack.c.l.b16 %v546
    %v804 = vunpack.c.l.b16 %v547
    %v805 = vunpack.c.l.b16 %v548
    %v806 = vunpack.c.l.b16 %v549
    %v807 = vunpack.c.l.b16 %v550
    %v808 = vunpack.c.l.b16 %v551
    %v809 = vunpack.c.l.b16 %v552
    %v810 = vunpack.c.l.b16 %v553
    %v811 = vunpack.c.l.b16 %v554
    %v812 = vunpack.c.l.b16 %v555
    %v813 = vunpack.c.l.b16 %v556
    %v814 = vunpack.c.l.b16 %v557
    %v815 = vunpack.c.l.b16 %v558
    %v816 = vunpack.c.l.b16 %v559
    %v817 = vunpack.c.l.b16 %v560
    %v818 = vunpack.c.l.b16 %v561
    %v819 = vunpack.c.l.b16 %v562
    %v820 = vunpack.c.l.b16 %v563
    %v821 = vunpack.c.l.b16 %v564
    %v822 = vunpack.c.l.b16 %v565
    %v823 = vunpack.c.l.b16 %v566
    %v824 = vunpack.c.l.b16 %v567
    %v825 = vunpack.c.l.b16 %v568
    %v826 = vunpack.c.l.b16 %v569
    %v827 = vunpack.c.l.b16 %v570
    %v828 = vunpack.c.l.b16 %v571
    %v829 = vunpack.c.l.b16 %v572
    %v830 = vunpack.c.l.b16 %v573
    %v831 = vunpack.c.l.b16 %v574
    %v832 = vunpack.c.l.b16 %v575
    %v833 = vunpack.c.l.b16 %v576
    %v834 = vunpack.c.l.b16 %v577
    %v835 = vunpack.c.l.b16 %v578
    %v836 = vunpack.c.l.b16 %v579
    %v837 = vunpack.c.l.b16 %v580
    %v838 = vunpack.c.l.b16 %v581
    %v839 = vunpack.c.l.b16 %v582
    %v840 = vunpack.c.l.b16 %v583
    %v841 = vunpack.c.l.b16 %v584
    %v842 = vunpack.c.l.b16 %v585
    %v843 = vunpack.c.l.b16 %v586
    %v844 = vunpack.c.l.b16 %v587
    %v845 = vunpack.c.l.b16 %v588
    %v846 = vunpack.c.l.b16 %v589
    %v847 = vunpack.c.l.b16 %v590
    %v848 = vunpack.c.l.b16 %v591
    %v849 = vunpack.c.l.b16 %v592
    %v850 = vunpack.c.l.b16 %v593
    %v851 = vunpack.c.l.b16 %v594
    %v852 = vunpack.c.l.b16 %v595
    %v853 = vunpack.c.l.b16 %v596
    %v854 = vunpack.c.l.b16 %v597
    %v855 = vunpack.c.l.b16 %v598
    %v856 = vunpack.c.l.b16 %v599
    %v857 = vunpack.c.l.b16 %v600
    %v858 = vunpack.c.l.b16 %v601
    %v859 = vunpack.c.l.b16 %v602
    %v860 = vunpack.c.l.b16 %v603
    %v861 = vunpack.c.l.b16 %v604
    %v862 = vunpack.c.l.b16 %v605
    %v863 = vunpack.c.l.b16 %v606
    %v864 = vunpack.c.l.b16 %v607
    %v865 = vunpack.c.l.b16 %v608
    %v866 = vunpack.c.l.b16 %v609
    %v867 = vunpack.c.l.b16 %v610
    %v868 = vunpack.c.l.b16 %v611
    %v869 = vunpack.c.l.b16 %v612
    %v870 = vunpack.c.l.b16 %v613
    %v871 = vunpack.c.l.b16 %v614
    %v872 = vunpack.c.l.b16 %v615
    %v873 = vunpack.c.l.b16 %v616
    %v874 = vunpack.c.l.b16 %v617
    %v875 = vunpack.c.l.b16 %v618
    %v876 = vunpack.c.l.b16 %v619
    %v877 = vunpack.c.l.b16 %v620
    %v878 = vunpack.c.l.b16 %v621
    %v879 = vunpack.c.l.b16 %v622
    %v880 = vunpack.c.l.b16 %v623
    %v881 = vunpack.c.l.b16 %v624
    %v882 = vunpack.c.l.b16 %v625
    %v883 = vunpack.c.l.b16 %v626
    %v884 = vunpack.c.l.b16 %v627
    %v885 = vunpack.c.l.b16 %v628
    %v886 = vunpack.c.l.b16 %v629
    %v887 = vunpack.c.l.b16 %v630
    %v888 = vunpack.c.l.b16 %v631
    %v889 = vunpack.c.l.b16 %v632
    %v890 = vunpack.c.l.b16 %v633
    %v891 = vunpack.c.l.b16 %v634
    %v892 = vunpack.c.l.b16 %v635
    %v893 = vunpack.c.l.b16 %v636
    %v894 = vunpack.c.l.b16 %v637
    %v895 = vunpack.c.l.b16 %v638
    %v896 = vunpack.c.l.b16 %v639
    %v897 = vunpack.c.l.b16 %v640
    %v898 = vunpack.c.l.b16 %v641
    %v899 = vunpack.c.l.b16 %v642
    %v900 = vunpack.c.l.b16 %v643
    %v901 = vunpack.c.l.b16 %v644
    %v902 = vunpack.c.l.b16 %v645
    %v903 = vunpack.c.l.b16 %v646
    %v904 = vunpack.c.l.b16 %v647
    %v905 = vunpack.c.l.b16 %v648
    %v906 = vunpack.c.l.b16 %v649
    %v907 = vunpack.c.l.b16 %v650
    %v908 = vunpack.c.l.b16 %v651
    %v909 = vunpack.c.l.b16 %v652
    %v910 = vunpack.c.l.b16 %v653
    %v911 = vunpack.c.l.b16 %v654
    %v912 = vunpack.c.l.b16 %v655
    %v913 = vunpack.c.l.b16 %v656
    %v914 = vunpack.c.l.b16 %v657
    %v915 = vunpack.c.l.b16 %v658
    %v916 = vunpack.c.l.b16 %v659
    %v917 = vunpack.c.l.b16 %v660
    %v918 = vunpack.c.l.b16 %v661
    %v919 = vunpack.c.l.b16 %v662
    %v920 = vpack.c.b16 %v796, %v795
    %v921 = vpack.c.b16 %v798, %v797
    %v922 = vpack.c.b16 %v800, %v799
    %v923 = vpack.c.b16 %v802, %v801
    %v924 = vpack.c.b16 %v804, %v803
    %v925 = vpack.c.b16 %v806, %v805
    %v926 = vpack.c.b16 %v808, %v807
    %v927 = vpack.c.b16 %v810, %v809
    %v928 = vpack.c.b16 %v812, %v811
    %v929 = vpack.c.b16 %v814, %v813
    %v930 = vpack.c.b16 %v816, %v815
    %v931 = vpack.c.b16 %v818, %v817
    %v932 = vpack.c.b16 %v820, %v819
    %v933 = vpack.c.b16 %v822, %v821
    %v934 = vpack.c.b16 %v824, %v823
    %v935 = vpack.c.b16 %v826, %v825
    %v936 = vpack.c.b16 %v828, %v827
    %v937 = vpack.c.b16 %v830, %v829
    %v938 = vpack.c.b16 %v832, %v831
    %v939 = vpack.c.b16 %v834, %v833
    %v940 = vpack.c.b16 %v836, %v835
    %v941 = vpack.c.b16 %v838, %v837
    %v942 = vpack.c.b16 %v840, %v839
    %v943 = vpack.c.b16 %v842, %v841
    %v944 = vpack.c.b16 %v844, %v843
    %v945 = vpack.c.b16 %v846, %v845
    %v946 = vpack.c.b16 %v848, %v847
    %v947 = vpack.c.b16 %v850, %v849
    %v948 = vpack.c.b16 %v852, %v851
    %v949 = vpack.c.b16 %v854, %v853
    %v950 = vpack.c.b16 %v856, %v855
    %v951 = vpack.c.b16 %v858, %v857
    %v952 = vpack.c.b16 %v860, %v859
    %v953 = vpack.c.b16 %v862, %v861
    %v954 = vpack.c.b16 %v864, %v863
    %v955 = vpack.c.b16 %v866, %v865
    %v956 = vpack.c.b16 %v868, %v867
    %v957 = vpack.c.b16 %v870, %v869
    %v958 = vpack.c.b16 %v872, %v871
    %v959 = vpack.c.b16 %v874, %v873
    %v960 = vpack.c.b16 %v876, %v875
    %v961 = vpack.c.b16 %v878, %v877
    %v962 = vpack.c.b16 %v880, %v879
    %v963 = vpack.c.b16 %v882, %v881
    %v964 = vpack.c.b16 %v884, %v883
    %v965 = vpack.c.b16 %v886, %v885
    %v966 = vpack.c.b16 %v888, %v887
    %v967 = vpack.c.b16 %v890, %v889
    %v968 = vpack.c.b16 %v892, %v891
    %v969 = vpack.c.b16 %v894, %v893
    %v970 = vpack.c.b16 %v896, %v895
    %v971 = vpack.c.b16 %v898, %v897
    %v972 = vpack.c.b16 %v900, %v899
    %v973 = vpack.c.b16 %v902, %v901
    %v974 = vpack.c.b16 %v904, %v903
    %v975 = vpack.c.b16 %v906, %v905
    %v976 = vpack.c.b16 %v908, %v907
    %v977 = vpack.c.b16 %v910, %v909
    %v978 = vpack.c.b16 %v912, %v911
    %v979 = vpack.c.b16 %v914, %v913
    %v980 = vpack.c.b16 %v916, %v915
    %v981 = vpack.c.b16 %v918, %v917
    %v982 = vpack.c.b16 %v919, %v919
    %vm1045 = vcmask 850944
    %v1047 = vsel %vm1045, %v537, 0
    %vm1049 = vcmask 1043456
    %v1051 = vsel %vm1049, %v982, 0
    %1053 = vmatprep.subr.bf16.mxu0 0
    %1054 = vmatpush1.bf16.msra.mxu0 %v927
    %1055 = vmatprep.subr.bf16.mxu0 0
    %1056 = vmatpush1.bf16.msra.mxu0 %v926
    %1057 = vmatprep.subr.bf16.mxu0 0
    %1058 = vmatpush1.bf16.msra.mxu0 %v925
    %1059 = vmatprep.subr.bf16.mxu0 0
    %1060 = vmatpush1.bf16.msra.mxu0 %v924
    %1061 = vmatprep.subr.bf16.mxu0 0
    %1062 = vmatpush1.bf16.msra.mxu0 %v923
    %1063 = vmatprep.subr.bf16.mxu0 0
    %1064 = vmatpush1.bf16.msra.mxu0 %v922
    %1065 = vmatprep.subr.bf16.mxu0 0
    %1066 = vmatpush1.bf16.msra.mxu0 %v921
    %1067 = vmatprep.subr.bf16.mxu0 0
    %1068 = vmatpush1.bf16.msra.mxu0 %v920
    %1069 = vmatprep.subr.bf16.mxu0 0
    %1070 = vmatpush2.bf16.msra.mxu0 %v935
    %1071 = vmatprep.subr.bf16.mxu0 0
    %1072 = vmatpush2.bf16.msra.mxu0 %v934
    %1073 = vmatprep.subr.bf16.mxu0 0
    %1074 = vmatpush2.bf16.msra.mxu0 %v933
    %1075 = vmatprep.subr.bf16.mxu0 0
    %1076 = vmatpush2.bf16.msra.mxu0 %v932
    %1077 = vmatprep.subr.bf16.mxu0 0
    %1078 = vmatpush2.bf16.msra.mxu0 %v931
    %1079 = vmatprep.subr.bf16.mxu0 0
    %1080 = vmatpush2.bf16.msra.mxu0 %v930
    %1081 = vmatprep.subr.bf16.mxu0 0
    %1082 = vmatpush2.bf16.msra.mxu0 %v929
    %1083 = vmatprep.subr.bf16.mxu0 0
    %1084 = vmatpush2.bf16.msra.mxu0 %v928
    %1085 = vmatprep.mubr.bf16.mxu0 %v531
    %1086 = vmatmul.mubr.bf16.gmra.mxu0 %v530
    %v1087 = vpop.f32.mrf.mxu0
    %v1088 = vadd.f32 %v668, %v1087
    %v1089 = vpop.f32.mrf.mxu0
    %v1090 = vpop.f32.mrf.mxu0
    %v1091 = vpop.f32.mrf.mxu0
    %1092 = vdwg.mxu0
    %1093 = vmatprep.subr.bf16.mxu0 0
    %1094 = vmatpush1.bf16.msra.mxu0 %v943
    %1095 = vmatprep.subr.bf16.mxu0 0
    %1096 = vmatpush1.bf16.msra.mxu0 %v942
    %1097 = vmatprep.subr.bf16.mxu0 0
    %1098 = vmatpush1.bf16.msra.mxu0 %v941
    %1099 = vmatprep.subr.bf16.mxu0 0
    %1100 = vmatpush1.bf16.msra.mxu0 %v940
    %1101 = vmatprep.subr.bf16.mxu0 0
    %1102 = vmatpush1.bf16.msra.mxu0 %v939
    %1103 = vmatprep.subr.bf16.mxu0 0
    %1104 = vmatpush1.bf16.msra.mxu0 %v938
    %1105 = vmatprep.subr.bf16.mxu0 0
    %1106 = vmatpush1.bf16.msra.mxu0 %v937
    %1107 = vmatprep.subr.bf16.mxu0 0
    %1108 = vmatpush1.bf16.msra.mxu0 %v936
    %1109 = vmatprep.subr.bf16.mxu0 0
    %1110 = vmatpush2.bf16.msra.mxu0 %v951
    %1111 = vmatprep.subr.bf16.mxu0 0
    %1112 = vmatpush2.bf16.msra.mxu0 %v950
    %1113 = vmatprep.subr.bf16.mxu0 0
    %1114 = vmatpush2.bf16.msra.mxu0 %v949
    %1115 = vmatprep.subr.bf16.mxu0 0
    %1116 = vmatpush2.bf16.msra.mxu0 %v948
    %1117 = vmatprep.subr.bf16.mxu0 0
    %1118 = vmatpush2.bf16.msra.mxu0 %v947
    %1119 = vmatprep.subr.bf16.mxu0 0
    %1120 = vmatpush2.bf16.msra.mxu0 %v946
    %1121 = vmatprep.subr.bf16.mxu0 0
    %1122 = vmatpush2.bf16.msra.mxu0 %v945
    %1123 = vmatprep.subr.bf16.mxu0 0
    %1124 = vmatpush2.bf16.msra.mxu0 %v944
    %1125 = vmatprep.mubr.bf16.mxu0 %v533
    %1126 = vmatmul.mubr.bf16.gmra.mxu0 %v532
    %v1127 = vpop.f32.mrf.mxu0
    %v1128 = vadd.f32 %v1088, %v1127
    %v1129 = vpop.f32.mrf.mxu0
    %v1130 = vpop.f32.mrf.mxu0
    %v1131 = vpop.f32.mrf.mxu0
    %1132 = vdwg.mxu0
    %1133 = vmatprep.subr.bf16.mxu0 0
    %1134 = vmatpush1.bf16.msra.mxu0 %v959
    %1135 = vmatprep.subr.bf16.mxu0 0
    %1136 = vmatpush1.bf16.msra.mxu0 %v958
    %1137 = vmatprep.subr.bf16.mxu0 0
    %1138 = vmatpush1.bf16.msra.mxu0 %v957
    %1139 = vmatprep.subr.bf16.mxu0 0
    %1140 = vmatpush1.bf16.msra.mxu0 %v956
    %1141 = vmatprep.subr.bf16.mxu0 0
    %1142 = vmatpush1.bf16.msra.mxu0 %v955
    %1143 = vmatprep.subr.bf16.mxu0 0
    %1144 = vmatpush1.bf16.msra.mxu0 %v954
    %1145 = vmatprep.subr.bf16.mxu0 0
    %1146 = vmatpush1.bf16.msra.mxu0 %v953
    %1147 = vmatprep.subr.bf16.mxu0 0
    %1148 = vmatpush1.bf16.msra.mxu0 %v952
    %1149 = vmatprep.subr.bf16.mxu0 0
    %1150 = vmatpush2.bf16.msra.mxu0 %v967
    %1151 = vmatprep.subr.bf16.mxu0 0
    %1152 = vmatpush2.bf16.msra.mxu0 %v966
    %1153 = vmatprep.subr.bf16.mxu0 0
    %1154 = vmatpush2.bf16.msra.mxu0 %v965
    %1155 = vmatprep.subr.bf16.mxu0 0
    %1156 = vmatpush2.bf16.msra.mxu0 %v964
    %1157 = vmatprep.subr.bf16.mxu0 0
    %1158 = vmatpush2.bf16.msra.mxu0 %v963
    %1159 = vmatprep.subr.bf16.mxu0 0
    %1160 = vmatpush2.bf16.msra.mxu0 %v962
    %1161 = vmatprep.subr.bf16.mxu0 0
    %1162 = vmatpush2.bf16.msra.mxu0 %v961
    %1163 = vmatprep.subr.bf16.mxu0 0
    %1164 = vmatpush2.bf16.msra.mxu0 %v960
    %1165 = vmatprep.mubr.bf16.mxu0 %v535
    %1166 = vmatmul.mubr.bf16.gmra.mxu0 %v534
    %v1167 = vpop.f32.mrf.mxu0
    %v1168 = vadd.f32 %v1128, %v1167
    %v1169 = vpop.f32.mrf.mxu0
    %v1170 = vpop.f32.mrf.mxu0
    %v1171 = vpop.f32.mrf.mxu0
    %1172 = vdwg.mxu0
    %1173 = vmatprep.subr.bf16.mxu0 0
    %1174 = vmatpush1.bf16.msra.mxu0 %v975
    %1175 = vmatprep.subr.bf16.mxu0 0
    %1176 = vmatpush1.bf16.msra.mxu0 %v974
    %1177 = vmatprep.subr.bf16.mxu0 0
    %1178 = vmatpush1.bf16.msra.mxu0 %v973
    %1179 = vmatprep.subr.bf16.mxu0 0
    %1180 = vmatpush1.bf16.msra.mxu0 %v972
    %1181 = vmatprep.subr.bf16.mxu0 0
    %1182 = vmatpush1.bf16.msra.mxu0 %v971
    %1183 = vmatprep.subr.bf16.mxu0 0
    %1184 = vmatpush1.bf16.msra.mxu0 %v970
    %1185 = vmatprep.subr.bf16.mxu0 0
    %1186 = vmatpush1.bf16.msra.mxu0 %v969
    %1187 = vmatprep.subr.bf16.mxu0 0
    %1188 = vmatpush1.bf16.msra.mxu0 %v968
    %1189 = vmatprep.subr.bf16.mxu0 0
    %1190 = vmatpush2.bf16.msra.mxu0 0
    %1191 = vmatprep.subr.bf16.mxu0 0
    %1192 = vmatpush2.bf16.msra.mxu0 %v1051
    %1193 = vmatprep.subr.bf16.mxu0 0
    %1194 = vmatpush2.bf16.msra.mxu0 %v981
    %1195 = vmatprep.subr.bf16.mxu0 0
    %1196 = vmatpush2.bf16.msra.mxu0 %v980
    %1197 = vmatprep.subr.bf16.mxu0 0
    %1198 = vmatpush2.bf16.msra.mxu0 %v979
    %1199 = vmatprep.subr.bf16.mxu0 0
    %1200 = vmatpush2.bf16.msra.mxu0 %v978
    %1201 = vmatprep.subr.bf16.mxu0 0
    %1202 = vmatpush2.bf16.msra.mxu0 %v977
    %1203 = vmatprep.subr.bf16.mxu0 0
    %1204 = vmatpush2.bf16.msra.mxu0 %v976
    %1205 = vmatprep.mubr.bf16.mxu0 %v1047
    %1206 = vmatmul.mubr.bf16.gmra.mxu0 %v536
    %v1207 = vpop.f32.mrf.mxu0
    %v1208 = vadd.f32 %v1168, %v1207
    %v1209 = vpop.f32.mrf.mxu0
    %v1210 = vpop.f32.mrf.mxu0
    %v1211 = vpop.f32.mrf.mxu0
    %1212 = vdwg.mxu0
    %vm1213 = vcmask 25600
    %v1214 = vsel %vm1213, %v1208, -inf
    %1215 = vmax.xlane.f32.xlu0 %v1214
    %v1216 = vpop.xlane.xlu0 %1215
    %v1217 = vsub.f32 %v1208, %v1216
    %v1218 = vmul.f32 %v1217, 1.442695
    %v1219 = vpow.pop %v1218
    %v1220 = vsel %vm1213, %v1219, 0.0
    %1221 = vadd.xlane.f32.xlu0 %v1220
    %v1222 = vpop.xlane.xlu0 %1221
    %v1223 = vrcp.pop %v1222
    %v1224 = vmul.f32 %v1219, %v1223
    %1225 = vst.msk [vmem:[#allocation2] sm:$0x3] %vm1213, %v1224
    // Predicated region
    $region22: #{basic_cnn_forward.9} parent=1 // pred_check
      _
    $region23: #{basic_cnn_forward.9} parent=1 // pred_check_branch
      %1227 = sbr.rel (0) target = $region25
    $region24: #{basic_cnn_forward.9} parent=1 // pred_region
      %s1229 = ssub.s32 32, 32
      %1230 = vsyncadd [#allocation3], %s1229
      %s1232 = sshll.u32 [#allocation2], 4
      %s1233 = int_to_ptr.vmem [resolvable:$true] %s1232
      %1235 = dma.vmem_to_hbm [thread:$0]  %s1233, 32, %s5, [#allocation3]
    $region25: #{basic_cnn_forward.9} parent=1 // pred_fallthru
      _
    // Predicated region
    $region26: #{basic_cnn_forward.9} parent=1 // pred_check
      _
    $region27: #{basic_cnn_forward.9} parent=1 // pred_check_branch
      %1237 = sbr.rel (0) target = $region29
    $region28: #{basic_cnn_forward.9} parent=1 // pred_region
      %1238 = dma.done [#allocation3], 32
    $region29: #{basic_cnn_forward.9} parent=1 // pred_fallthru
      _
    %1239 = vsyncpa [#allocation3], 1

</llo_original>
